<compile_context>
chip_gen: v7x
topology: tpu7x:2x2x1
jax: 0.10.0
libtpu: 0.0.40
codegen_flags: <defaults>
</compile_context>

<pallas_src>
import jax
import jax.numpy as jnp
from jax import lax
from jax.experimental import pallas as pl
from jax.experimental.pallas import tpu as pltpu


# --------------------------------- kernel ----------------------------------- #

def _wdisc_kernel(x_ref, w1_ref, b1_ref, w2_ref, b2_ref, w3_ref, b3_ref, o_ref):
    # layer 1: leaky_relu(x @ W1 + b1, 0.2)
    h = jnp.dot(x_ref[...], w1_ref[...], preferred_element_type=jnp.float32)
    h = h + b1_ref[...]
    h = jnp.where(h > 0.0, h, 0.2 * h)
    # layer 2: leaky_relu(h @ W2 + b2, 0.2)
    h = jnp.dot(h.astype(w2_ref.dtype), w2_ref[...],
                preferred_element_type=jnp.float32)
    h = h + b2_ref[...]
    h = jnp.where(h > 0.0, h, 0.2 * h)
    # output head (padded to 128 lanes for an unmasked, lane-dense store)
    out = jnp.dot(h.astype(w3_ref.dtype), w3_ref[...],
                  preferred_element_type=jnp.float32)
    out = out + b3_ref[...]
    o_ref[...] = out.astype(o_ref.dtype)


# --------------------------------- wrapper ----------------------------------- #

def _round_up(v, m):
    return ((v + m - 1) // m) * m


def wdiscriminator(x, params, *, block_n=None, compute_dtype=jnp.bfloat16):
    """Pallas implementation of WDiscriminator.forward.

    x      : [..., hidden_size] float32
    params : dict with PyTorch nn.Linear layout:
        'hidden.weight'  [H2, H],  'hidden.bias'  [H2]
        'hidden2.weight' [H2, H2], 'hidden2.bias' [H2]
        'output.weight'  [1, H2],  'output.bias'  [1]
    Returns [..., 1].
    """
    x = jnp.asarray(x)
    out_dtype = x.dtype
    lead = x.shape[:-1]
    h_in = x.shape[-1]
    x2 = x.reshape(-1, h_in)
    n = x2.shape[0]

    w1 = jnp.asarray(params['hidden.weight'])    # [H2, H]
    b1 = jnp.asarray(params['hidden.bias'])      # [H2]
    w2 = jnp.asarray(params['hidden2.weight'])   # [H2, H2]
    b2 = jnp.asarray(params['hidden2.bias'])     # [H2]
    w3 = jnp.asarray(params['output.weight'])    # [1, H2]
    b3 = jnp.asarray(params['output.bias'])      # [1]
    h2_dim = w1.shape[0]

    # Lane-dense padded feature sizes (multiples of 128; scalar head -> 128 lanes).
    in_p = max(_round_up(h_in, 128), 128)
    hid_p = max(_round_up(h2_dim, 128), 128)
    out_p = 128

    def pad2(a, rows, cols):
        return jnp.pad(a, ((0, rows - a.shape[0]), (0, cols - a.shape[1])))

    # Pre-transpose to [in, out] so the kernel computes x @ W directly on the MXU.
    # Zero padding rows/cols contributes exactly zero, so numerics are unchanged.
    w1p = pad2(w1.T, in_p, hid_p).astype(compute_dtype)
    w2p = pad2(w2.T, hid_p, hid_p).astype(compute_dtype)
    w3p = pad2(w3.T, hid_p, out_p).astype(compute_dtype)
    b1p = jnp.pad(b1, (0, hid_p - h2_dim)).astype(jnp.float32)[None, :]
    b2p = jnp.pad(b2, (0, hid_p - h2_dim)).astype(jnp.float32)[None, :]
    b3p = jnp.pad(b3, (0, out_p - 1)).astype(jnp.float32)[None, :]
    xp = jnp.pad(x2, ((0, 0), (0, in_p - h_in))).astype(compute_dtype)

    # Row tiling: large enough to amortize per-step overhead / approach the HBM
    # roofline, small enough that double-buffered tiles fit v7x's 64 MiB VMEM.
    if block_n is None:
        block_n = 512
    block_n = min(block_n, n)
    if block_n != n:
        block_n = max(8, (block_n // 8) * 8)   # keep the (8,128) tiling rule
    grid = (pl.cdiv(n, block_n),)

    # VMEM budget: double-buffered x/out tiles + (double-buffered) weight slabs
    # + headroom for the live f32 hidden activation.
    wbytes = jnp.dtype(compute_dtype).itemsize
    vmem_est = (2 * block_n * in_p * wbytes
                + 2 * (in_p * hid_p + hid_p * hid_p + hid_p * out_p) * wbytes
                + 2 * block_n * out_p * 4
                + 2 * block_n * hid_p * 4
                + 4 * (2 * hid_p + out_p) * 4)
    vmem_limit = int(min(max(vmem_est + (8 << 20), 32 << 20), 48 << 20))

    out_padded = pl.pallas_call(
        _wdisc_kernel,
        out_shape=jax.ShapeDtypeStruct((n, out_p), jnp.float32),
        grid_spec=pltpu.PrefetchScalarGridSpec(
            num_scalar_prefetch=0,
            grid=grid,
            in_specs=[
                pl.BlockSpec((block_n, in_p), lambda i: (i, 0)),   # x row tile
                pl.BlockSpec((in_p, hid_p), lambda i: (0, 0)),     # W1 (grid-invariant)
                pl.BlockSpec((1, hid_p), lambda i: (0, 0)),        # b1
                pl.BlockSpec((hid_p, hid_p), lambda i: (0, 0)),    # W2
                pl.BlockSpec((1, hid_p), lambda i: (0, 0)),        # b2
                pl.BlockSpec((hid_p, out_p), lambda i: (0, 0)),    # W3 (padded head)
                pl.BlockSpec((1, out_p), lambda i: (0, 0)),        # b3
            ],
            out_specs=pl.BlockSpec((block_n, out_p), lambda i: (i, 0)),
        ),
        compiler_params=pltpu.CompilerParams(
            dimension_semantics=("parallel",),
            vmem_limit_bytes=vmem_limit),
    )(xp, w1p, b1p, w2p, b2p, w3p, b3p)

    out = out_padded[:, :1].astype(out_dtype)
    return out.reshape(*lead, 1)


# --------------------------- reference (pure JAX) ----------------------------- #

def _reference(x, params, compute_dtype=jnp.float32):
    """Pure-JAX WDiscriminator.forward, optionally mimicking the kernel's
    bf16-operand / f32-accumulate arithmetic."""
    cd = compute_dtype

    def lin(v, w, b):
        return jnp.dot(v.astype(cd), jnp.asarray(w).T.astype(cd),
                       preferred_element_type=jnp.float32,
                       precision=lax.Precision.HIGHEST) + jnp.asarray(b)

    h = lin(x, params['hidden.weight'], params['hidden.bias'])
    h = jnp.where(h > 0.0, h, 0.2 * h)
    h = lin(h, params['hidden2.weight'], params['hidden2.bias'])
    h = jnp.where(h > 0.0, h, 0.2 * h)
    return lin(h, params['output.weight'], params['output.bias'])


# ----------------------------------- main ------------------------------------- #

if __name__ == "__main__":
    key = jax.random.PRNGKey(0)
    hidden_size, hidden_size2 = 256, 512     # module default hidden_size2=512
    n = 200                                  # deliberately not "nice" row count

    ks = jax.random.split(key, 7)
    params = {
        'hidden.weight':  0.10 * jax.random.normal(ks[0], (hidden_size2, hidden_size), jnp.float32),
        'hidden.bias':    0.10 * jax.random.normal(ks[1], (hidden_size2,), jnp.float32),
        'hidden2.weight': 0.05 * jax.random.normal(ks[2], (hidden_size2, hidden_size2), jnp.float32),
        'hidden2.bias':   0.10 * jax.random.normal(ks[3], (hidden_size2,), jnp.float32),
        'output.weight':  0.10 * jax.random.normal(ks[4], (1, hidden_size2), jnp.float32),
        'output.bias':    0.10 * jax.random.normal(ks[5], (1,), jnp.float32),
    }
    x = jax.random.normal(ks[6], (n, hidden_size), jnp.float32)

    ref_f32 = _reference(x, params, compute_dtype=jnp.float32)
    ref_bf16 = _reference(x, params, compute_dtype=jnp.bfloat16)

    # Default fast path: bf16 operands, f32 accumulation.
    out_bf16 = wdiscriminator(x, params)                       # compute_dtype=bf16
    jax.block_until_ready(out_bf16)
    assert out_bf16.shape == (n, 1)
    # Tight check against a reference using identical bf16/f32-accum arithmetic.
    assert jnp.allclose(out_bf16, ref_bf16, atol=1e-2, rtol=1e-2), \
        float(jnp.max(jnp.abs(out_bf16 - ref_bf16)))
    # Looser check against the exact f32 module output (bf16 rounding only).
    assert jnp.allclose(out_bf16, ref_f32, atol=1.5e-1, rtol=1e-1), \
        float(jnp.max(jnp.abs(out_bf16 - ref_f32)))

    # Full-precision operand path.
    out_f32 = wdiscriminator(x, params, compute_dtype=jnp.float32)
    jax.block_until_ready(out_f32)
    assert out_f32.shape == (n, 1)
    assert jnp.allclose(out_f32, ref_f32, atol=1.5e-1, rtol=1e-1), \
        float(jnp.max(jnp.abs(out_f32 - ref_f32)))

    print("KERNEL_OK")
</pallas_src>

<mosaic_0001>
module attributes {stable_mosaic.version = 11 : i64} {
  func.func @_wdisc_kernel(%arg0: i32, %arg1: memref<200x256xbf16, #tpu.memory_space<vmem>>, %arg2: memref<256x512xbf16, #tpu.memory_space<vmem>>, %arg3: memref<1x512xf32, #tpu.memory_space<vmem>>, %arg4: memref<512x512xbf16, #tpu.memory_space<vmem>>, %arg5: memref<1x512xf32, #tpu.memory_space<vmem>>, %arg6: memref<512x128xbf16, #tpu.memory_space<vmem>>, %arg7: memref<1x128xf32, #tpu.memory_space<vmem>>, %arg8: memref<200x128xf32, #tpu.memory_space<vmem>>) attributes {dimension_semantics = [#tpu.dimension_semantics<parallel>], iteration_bounds = array<i64: 1>, scalar_prefetch = 0 : i64, scratch_operands = 0 : i64, tpu.core_type = #tpu.core_type<tc>, window_params = [{transform_indices = @transform_0, window_bounds = array<i64: 200, 256>}, {pipeline_mode = #tpu.pipeline_mode<synchronous>, transform_indices = @transform_1, window_bounds = array<i64: 256, 512>}, {pipeline_mode = #tpu.pipeline_mode<synchronous>, transform_indices = @transform_2, window_bounds = array<i64: 1, 512>}, {pipeline_mode = #tpu.pipeline_mode<synchronous>, transform_indices = @transform_3, window_bounds = array<i64: 512, 512>}, {pipeline_mode = #tpu.pipeline_mode<synchronous>, transform_indices = @transform_4, window_bounds = array<i64: 1, 512>}, {pipeline_mode = #tpu.pipeline_mode<synchronous>, transform_indices = @transform_5, window_bounds = array<i64: 512, 128>}, {pipeline_mode = #tpu.pipeline_mode<synchronous>, transform_indices = @transform_6, window_bounds = array<i64: 1, 128>}, {transform_indices = @transform_7, window_bounds = array<i64: 200, 128>}]} {
    %c0 = arith.constant 0 : index
    %c0_0 = arith.constant 0 : index
    %0 = vector.load %arg1[%c0, %c0_0] : memref<200x256xbf16, #tpu.memory_space<vmem>>, vector<200x256xbf16>
    %c0_1 = arith.constant 0 : index
    %c0_2 = arith.constant 0 : index
    %1 = vector.load %arg2[%c0_1, %c0_2] : memref<256x512xbf16, #tpu.memory_space<vmem>>, vector<256x512xbf16>
    %cst = arith.constant dense<0.000000e+00> : vector<200x512xf32>
    %2 = tpu.matmul %0, %1, %cst {dimension_numbers = #tpu.dot_dimension_numbers<[1], [0], [0], [1], [0, 0, 1, 1], [], []>} : vector<200x256xbf16>, vector<256x512xbf16>, vector<200x512xf32> -> vector<200x512xf32>
    %c0_3 = arith.constant 0 : index
    %c0_4 = arith.constant 0 : index
    %3 = vector.load %arg3[%c0_3, %c0_4] : memref<1x512xf32, #tpu.memory_space<vmem>>, vector<1x512xf32>
    %4 = vector.broadcast %3 : vector<1x512xf32> to vector<200x512xf32>
    %5 = arith.addf %2, %4 : vector<200x512xf32>
    %cst_5 = arith.constant 0.000000e+00 : f32
    %6 = vector.broadcast %cst_5 : f32 to vector<200x512xf32>
    %7 = arith.cmpf ogt, %5, %6 : vector<200x512xf32>
    %cst_6 = arith.constant 2.000000e-01 : f32
    %8 = vector.broadcast %cst_6 : f32 to vector<200x512xf32>
    %9 = arith.mulf %8, %5 : vector<200x512xf32>
    %10 = arith.select %7, %5, %9 : vector<200x512xi1>, vector<200x512xf32>
    %11 = arith.truncf %10 : vector<200x512xf32> to vector<200x512xbf16>
    %c0_7 = arith.constant 0 : index
    %c0_8 = arith.constant 0 : index
    %12 = vector.load %arg4[%c0_7, %c0_8] : memref<512x512xbf16, #tpu.memory_space<vmem>>, vector<512x512xbf16>
    %cst_9 = arith.constant dense<0.000000e+00> : vector<200x512xf32>
    %13 = tpu.matmul %11, %12, %cst_9 {dimension_numbers = #tpu.dot_dimension_numbers<[1], [0], [0], [1], [0, 0, 1, 1], [], []>} : vector<200x512xbf16>, vector<512x512xbf16>, vector<200x512xf32> -> vector<200x512xf32>
    %c0_10 = arith.constant 0 : index
    %c0_11 = arith.constant 0 : index
    %14 = vector.load %arg5[%c0_10, %c0_11] : memref<1x512xf32, #tpu.memory_space<vmem>>, vector<1x512xf32>
    %15 = vector.broadcast %14 : vector<1x512xf32> to vector<200x512xf32>
    %16 = arith.addf %13, %15 : vector<200x512xf32>
    %cst_12 = arith.constant 0.000000e+00 : f32
    %17 = vector.broadcast %cst_12 : f32 to vector<200x512xf32>
    %18 = arith.cmpf ogt, %16, %17 : vector<200x512xf32>
    %cst_13 = arith.constant 2.000000e-01 : f32
    %19 = vector.broadcast %cst_13 : f32 to vector<200x512xf32>
    %20 = arith.mulf %19, %16 : vector<200x512xf32>
    %21 = arith.select %18, %16, %20 : vector<200x512xi1>, vector<200x512xf32>
    %22 = arith.truncf %21 : vector<200x512xf32> to vector<200x512xbf16>
    %c0_14 = arith.constant 0 : index
    %c0_15 = arith.constant 0 : index
    %23 = vector.load %arg6[%c0_14, %c0_15] : memref<512x128xbf16, #tpu.memory_space<vmem>>, vector<512x128xbf16>
    %cst_16 = arith.constant dense<0.000000e+00> : vector<200x128xf32>
    %24 = tpu.matmul %22, %23, %cst_16 {dimension_numbers = #tpu.dot_dimension_numbers<[1], [0], [0], [1], [0, 0, 1, 1], [], []>} : vector<200x512xbf16>, vector<512x128xbf16>, vector<200x128xf32> -> vector<200x128xf32>
    %c0_17 = arith.constant 0 : index
    %c0_18 = arith.constant 0 : index
    %25 = vector.load %arg7[%c0_17, %c0_18] : memref<1x128xf32, #tpu.memory_space<vmem>>, vector<1x128xf32>
    %26 = vector.broadcast %25 : vector<1x128xf32> to vector<200x128xf32>
    %27 = arith.addf %24, %26 : vector<200x128xf32>
    %c0_19 = arith.constant 0 : index
    %c0_20 = arith.constant 0 : index
    %28 = vector.load %arg8[%c0_19, %c0_20] : memref<200x128xf32, #tpu.memory_space<vmem>>, vector<200x128xf32>
    tpu.vector_store %arg8[%c0_19, %c0_20], %27 {strides = array<i32>} : memref<200x128xf32, #tpu.memory_space<vmem>>, vector<200x128xf32>,
    return
  }
  func.func @transform_0(%arg0: i32) -> (i32, i32) {
    %c0_i32 = arith.constant 0 : i32
    %c0_i32_0 = arith.constant 0 : i32
    return %arg0, %c0_i32 : i32, i32
  }
  func.func @transform_1(%arg0: i32) -> (i32, i32) {
    %c0_i32 = arith.constant 0 : i32
    %c0_i32_0 = arith.constant 0 : i32
    %c0_i32_1 = arith.constant 0 : i32
    return %c0_i32, %c0_i32_0 : i32, i32
  }
  func.func @transform_2(%arg0: i32) -> (i32, i32) {
    %c0_i32 = arith.constant 0 : i32
    %c0_i32_0 = arith.constant 0 : i32
    %c0_i32_1 = arith.constant 0 : i32
    return %c0_i32, %c0_i32_0 : i32, i32
  }
  func.func @transform_3(%arg0: i32) -> (i32, i32) {
    %c0_i32 = arith.constant 0 : i32
    %c0_i32_0 = arith.constant 0 : i32
    %c0_i32_1 = arith.constant 0 : i32
    return %c0_i32, %c0_i32_0 : i32, i32
  }
  func.func @transform_4(%arg0: i32) -> (i32, i32) {
    %c0_i32 = arith.constant 0 : i32
    %c0_i32_0 = arith.constant 0 : i32
    %c0_i32_1 = arith.constant 0 : i32
    return %c0_i32, %c0_i32_0 : i32, i32
  }
  func.func @transform_5(%arg0: i32) -> (i32, i32) {
    %c0_i32 = arith.constant 0 : i32
    %c0_i32_0 = arith.constant 0 : i32
    %c0_i32_1 = arith.constant 0 : i32
    return %c0_i32, %c0_i32_0 : i32, i32
  }
  func.func @transform_6(%arg0: i32) -> (i32, i32) {
    %c0_i32 = arith.constant 0 : i32
    %c0_i32_0 = arith.constant 0 : i32
    %c0_i32_1 = arith.constant 0 : i32
    return %c0_i32, %c0_i32_0 : i32, i32
  }
  func.func @transform_7(%arg0: i32) -> (i32, i32) {
    %c0_i32 = arith.constant 0 : i32
    %c0_i32_0 = arith.constant 0 : i32
    return %arg0, %c0_i32 : i32, i32
  }
}

</mosaic_0001>

<llo_original>
// kernel: tpu_custom_call.1
$region0: #{tpu_custom_call.1}
  #allocation0 [shape = 'u32[]', space=smem, size = 0x4, offset = 0x4, fixed_abs, tag = 'smem constant byte address 0x4 - core index']
  #allocation1 [shape = 'u32[144,128]{1,0:T(1,128)}', space=vmem, size = 0x12000, scoped, tag = 'internal scratch']
  %s0 = inlined_call_operand.hbm [shape: bf16[200,256], index: 0, kind: input, shape index: {}]
  %s1 = inlined_call_operand.hbm [shape: bf16[256,512], index: 1, kind: input, shape index: {}]
  %s2 = inlined_call_operand.vmem [shape: f32[1,512], index: 2, kind: input, shape index: {}]
  %s3 = inlined_call_operand.hbm [shape: bf16[512,512], index: 3, kind: input, shape index: {}]
  %s4 = inlined_call_operand.vmem [shape: f32[1,512], index: 4, kind: input, shape index: {}]
  %s5 = inlined_call_operand.hbm [shape: bf16[512,128], index: 5, kind: input, shape index: {}]
  %s6 = inlined_call_operand.vmem [shape: f32[1,128], index: 6, kind: input, shape index: {}]
  %s7 = inlined_call_operand.hbm [shape: f32[200,128], index: 7, kind: output, shape index: {}]
  %s8 = sld [smem:[#allocation0]]
  $region54: #{tpu_custom_call.1} parent=0
    _
  %s10 = ssub.s32 1, %s8
  %s11 = scalar_select 0, %s10, %s8
  $region1: #{tpu_custom_call.1} parent=0
    #allocation2 [shape = 'u8[102400]{0}', space=vmem, size = 0x19000, scoped, tag = 'input window, operand 0, single buffered']
    #allocation3 [shape = 's32[1]{0}', space=sflag, size = 0x4, scoped, tag = 'scoped memory for tpu_custom_call.1']
    #allocation4 [shape = 's32[1]{0}', space=sflag, size = 0x4, scoped, tag = 'scoped memory for tpu_custom_call.1']
    #allocation5 [shape = 'u8[262144]{0}', space=vmem, size = 0x40000, scoped, tag = 'input window, operand 1, single buffered']
    #allocation6 [shape = 's32[1]{0}', space=sflag, size = 0x4, scoped, tag = 'scoped memory for tpu_custom_call.1']
    #allocation7 [shape = 'u8[524288]{0}', space=vmem, size = 0x80000, scoped, tag = 'input window, operand 3, single buffered']
    #allocation8 [shape = 'u8[131072]{0}', space=vmem, size = 0x20000, scoped, tag = 'input window, operand 5, single buffered']
    #allocation9 [shape = 's32[1]{0}', space=sflag, size = 0x4, scoped, tag = 'scoped memory for tpu_custom_call.1']
    #allocation10 [shape = 'u8[102400]{0}', space=vmem, size = 0x19000, scoped, tag = 'output window, operand 0, single buffered']
    %12 = vsyncpa [#allocation3], 0
    %13 = vsyncpa [#allocation6], 0
    %14 = vsyncpa [#allocation9], 0
    %15 = vsyncpa [#allocation4], 0
    // Predicated region
    $region2: #{tpu_custom_call.1} parent=1 // pred_check
      _
    $region3: #{tpu_custom_call.1} parent=1 // pred_check_branch
      %17 = sbr.rel (0) target = $region5
    $region4: #{tpu_custom_call.1} parent=1 // pred_region
      %s19 = ssub.s32 3200, 3200
      %20 = vsyncadd [#allocation3], %s19
      %s21 = sshll.u32 [#allocation2], 4
      %s22 = int_to_ptr.vmem [resolvable:$true] %s21
      %27 = dma.hbm_to_vmem [thread:$0]  %s0, 3200, %s22, [#allocation3], 128, 128, 8
    $region5: #{tpu_custom_call.1} parent=1 // pred_fallthru
      _
    // Predicated region
    $region6: #{tpu_custom_call.1} parent=1 // pred_check
      _
    $region7: #{tpu_custom_call.1} parent=1 // pred_check_branch
      %29 = sbr.rel (0) target = $region9
    $region8: #{tpu_custom_call.1} parent=1 // pred_region
      %s31 = ssub.s32 8192, 8192
      %32 = vsyncadd [#allocation6], %s31
      %s33 = sshll.u32 [#allocation5], 4
      %s34 = int_to_ptr.vmem [resolvable:$true] %s33
      %39 = dma.hbm_to_vmem [thread:$0]  %s1, 8192, %s34, [#allocation6], 256, 256, 16
    $region9: #{tpu_custom_call.1} parent=1 // pred_fallthru
      _
    // Predicated region
    $region10: #{tpu_custom_call.1} parent=1 // pred_check
      _
    $region11: #{tpu_custom_call.1} parent=1 // pred_check_branch
      %41 = sbr.rel (0) target = $region13
    $region12: #{tpu_custom_call.1} parent=1 // pred_region
      _
    $region13: #{tpu_custom_call.1} parent=1 // pred_fallthru
      _
    // Predicated region
    $region14: #{tpu_custom_call.1} parent=1 // pred_check
      _
    $region15: #{tpu_custom_call.1} parent=1 // pred_check_branch
      %43 = sbr.rel (0) target = $region17
    $region16: #{tpu_custom_call.1} parent=1 // pred_region
      %s45 = ssub.s32 16384, 16384
      %46 = vsyncadd [#allocation6], %s45
      %s47 = sshll.u32 [#allocation7], 4
      %s48 = int_to_ptr.vmem [resolvable:$true] %s47
      %53 = dma.hbm_to_vmem [thread:$0]  %s3, 16384, %s48, [#allocation6], 256, 256, 16
    $region17: #{tpu_custom_call.1} parent=1 // pred_fallthru
      _
    // Predicated region
    $region18: #{tpu_custom_call.1} parent=1 // pred_check
      _
    $region19: #{tpu_custom_call.1} parent=1 // pred_check_branch
      %55 = sbr.rel (0) target = $region21
    $region20: #{tpu_custom_call.1} parent=1 // pred_region
      _
    $region21: #{tpu_custom_call.1} parent=1 // pred_fallthru
      _
    // Predicated region
    $region22: #{tpu_custom_call.1} parent=1 // pred_check
      _
    $region23: #{tpu_custom_call.1} parent=1 // pred_check_branch
      %57 = sbr.rel (0) target = $region25
    $region24: #{tpu_custom_call.1} parent=1 // pred_region
      %s59 = ssub.s32 4096, 4096
      %60 = vsyncadd [#allocation9], %s59
      %s61 = sshll.u32 [#allocation8], 4
      %s62 = int_to_ptr.vmem [resolvable:$true] %s61
      %67 = dma.hbm_to_vmem [thread:$0]  %s5, 4096, %s62, [#allocation9], 64, 64, 4
    $region25: #{tpu_custom_call.1} parent=1 // pred_fallthru
      _
    // Predicated region
    $region26: #{tpu_custom_call.1} parent=1 // pred_check
      _
    $region27: #{tpu_custom_call.1} parent=1 // pred_check_branch
      %69 = sbr.rel (0) target = $region29
    $region28: #{tpu_custom_call.1} parent=1 // pred_region
      _
    $region29: #{tpu_custom_call.1} parent=1 // pred_fallthru
      _
    // Predicated region
    $region30: #{tpu_custom_call.1} parent=1 // pred_check
      _
    $region31: #{tpu_custom_call.1} parent=1 // pred_check_branch
      %71 = sbr.rel (0) target = $region33
    $region32: #{tpu_custom_call.1} parent=1 // pred_region
      %72 = dma.done [#allocation3], 3200
    $region33: #{tpu_custom_call.1} parent=1 // pred_fallthru
      _
    // Predicated region
    $region34: #{tpu_custom_call.1} parent=1 // pred_check
      _
    $region35: #{tpu_custom_call.1} parent=1 // pred_check_branch
      %74 = sbr.rel (0) target = $region37
    $region36: #{tpu_custom_call.1} parent=1 // pred_region
      %75 = dma.done [#allocation6], 8192
    $region37: #{tpu_custom_call.1} parent=1 // pred_fallthru
      _
    // Predicated region
    $region38: #{tpu_custom_call.1} parent=1 // pred_check
      _
    $region39: #{tpu_custom_call.1} parent=1 // pred_check_branch
      %77 = sbr.rel (0) target = $region41
    $region40: #{tpu_custom_call.1} parent=1 // pred_region
      %78 = dma.done [#allocation6], 16384
    $region41: #{tpu_custom_call.1} parent=1 // pred_fallthru
      _
    // Predicated region
    $region42: #{tpu_custom_call.1} parent=1 // pred_check
      _
    $region43: #{tpu_custom_call.1} parent=1 // pred_check_branch
      %80 = sbr.rel (0) target = $region45
    $region44: #{tpu_custom_call.1} parent=1 // pred_region
      %81 = dma.done [#allocation9], 4096
    $region45: #{tpu_custom_call.1} parent=1 // pred_fallthru
      _
    %v83 = vld [vmem:[#allocation2] sm:$0xff]
    %v84 = vld [vmem:[#allocation2 + $0x8] sm:$0xff]
    %v85 = vld [vmem:[#allocation2 + $0x10] sm:$0xff]
    %v86 = vld [vmem:[#allocation2 + $0x18] sm:$0xff]
    %v87 = vld [vmem:[#allocation2 + $0x20] sm:$0xff]
    %v88 = vld [vmem:[#allocation2 + $0x28] sm:$0xff]
    %v89 = vld [vmem:[#allocation2 + $0x30] sm:$0xff]
    %v90 = vld [vmem:[#allocation2 + $0x38] sm:$0xff]
    %v91 = vld [vmem:[#allocation2 + $0x40] sm:$0xff]
    %v92 = vld [vmem:[#allocation2 + $0x48] sm:$0xff]
    %v93 = vld [vmem:[#allocation2 + $0x50] sm:$0xff]
    %v94 = vld [vmem:[#allocation2 + $0x58] sm:$0xff]
    %v95 = vld [vmem:[#allocation2 + $0x60] sm:$0xff]
    %v96 = vld [vmem:[#allocation2 + $0x68] sm:$0xff]
    %v97 = vld [vmem:[#allocation2 + $0x70] sm:$0xff]
    %v98 = vld [vmem:[#allocation2 + $0x78] sm:$0xff]
    %v99 = vld [vmem:[#allocation2 + $0x80] sm:$0xff]
    %v100 = vld [vmem:[#allocation2 + $0x88] sm:$0xff]
    %v101 = vld [vmem:[#allocation2 + $0x90] sm:$0xff]
    %v102 = vld [vmem:[#allocation2 + $0x98] sm:$0xff]
    %v103 = vld [vmem:[#allocation2 + $0xa0] sm:$0xff]
    %v104 = vld [vmem:[#allocation2 + $0xa8] sm:$0xff]
    %v105 = vld [vmem:[#allocation2 + $0xb0] sm:$0xff]
    %v106 = vld [vmem:[#allocation2 + $0xb8] sm:$0xff]
    %v107 = vld [vmem:[#allocation2 + $0xc0] sm:$0xff]
    %v108 = vld [vmem:[#allocation5] sm:$0xff]
    %v109 = vld [vmem:[#allocation5 + $0x8] sm:$0xff]
    %v110 = vld [vmem:[#allocation5 + $0x10] sm:$0xff]
    %v111 = vld [vmem:[#allocation5 + $0x18] sm:$0xff]
    %v112 = vld [vmem:[#allocation5 + $0x20] sm:$0xff]
    %v113 = vld [vmem:[#allocation5 + $0x28] sm:$0xff]
    %v114 = vld [vmem:[#allocation5 + $0x30] sm:$0xff]
    %v115 = vld [vmem:[#allocation5 + $0x38] sm:$0xff]
    %v116 = vld [vmem:[#allocation5 + $0x40] sm:$0xff]
    %v117 = vld [vmem:[#allocation5 + $0x48] sm:$0xff]
    %v118 = vld [vmem:[#allocation5 + $0x50] sm:$0xff]
    %v119 = vld [vmem:[#allocation5 + $0x58] sm:$0xff]
    %v120 = vld [vmem:[#allocation5 + $0x60] sm:$0xff]
    %v121 = vld [vmem:[#allocation5 + $0x68] sm:$0xff]
    %v122 = vld [vmem:[#allocation5 + $0x70] sm:$0xff]
    %v123 = vld [vmem:[#allocation5 + $0x78] sm:$0xff]
    %v124 = vld [vmem:[#allocation5 + $0x80] sm:$0xff]
    %v125 = vld [vmem:[#allocation5 + $0x88] sm:$0xff]
    %v126 = vld [vmem:[#allocation5 + $0x90] sm:$0xff]
    %v127 = vld [vmem:[#allocation5 + $0x98] sm:$0xff]
    %v128 = vld [vmem:[#allocation5 + $0xa0] sm:$0xff]
    %v129 = vld [vmem:[#allocation5 + $0xa8] sm:$0xff]
    %v130 = vld [vmem:[#allocation5 + $0xb0] sm:$0xff]
    %v131 = vld [vmem:[#allocation5 + $0xb8] sm:$0xff]
    %v132 = vld [vmem:[#allocation5 + $0xc0] sm:$0xff]
    %v133 = vld [vmem:[#allocation5 + $0xc8] sm:$0xff]
    %v134 = vld [vmem:[#allocation5 + $0xd0] sm:$0xff]
    %v135 = vld [vmem:[#allocation5 + $0xd8] sm:$0xff]
    %v136 = vld [vmem:[#allocation5 + $0xe0] sm:$0xff]
    %v137 = vld [vmem:[#allocation5 + $0xe8] sm:$0xff]
    %v138 = vld [vmem:[#allocation5 + $0xf0] sm:$0xff]
    %v139 = vld [vmem:[#allocation5 + $0xf8] sm:$0xff]
    %v140 = vld [vmem:[#allocation5 + $0x100] sm:$0xff]
    %v141 = vld [vmem:[#allocation5 + $0x108] sm:$0xff]
    %v142 = vld [vmem:[#allocation5 + $0x110] sm:$0xff]
    %v143 = vld [vmem:[#allocation5 + $0x118] sm:$0xff]
    %v144 = vld [vmem:[#allocation5 + $0x120] sm:$0xff]
    %v145 = vld [vmem:[#allocation5 + $0x128] sm:$0xff]
    %v146 = vld [vmem:[#allocation5 + $0x130] sm:$0xff]
    %v147 = vld [vmem:[#allocation5 + $0x138] sm:$0xff]
    %v148 = vld [vmem:[#allocation5 + $0x140] sm:$0xff]
    %v149 = vld [vmem:[#allocation5 + $0x148] sm:$0xff]
    %v150 = vld [vmem:[#allocation5 + $0x150] sm:$0xff]
    %v151 = vld [vmem:[#allocation5 + $0x158] sm:$0xff]
    %v152 = vld [vmem:[#allocation5 + $0x160] sm:$0xff]
    %v153 = vld [vmem:[#allocation5 + $0x168] sm:$0xff]
    %v154 = vld [vmem:[#allocation5 + $0x170] sm:$0xff]
    %v155 = vld [vmem:[#allocation5 + $0x178] sm:$0xff]
    %v156 = vld [vmem:[#allocation5 + $0x180] sm:$0xff]
    %v157 = vld [vmem:[#allocation5 + $0x188] sm:$0xff]
    %v158 = vld [vmem:[#allocation5 + $0x190] sm:$0xff]
    %v159 = vld [vmem:[#allocation5 + $0x198] sm:$0xff]
    %v160 = vld [vmem:[#allocation5 + $0x1a0] sm:$0xff]
    %v161 = vld [vmem:[#allocation5 + $0x1a8] sm:$0xff]
    %v162 = vld [vmem:[#allocation5 + $0x1b0] sm:$0xff]
    %v163 = vld [vmem:[#allocation5 + $0x1b8] sm:$0xff]
    %v164 = vld [vmem:[#allocation5 + $0x1c0] sm:$0xff]
    %v165 = vld [vmem:[#allocation5 + $0x1c8] sm:$0xff]
    %v166 = vld [vmem:[#allocation5 + $0x1d0] sm:$0xff]
    %v167 = vld [vmem:[#allocation5 + $0x1d8] sm:$0xff]
    %v168 = vld [vmem:[#allocation5 + $0x1e0] sm:$0xff]
    %v169 = vld [vmem:[#allocation5 + $0x1e8] sm:$0xff]
    %v170 = vld [vmem:[#allocation5 + $0x1f0] sm:$0xff]
    %v171 = vld [vmem:[#allocation5 + $0x1f8] sm:$0xff]
    %v172 = vld [vmem:[%s2] sm:$0xf]
    %v174 = vlaneseq
    %v175 = vshrl.u32 %v174, 7
    %v176 = vsub.s32 0, %v175
    %v177 = vrot.slane %v172, %v176
    %v178 = vlaneseq
    %v179 = vshrl.u32 %v178, 7
    %v180 = vsub.s32 1, %v179
    %v181 = vrot.slane %v172, %v180
    %v182 = vlaneseq
    %v183 = vshrl.u32 %v182, 7
    %v184 = vsub.s32 2, %v183
    %v185 = vrot.slane %v172, %v184
    %v186 = vlaneseq
    %v187 = vshrl.u32 %v186, 7
    %v188 = vsub.s32 3, %v187
    %v189 = vrot.slane %v172, %v188
    %v219 = vunpack.c.l.b16 %v83
    %v220 = vunpack.c.h.b16 %v83
    %v221 = vunpack.c.l.b16 %v84
    %v222 = vunpack.c.h.b16 %v84
    %v223 = vunpack.c.l.b16 %v85
    %v224 = vunpack.c.h.b16 %v85
    %v225 = vunpack.c.l.b16 %v86
    %v226 = vunpack.c.h.b16 %v86
    %v227 = vunpack.c.l.b16 %v87
    %v228 = vunpack.c.h.b16 %v87
    %v229 = vunpack.c.l.b16 %v88
    %v230 = vunpack.c.h.b16 %v88
    %v231 = vunpack.c.l.b16 %v89
    %v232 = vunpack.c.h.b16 %v89
    %v233 = vunpack.c.l.b16 %v90
    %v234 = vunpack.c.h.b16 %v90
    %v235 = vunpack.c.l.b16 %v91
    %v236 = vunpack.c.h.b16 %v91
    %v237 = vunpack.c.l.b16 %v92
    %v238 = vunpack.c.h.b16 %v92
    %v239 = vunpack.c.l.b16 %v93
    %v240 = vunpack.c.h.b16 %v93
    %v241 = vunpack.c.l.b16 %v94
    %v242 = vunpack.c.h.b16 %v94
    %v243 = vunpack.c.l.b16 %v95
    %v244 = vunpack.c.h.b16 %v95
    %v245 = vunpack.c.l.b16 %v96
    %v246 = vunpack.c.h.b16 %v96
    %v247 = vunpack.c.l.b16 %v97
    %v248 = vunpack.c.h.b16 %v97
    %v249 = vunpack.c.l.b16 %v98
    %v250 = vunpack.c.h.b16 %v98
    %v251 = vunpack.c.l.b16 %v99
    %v252 = vunpack.c.h.b16 %v99
    %v253 = vunpack.c.l.b16 %v100
    %v254 = vunpack.c.h.b16 %v100
    %v255 = vunpack.c.l.b16 %v101
    %v256 = vunpack.c.h.b16 %v101
    %v257 = vunpack.c.l.b16 %v102
    %v258 = vunpack.c.h.b16 %v102
    %v259 = vunpack.c.l.b16 %v103
    %v260 = vunpack.c.h.b16 %v103
    %v261 = vunpack.c.l.b16 %v104
    %v262 = vunpack.c.h.b16 %v104
    %v263 = vunpack.c.l.b16 %v105
    %v264 = vunpack.c.h.b16 %v105
    %v265 = vunpack.c.l.b16 %v106
    %v266 = vunpack.c.h.b16 %v106
    %v267 = vunpack.c.l.b16 %v107
    %v268 = vunpack.c.h.b16 %v107
    %v269 = vpack.c.b16 %v221, %v219
    %v270 = vpack.c.b16 %v222, %v220
    %v271 = vpack.c.b16 %v225, %v223
    %v272 = vpack.c.b16 %v226, %v224
    %v273 = vpack.c.b16 %v229, %v227
    %v274 = vpack.c.b16 %v230, %v228
    %v275 = vpack.c.b16 %v233, %v231
    %v276 = vpack.c.b16 %v234, %v232
    %v277 = vpack.c.b16 %v237, %v235
    %v278 = vpack.c.b16 %v238, %v236
    %v279 = vpack.c.b16 %v241, %v239
    %v280 = vpack.c.b16 %v242, %v240
    %v281 = vpack.c.b16 %v245, %v243
    %v282 = vpack.c.b16 %v246, %v244
    %v283 = vpack.c.b16 %v249, %v247
    %v284 = vpack.c.b16 %v250, %v248
    %v285 = vpack.c.b16 %v253, %v251
    %v286 = vpack.c.b16 %v254, %v252
    %v287 = vpack.c.b16 %v257, %v255
    %v288 = vpack.c.b16 %v258, %v256
    %v289 = vpack.c.b16 %v261, %v259
    %v290 = vpack.c.b16 %v262, %v260
    %v291 = vpack.c.b16 %v265, %v263
    %v292 = vpack.c.b16 %v266, %v264
    %v293 = vpack.c.b16 %v267, %v267
    %v294 = vpack.c.b16 %v268, %v268
    %v385 = vunpack.c.l.b16 %v108
    %v386 = vunpack.c.h.b16 %v108
    %v387 = vunpack.c.l.b16 %v109
    %v388 = vunpack.c.h.b16 %v109
    %v389 = vunpack.c.l.b16 %v110
    %v390 = vunpack.c.h.b16 %v110
    %v391 = vunpack.c.l.b16 %v111
    %v392 = vunpack.c.h.b16 %v111
    %v393 = vunpack.c.l.b16 %v112
    %v394 = vunpack.c.h.b16 %v112
    %v395 = vunpack.c.l.b16 %v113
    %v396 = vunpack.c.h.b16 %v113
    %v397 = vunpack.c.l.b16 %v114
    %v398 = vunpack.c.h.b16 %v114
    %v399 = vunpack.c.l.b16 %v115
    %v400 = vunpack.c.h.b16 %v115
    %v401 = vunpack.c.l.b16 %v116
    %v402 = vunpack.c.h.b16 %v116
    %v403 = vunpack.c.l.b16 %v117
    %v404 = vunpack.c.h.b16 %v117
    %v405 = vunpack.c.l.b16 %v118
    %v406 = vunpack.c.h.b16 %v118
    %v407 = vunpack.c.l.b16 %v119
    %v408 = vunpack.c.h.b16 %v119
    %v409 = vunpack.c.l.b16 %v120
    %v410 = vunpack.c.h.b16 %v120
    %v411 = vunpack.c.l.b16 %v121
    %v412 = vunpack.c.h.b16 %v121
    %v413 = vunpack.c.l.b16 %v122
    %v414 = vunpack.c.h.b16 %v122
    %v415 = vunpack.c.l.b16 %v123
    %v416 = vunpack.c.h.b16 %v123
    %v417 = vunpack.c.l.b16 %v124
    %v418 = vunpack.c.h.b16 %v124
    %v419 = vunpack.c.l.b16 %v125
    %v420 = vunpack.c.h.b16 %v125
    %v421 = vunpack.c.l.b16 %v126
    %v422 = vunpack.c.h.b16 %v126
    %v423 = vunpack.c.l.b16 %v127
    %v424 = vunpack.c.h.b16 %v127
    %v425 = vunpack.c.l.b16 %v128
    %v426 = vunpack.c.h.b16 %v128
    %v427 = vunpack.c.l.b16 %v129
    %v428 = vunpack.c.h.b16 %v129
    %v429 = vunpack.c.l.b16 %v130
    %v430 = vunpack.c.h.b16 %v130
    %v431 = vunpack.c.l.b16 %v131
    %v432 = vunpack.c.h.b16 %v131
    %v433 = vunpack.c.l.b16 %v132
    %v434 = vunpack.c.h.b16 %v132
    %v435 = vunpack.c.l.b16 %v133
    %v436 = vunpack.c.h.b16 %v133
    %v437 = vunpack.c.l.b16 %v134
    %v438 = vunpack.c.h.b16 %v134
    %v439 = vunpack.c.l.b16 %v135
    %v440 = vunpack.c.h.b16 %v135
    %v441 = vunpack.c.l.b16 %v136
    %v442 = vunpack.c.h.b16 %v136
    %v443 = vunpack.c.l.b16 %v137
    %v444 = vunpack.c.h.b16 %v137
    %v445 = vunpack.c.l.b16 %v138
    %v446 = vunpack.c.h.b16 %v138
    %v447 = vunpack.c.l.b16 %v139
    %v448 = vunpack.c.h.b16 %v139
    %v449 = vunpack.c.l.b16 %v140
    %v450 = vunpack.c.h.b16 %v140
    %v451 = vunpack.c.l.b16 %v141
    %v452 = vunpack.c.h.b16 %v141
    %v453 = vunpack.c.l.b16 %v142
    %v454 = vunpack.c.h.b16 %v142
    %v455 = vunpack.c.l.b16 %v143
    %v456 = vunpack.c.h.b16 %v143
    %v457 = vunpack.c.l.b16 %v144
    %v458 = vunpack.c.h.b16 %v144
    %v459 = vunpack.c.l.b16 %v145
    %v460 = vunpack.c.h.b16 %v145
    %v461 = vunpack.c.l.b16 %v146
    %v462 = vunpack.c.h.b16 %v146
    %v463 = vunpack.c.l.b16 %v147
    %v464 = vunpack.c.h.b16 %v147
    %v465 = vunpack.c.l.b16 %v148
    %v466 = vunpack.c.h.b16 %v148
    %v467 = vunpack.c.l.b16 %v149
    %v468 = vunpack.c.h.b16 %v149
    %v469 = vunpack.c.l.b16 %v150
    %v470 = vunpack.c.h.b16 %v150
    %v471 = vunpack.c.l.b16 %v151
    %v472 = vunpack.c.h.b16 %v151
    %v473 = vunpack.c.l.b16 %v152
    %v474 = vunpack.c.h.b16 %v152
    %v475 = vunpack.c.l.b16 %v153
    %v476 = vunpack.c.h.b16 %v153
    %v477 = vunpack.c.l.b16 %v154
    %v478 = vunpack.c.h.b16 %v154
    %v479 = vunpack.c.l.b16 %v155
    %v480 = vunpack.c.h.b16 %v155
    %v481 = vunpack.c.l.b16 %v156
    %v482 = vunpack.c.h.b16 %v156
    %v483 = vunpack.c.l.b16 %v157
    %v484 = vunpack.c.h.b16 %v157
    %v485 = vunpack.c.l.b16 %v158
    %v486 = vunpack.c.h.b16 %v158
    %v487 = vunpack.c.l.b16 %v159
    %v488 = vunpack.c.h.b16 %v159
    %v489 = vunpack.c.l.b16 %v160
    %v490 = vunpack.c.h.b16 %v160
    %v491 = vunpack.c.l.b16 %v161
    %v492 = vunpack.c.h.b16 %v161
    %v493 = vunpack.c.l.b16 %v162
    %v494 = vunpack.c.h.b16 %v162
    %v495 = vunpack.c.l.b16 %v163
    %v496 = vunpack.c.h.b16 %v163
    %v497 = vunpack.c.l.b16 %v164
    %v498 = vunpack.c.h.b16 %v164
    %v499 = vunpack.c.l.b16 %v165
    %v500 = vunpack.c.h.b16 %v165
    %v501 = vunpack.c.l.b16 %v166
    %v502 = vunpack.c.h.b16 %v166
    %v503 = vunpack.c.l.b16 %v167
    %v504 = vunpack.c.h.b16 %v167
    %v505 = vunpack.c.l.b16 %v168
    %v506 = vunpack.c.h.b16 %v168
    %v507 = vunpack.c.l.b16 %v169
    %v508 = vunpack.c.h.b16 %v169
    %v509 = vunpack.c.l.b16 %v170
    %v510 = vunpack.c.h.b16 %v170
    %v511 = vunpack.c.l.b16 %v171
    %v512 = vunpack.c.h.b16 %v171
    %v513 = vpack.c.b16 %v389, %v385
    %v514 = vpack.c.b16 %v390, %v386
    %v515 = vpack.c.b16 %v391, %v387
    %v516 = vpack.c.b16 %v392, %v388
    %v517 = vpack.c.b16 %v397, %v393
    %v518 = vpack.c.b16 %v398, %v394
    %v519 = vpack.c.b16 %v399, %v395
    %v520 = vpack.c.b16 %v400, %v396
    %v521 = vpack.c.b16 %v405, %v401
    %v522 = vpack.c.b16 %v406, %v402
    %v523 = vpack.c.b16 %v407, %v403
    %v524 = vpack.c.b16 %v408, %v404
    %v525 = vpack.c.b16 %v413, %v409
    %v526 = vpack.c.b16 %v414, %v410
    %v527 = vpack.c.b16 %v415, %v411
    %v528 = vpack.c.b16 %v416, %v412
    %v529 = vpack.c.b16 %v421, %v417
    %v530 = vpack.c.b16 %v422, %v418
    %v531 = vpack.c.b16 %v423, %v419
    %v532 = vpack.c.b16 %v424, %v420
    %v533 = vpack.c.b16 %v429, %v425
    %v534 = vpack.c.b16 %v430, %v426
    %v535 = vpack.c.b16 %v431, %v427
    %v536 = vpack.c.b16 %v432, %v428
    %v537 = vpack.c.b16 %v437, %v433
    %v538 = vpack.c.b16 %v438, %v434
    %v539 = vpack.c.b16 %v439, %v435
    %v540 = vpack.c.b16 %v440, %v436
    %v541 = vpack.c.b16 %v445, %v441
    %v542 = vpack.c.b16 %v446, %v442
    %v543 = vpack.c.b16 %v447, %v443
    %v544 = vpack.c.b16 %v448, %v444
    %v545 = vpack.c.b16 %v453, %v449
    %v546 = vpack.c.b16 %v454, %v450
    %v547 = vpack.c.b16 %v455, %v451
    %v548 = vpack.c.b16 %v456, %v452
    %v549 = vpack.c.b16 %v461, %v457
    %v550 = vpack.c.b16 %v462, %v458
    %v551 = vpack.c.b16 %v463, %v459
    %v552 = vpack.c.b16 %v464, %v460
    %v553 = vpack.c.b16 %v469, %v465
    %v554 = vpack.c.b16 %v470, %v466
    %v555 = vpack.c.b16 %v471, %v467
    %v556 = vpack.c.b16 %v472, %v468
    %v557 = vpack.c.b16 %v477, %v473
    %v558 = vpack.c.b16 %v478, %v474
    %v559 = vpack.c.b16 %v479, %v475
    %v560 = vpack.c.b16 %v480, %v476
    %v561 = vpack.c.b16 %v485, %v481
    %v562 = vpack.c.b16 %v486, %v482
    %v563 = vpack.c.b16 %v487, %v483
    %v564 = vpack.c.b16 %v488, %v484
    %v565 = vpack.c.b16 %v493, %v489
    %v566 = vpack.c.b16 %v494, %v490
    %v567 = vpack.c.b16 %v495, %v491
    %v568 = vpack.c.b16 %v496, %v492
    %v569 = vpack.c.b16 %v501, %v497
    %v570 = vpack.c.b16 %v502, %v498
    %v571 = vpack.c.b16 %v503, %v499
    %v572 = vpack.c.b16 %v504, %v500
    %v573 = vpack.c.b16 %v509, %v505
    %v574 = vpack.c.b16 %v510, %v506
    %v575 = vpack.c.b16 %v511, %v507
    %v576 = vpack.c.b16 %v512, %v508
    %641 = vmatprep.subr.bf16.mxu0 %v514
    %642 = vmatpush1.bf16.msra.mxu0 %v513
    %643 = vmatprep.subr.bf16.mxu0 %v518
    %644 = vmatpush1.bf16.msra.mxu0 %v517
    %645 = vmatprep.subr.bf16.mxu0 %v522
    %646 = vmatpush1.bf16.msra.mxu0 %v521
    %647 = vmatprep.subr.bf16.mxu0 %v526
    %648 = vmatpush1.bf16.msra.mxu0 %v525
    %649 = vmatprep.subr.bf16.mxu0 %v530
    %650 = vmatpush1.bf16.msra.mxu0 %v529
    %651 = vmatprep.subr.bf16.mxu0 %v534
    %652 = vmatpush1.bf16.msra.mxu0 %v533
    %653 = vmatprep.subr.bf16.mxu0 %v538
    %654 = vmatpush1.bf16.msra.mxu0 %v537
    %655 = vmatprep.subr.bf16.mxu0 %v542
    %656 = vmatpush1.bf16.msra.mxu0 %v541
    %657 = vmatprep.subr.bf16.mxu0 %v546
    %658 = vmatpush1.bf16.msra.mxu0 %v545
    %659 = vmatprep.subr.bf16.mxu0 %v550
    %660 = vmatpush1.bf16.msra.mxu0 %v549
    %661 = vmatprep.subr.bf16.mxu0 %v554
    %662 = vmatpush1.bf16.msra.mxu0 %v553
    %663 = vmatprep.subr.bf16.mxu0 %v558
    %664 = vmatpush1.bf16.msra.mxu0 %v557
    %665 = vmatprep.subr.bf16.mxu0 %v562
    %666 = vmatpush1.bf16.msra.mxu0 %v561
    %667 = vmatprep.subr.bf16.mxu0 %v566
    %668 = vmatpush1.bf16.msra.mxu0 %v565
    %669 = vmatprep.subr.bf16.mxu0 %v570
    %670 = vmatpush1.bf16.msra.mxu0 %v569
    %671 = vmatprep.subr.bf16.mxu0 %v574
    %672 = vmatpush1.bf16.msra.mxu0 %v573
    %673 = vmatprep.mubr.bf16.mxu0 %v270
    %674 = vmatmul.mubr.bf16.gmra.mrb[0].mxu0 %v269
    %v675 = vpop.f32.mrb[0].mxu0
    %v676 = vadd.f32 %v177, %v675
    %v677 = vpop.f32.mrb[0].mxu0
    %v678 = vadd.f32 %v181, %v677
    %v679 = vpop.f32.mrb[0].mxu0
    %v680 = vadd.f32 %v177, %v679
    %v681 = vpop.f32.mrb[0].mxu0
    %v682 = vadd.f32 %v181, %v681
    %683 = vmatprep.mubr.bf16.mxu0 %v272
    %684 = vmatmul.mubr.bf16.gmra.mrb[0].mxu0 %v271
    %v685 = vpop.f32.mrb[0].mxu0
    %v686 = vadd.f32 %v177, %v685
    %v687 = vpop.f32.mrb[0].mxu0
    %v688 = vadd.f32 %v181, %v687
    %v689 = vpop.f32.mrb[0].mxu0
    %v690 = vadd.f32 %v177, %v689
    %v691 = vpop.f32.mrb[0].mxu0
    %v692 = vadd.f32 %v181, %v691
    %693 = vmatprep.mubr.bf16.mxu0 %v274
    %694 = vmatmul.mubr.bf16.gmra.mrb[0].mxu0 %v273
    %v695 = vpop.f32.mrb[0].mxu0
    %v696 = vadd.f32 %v177, %v695
    %v697 = vpop.f32.mrb[0].mxu0
    %v698 = vadd.f32 %v181, %v697
    %v699 = vpop.f32.mrb[0].mxu0
    %v700 = vadd.f32 %v177, %v699
    %v701 = vpop.f32.mrb[0].mxu0
    %v702 = vadd.f32 %v181, %v701
    %703 = vmatprep.mubr.bf16.mxu0 %v276
    %704 = vmatmul.mubr.bf16.gmra.mrb[0].mxu0 %v275
    %v705 = vpop.f32.mrb[0].mxu0
    %v706 = vadd.f32 %v177, %v705
    %v707 = vpop.f32.mrb[0].mxu0
    %v708 = vadd.f32 %v181, %v707
    %v709 = vpop.f32.mrb[0].mxu0
    %v710 = vadd.f32 %v177, %v709
    %v711 = vpop.f32.mrb[0].mxu0
    %v712 = vadd.f32 %v181, %v711
    %713 = vmatprep.mubr.bf16.mxu0 %v278
    %714 = vmatmul.mubr.bf16.gmra.mrb[0].mxu0 %v277
    %v715 = vpop.f32.mrb[0].mxu0
    %v716 = vadd.f32 %v177, %v715
    %v717 = vpop.f32.mrb[0].mxu0
    %v718 = vadd.f32 %v181, %v717
    %v719 = vpop.f32.mrb[0].mxu0
    %v720 = vadd.f32 %v177, %v719
    %v721 = vpop.f32.mrb[0].mxu0
    %v722 = vadd.f32 %v181, %v721
    %723 = vmatprep.mubr.bf16.mxu0 %v280
    %724 = vmatmul.mubr.bf16.gmra.mrb[0].mxu0 %v279
    %v725 = vpop.f32.mrb[0].mxu0
    %v726 = vadd.f32 %v177, %v725
    %v727 = vpop.f32.mrb[0].mxu0
    %v728 = vadd.f32 %v181, %v727
    %v729 = vpop.f32.mrb[0].mxu0
    %v730 = vadd.f32 %v177, %v729
    %v731 = vpop.f32.mrb[0].mxu0
    %v732 = vadd.f32 %v181, %v731
    %733 = vmatprep.mubr.bf16.mxu0 %v282
    %734 = vmatmul.mubr.bf16.gmra.mrb[0].mxu0 %v281
    %v735 = vpop.f32.mrb[0].mxu0
    %v736 = vadd.f32 %v177, %v735
    %v737 = vpop.f32.mrb[0].mxu0
    %v738 = vadd.f32 %v181, %v737
    %v739 = vpop.f32.mrb[0].mxu0
    %v740 = vadd.f32 %v177, %v739
    %v741 = vpop.f32.mrb[0].mxu0
    %v742 = vadd.f32 %v181, %v741
    %743 = vmatprep.mubr.bf16.mxu0 %v284
    %744 = vmatmul.mubr.bf16.gmra.mrb[0].mxu0 %v283
    %v745 = vpop.f32.mrb[0].mxu0
    %v746 = vadd.f32 %v177, %v745
    %v747 = vpop.f32.mrb[0].mxu0
    %v748 = vadd.f32 %v181, %v747
    %v749 = vpop.f32.mrb[0].mxu0
    %v750 = vadd.f32 %v177, %v749
    %v751 = vpop.f32.mrb[0].mxu0
    %v752 = vadd.f32 %v181, %v751
    %753 = vmatprep.mubr.bf16.mxu0 %v286
    %754 = vmatmul.mubr.bf16.gmra.mrb[0].mxu0 %v285
    %v755 = vpop.f32.mrb[0].mxu0
    %v756 = vadd.f32 %v177, %v755
    %v757 = vpop.f32.mrb[0].mxu0
    %v758 = vadd.f32 %v181, %v757
    %v759 = vpop.f32.mrb[0].mxu0
    %v760 = vadd.f32 %v177, %v759
    %v761 = vpop.f32.mrb[0].mxu0
    %v762 = vadd.f32 %v181, %v761
    %763 = vmatprep.mubr.bf16.mxu0 %v288
    %764 = vmatmul.mubr.bf16.gmra.mrb[0].mxu0 %v287
    %v765 = vpop.f32.mrb[0].mxu0
    %v766 = vadd.f32 %v177, %v765
    %v767 = vpop.f32.mrb[0].mxu0
    %v768 = vadd.f32 %v181, %v767
    %v769 = vpop.f32.mrb[0].mxu0
    %v770 = vadd.f32 %v177, %v769
    %v771 = vpop.f32.mrb[0].mxu0
    %v772 = vadd.f32 %v181, %v771
    %773 = vmatprep.mubr.bf16.mxu0 %v290
    %774 = vmatmul.mubr.bf16.gmra.mrb[0].mxu0 %v289
    %v775 = vpop.f32.mrb[0].mxu0
    %v776 = vadd.f32 %v177, %v775
    %v777 = vpop.f32.mrb[0].mxu0
    %v778 = vadd.f32 %v181, %v777
    %v779 = vpop.f32.mrb[0].mxu0
    %v780 = vadd.f32 %v177, %v779
    %v781 = vpop.f32.mrb[0].mxu0
    %v782 = vadd.f32 %v181, %v781
    %783 = vmatprep.mubr.bf16.mxu0 %v292
    %784 = vmatmul.mubr.bf16.gmra.mrb[0].mxu0 %v291
    %v785 = vpop.f32.mrb[0].mxu0
    %v786 = vadd.f32 %v177, %v785
    %v787 = vpop.f32.mrb[0].mxu0
    %v788 = vadd.f32 %v181, %v787
    %v789 = vpop.f32.mrb[0].mxu0
    %v790 = vadd.f32 %v177, %v789
    %v791 = vpop.f32.mrb[0].mxu0
    %v792 = vadd.f32 %v181, %v791
    %793 = vmatprep.mubr.bf16.mxu0 %v294
    %794 = vmatmul.mubr.bf16.gmra.mrb[0].mxu0 %v293
    %v795 = vpop.f32.mrb[0].mxu0
    %v796 = vadd.f32 %v177, %v795
    %v797 = vpop.f32.mrb[0].mxu0
    %v798 = vadd.f32 %v181, %v797
    %v799 = vpop.f32.mrb[0].mxu0
    %v800 = vpop.f32.mrb[0].mxu0
    %801 = vdwg.mxu0
    %802 = vmatprep.subr.bf16.mxu0 %v516
    %803 = vmatpush1.bf16.msra.mxu0 %v515
    %804 = vmatprep.subr.bf16.mxu0 %v520
    %805 = vmatpush1.bf16.msra.mxu0 %v519
    %806 = vmatprep.subr.bf16.mxu0 %v524
    %807 = vmatpush1.bf16.msra.mxu0 %v523
    %808 = vmatprep.subr.bf16.mxu0 %v528
    %809 = vmatpush1.bf16.msra.mxu0 %v527
    %810 = vmatprep.subr.bf16.mxu0 %v532
    %811 = vmatpush1.bf16.msra.mxu0 %v531
    %812 = vmatprep.subr.bf16.mxu0 %v536
    %813 = vmatpush1.bf16.msra.mxu0 %v535
    %814 = vmatprep.subr.bf16.mxu0 %v540
    %815 = vmatpush1.bf16.msra.mxu0 %v539
    %816 = vmatprep.subr.bf16.mxu0 %v544
    %817 = vmatpush1.bf16.msra.mxu0 %v543
    %818 = vmatprep.subr.bf16.mxu0 %v548
    %819 = vmatpush1.bf16.msra.mxu0 %v547
    %820 = vmatprep.subr.bf16.mxu0 %v552
    %821 = vmatpush1.bf16.msra.mxu0 %v551
    %822 = vmatprep.subr.bf16.mxu0 %v556
    %823 = vmatpush1.bf16.msra.mxu0 %v555
    %824 = vmatprep.subr.bf16.mxu0 %v560
    %825 = vmatpush1.bf16.msra.mxu0 %v559
    %826 = vmatprep.subr.bf16.mxu0 %v564
    %827 = vmatpush1.bf16.msra.mxu0 %v563
    %828 = vmatprep.subr.bf16.mxu0 %v568
    %829 = vmatpush1.bf16.msra.mxu0 %v567
    %830 = vmatprep.subr.bf16.mxu0 %v572
    %831 = vmatpush1.bf16.msra.mxu0 %v571
    %832 = vmatprep.subr.bf16.mxu0 %v576
    %833 = vmatpush1.bf16.msra.mxu0 %v575
    %834 = vmatprep.mubr.bf16.mxu0 %v270
    %835 = vmatmul.mubr.bf16.gmra.mrb[0].mxu0 %v269
    %v836 = vpop.f32.mrb[0].mxu0
    %v837 = vadd.f32 %v185, %v836
    %v838 = vpop.f32.mrb[0].mxu0
    %v839 = vadd.f32 %v189, %v838
    %v840 = vpop.f32.mrb[0].mxu0
    %v841 = vadd.f32 %v185, %v840
    %v842 = vpop.f32.mrb[0].mxu0
    %v843 = vadd.f32 %v189, %v842
    %844 = vmatprep.mubr.bf16.mxu0 %v272
    %845 = vmatmul.mubr.bf16.gmra.mrb[0].mxu0 %v271
    %v846 = vpop.f32.mrb[0].mxu0
    %v847 = vadd.f32 %v185, %v846
    %v848 = vpop.f32.mrb[0].mxu0
    %v849 = vadd.f32 %v189, %v848
    %v850 = vpop.f32.mrb[0].mxu0
    %v851 = vadd.f32 %v185, %v850
    %v852 = vpop.f32.mrb[0].mxu0
    %v853 = vadd.f32 %v189, %v852
    %854 = vmatprep.mubr.bf16.mxu0 %v274
    %855 = vmatmul.mubr.bf16.gmra.mrb[0].mxu0 %v273
    %v856 = vpop.f32.mrb[0].mxu0
    %v857 = vadd.f32 %v185, %v856
    %v858 = vpop.f32.mrb[0].mxu0
    %v859 = vadd.f32 %v189, %v858
    %v860 = vpop.f32.mrb[0].mxu0
    %v861 = vadd.f32 %v185, %v860
    %v862 = vpop.f32.mrb[0].mxu0
    %v863 = vadd.f32 %v189, %v862
    %864 = vmatprep.mubr.bf16.mxu0 %v276
    %865 = vmatmul.mubr.bf16.gmra.mrb[0].mxu0 %v275
    %v866 = vpop.f32.mrb[0].mxu0
    %v867 = vadd.f32 %v185, %v866
    %v868 = vpop.f32.mrb[0].mxu0
    %v869 = vadd.f32 %v189, %v868
    %v870 = vpop.f32.mrb[0].mxu0
    %v871 = vadd.f32 %v185, %v870
    %v872 = vpop.f32.mrb[0].mxu0
    %v873 = vadd.f32 %v189, %v872
    %874 = vmatprep.mubr.bf16.mxu0 %v278
    %875 = vmatmul.mubr.bf16.gmra.mrb[0].mxu0 %v277
    %v876 = vpop.f32.mrb[0].mxu0
    %v877 = vadd.f32 %v185, %v876
    %v878 = vpop.f32.mrb[0].mxu0
    %v879 = vadd.f32 %v189, %v878
    %v880 = vpop.f32.mrb[0].mxu0
    %v881 = vadd.f32 %v185, %v880
    %v882 = vpop.f32.mrb[0].mxu0
    %v883 = vadd.f32 %v189, %v882
    %884 = vmatprep.mubr.bf16.mxu0 %v280
    %885 = vmatmul.mubr.bf16.gmra.mrb[0].mxu0 %v279
    %v886 = vpop.f32.mrb[0].mxu0
    %v887 = vadd.f32 %v185, %v886
    %v888 = vpop.f32.mrb[0].mxu0
    %v889 = vadd.f32 %v189, %v888
    %v890 = vpop.f32.mrb[0].mxu0
    %v891 = vadd.f32 %v185, %v890
    %v892 = vpop.f32.mrb[0].mxu0
    %v893 = vadd.f32 %v189, %v892
    %894 = vmatprep.mubr.bf16.mxu0 %v282
    %895 = vmatmul.mubr.bf16.gmra.mrb[0].mxu0 %v281
    %v896 = vpop.f32.mrb[0].mxu0
    %v897 = vadd.f32 %v185, %v896
    %v898 = vpop.f32.mrb[0].mxu0
    %v899 = vadd.f32 %v189, %v898
    %v900 = vpop.f32.mrb[0].mxu0
    %v901 = vadd.f32 %v185, %v900
    %v902 = vpop.f32.mrb[0].mxu0
    %v903 = vadd.f32 %v189, %v902
    %904 = vmatprep.mubr.bf16.mxu0 %v284
    %905 = vmatmul.mubr.bf16.gmra.mrb[0].mxu0 %v283
    %v906 = vpop.f32.mrb[0].mxu0
    %v907 = vadd.f32 %v185, %v906
    %v908 = vpop.f32.mrb[0].mxu0
    %v909 = vadd.f32 %v189, %v908
    %v910 = vpop.f32.mrb[0].mxu0
    %v911 = vadd.f32 %v185, %v910
    %v912 = vpop.f32.mrb[0].mxu0
    %v913 = vadd.f32 %v189, %v912
    %914 = vmatprep.mubr.bf16.mxu0 %v286
    %915 = vmatmul.mubr.bf16.gmra.mrb[0].mxu0 %v285
    %v916 = vpop.f32.mrb[0].mxu0
    %v917 = vadd.f32 %v185, %v916
    %v918 = vpop.f32.mrb[0].mxu0
    %v919 = vadd.f32 %v189, %v918
    %v920 = vpop.f32.mrb[0].mxu0
    %v921 = vadd.f32 %v185, %v920
    %v922 = vpop.f32.mrb[0].mxu0
    %v923 = vadd.f32 %v189, %v922
    %924 = vmatprep.mubr.bf16.mxu0 %v288
    %925 = vmatmul.mubr.bf16.gmra.mrb[0].mxu0 %v287
    %v926 = vpop.f32.mrb[0].mxu0
    %v927 = vadd.f32 %v185, %v926
    %v928 = vpop.f32.mrb[0].mxu0
    %v929 = vadd.f32 %v189, %v928
    %v930 = vpop.f32.mrb[0].mxu0
    %v931 = vadd.f32 %v185, %v930
    %v932 = vpop.f32.mrb[0].mxu0
    %v933 = vadd.f32 %v189, %v932
    %934 = vmatprep.mubr.bf16.mxu0 %v290
    %935 = vmatmul.mubr.bf16.gmra.mrb[0].mxu0 %v289
    %v936 = vpop.f32.mrb[0].mxu0
    %v937 = vadd.f32 %v185, %v936
    %v938 = vpop.f32.mrb[0].mxu0
    %v939 = vadd.f32 %v189, %v938
    %v940 = vpop.f32.mrb[0].mxu0
    %v941 = vadd.f32 %v185, %v940
    %v942 = vpop.f32.mrb[0].mxu0
    %v943 = vadd.f32 %v189, %v942
    %944 = vmatprep.mubr.bf16.mxu0 %v292
    %945 = vmatmul.mubr.bf16.gmra.mrb[0].mxu0 %v291
    %v946 = vpop.f32.mrb[0].mxu0
    %v947 = vadd.f32 %v185, %v946
    %v948 = vpop.f32.mrb[0].mxu0
    %v949 = vadd.f32 %v189, %v948
    %v950 = vpop.f32.mrb[0].mxu0
    %v951 = vadd.f32 %v185, %v950
    %v952 = vpop.f32.mrb[0].mxu0
    %v953 = vadd.f32 %v189, %v952
    %954 = vmatprep.mubr.bf16.mxu0 %v294
    %955 = vmatmul.mubr.bf16.gmra.mrb[0].mxu0 %v293
    %v956 = vpop.f32.mrb[0].mxu0
    %v957 = vadd.f32 %v185, %v956
    %v958 = vpop.f32.mrb[0].mxu0
    %v959 = vadd.f32 %v189, %v958
    %v960 = vpop.f32.mrb[0].mxu0
    %v961 = vpop.f32.mrb[0].mxu0
    %962 = vdwg.mxu0
    %vm963 = vcmp.gt.f32.partialorder %v676, 0.0
    %vm964 = vcmp.gt.f32.partialorder %v678, 0.0
    %vm965 = vcmp.gt.f32.partialorder %v837, 0.0
    %vm966 = vcmp.gt.f32.partialorder %v839, 0.0
    %vm967 = vcmp.gt.f32.partialorder %v680, 0.0
    %vm968 = vcmp.gt.f32.partialorder %v682, 0.0
    %vm969 = vcmp.gt.f32.partialorder %v841, 0.0
    %vm970 = vcmp.gt.f32.partialorder %v843, 0.0
    %vm971 = vcmp.gt.f32.partialorder %v686, 0.0
    %vm972 = vcmp.gt.f32.partialorder %v688, 0.0
    %vm973 = vcmp.gt.f32.partialorder %v847, 0.0
    %vm974 = vcmp.gt.f32.partialorder %v849, 0.0
    %vm975 = vcmp.gt.f32.partialorder %v690, 0.0
    %vm976 = vcmp.gt.f32.partialorder %v692, 0.0
    %vm977 = vcmp.gt.f32.partialorder %v851, 0.0
    %vm978 = vcmp.gt.f32.partialorder %v853, 0.0
    %vm979 = vcmp.gt.f32.partialorder %v696, 0.0
    %vm980 = vcmp.gt.f32.partialorder %v698, 0.0
    %vm981 = vcmp.gt.f32.partialorder %v857, 0.0
    %vm982 = vcmp.gt.f32.partialorder %v859, 0.0
    %vm983 = vcmp.gt.f32.partialorder %v700, 0.0
    %vm984 = vcmp.gt.f32.partialorder %v702, 0.0
    %vm985 = vcmp.gt.f32.partialorder %v861, 0.0
    %vm986 = vcmp.gt.f32.partialorder %v863, 0.0
    %vm987 = vcmp.gt.f32.partialorder %v706, 0.0
    %vm988 = vcmp.gt.f32.partialorder %v708, 0.0
    %vm989 = vcmp.gt.f32.partialorder %v867, 0.0
    %vm990 = vcmp.gt.f32.partialorder %v869, 0.0
    %vm991 = vcmp.gt.f32.partialorder %v710, 0.0
    %vm992 = vcmp.gt.f32.partialorder %v712, 0.0
    %vm993 = vcmp.gt.f32.partialorder %v871, 0.0
    %vm994 = vcmp.gt.f32.partialorder %v873, 0.0
    %vm995 = vcmp.gt.f32.partialorder %v716, 0.0
    %vm996 = vcmp.gt.f32.partialorder %v718, 0.0
    %vm997 = vcmp.gt.f32.partialorder %v877, 0.0
    %vm998 = vcmp.gt.f32.partialorder %v879, 0.0
    %vm999 = vcmp.gt.f32.partialorder %v720, 0.0
    %vm1000 = vcmp.gt.f32.partialorder %v722, 0.0
    %vm1001 = vcmp.gt.f32.partialorder %v881, 0.0
    %vm1002 = vcmp.gt.f32.partialorder %v883, 0.0
    %vm1003 = vcmp.gt.f32.partialorder %v726, 0.0
    %vm1004 = vcmp.gt.f32.partialorder %v728, 0.0
    %vm1005 = vcmp.gt.f32.partialorder %v887, 0.0
    %vm1006 = vcmp.gt.f32.partialorder %v889, 0.0
    %vm1007 = vcmp.gt.f32.partialorder %v730, 0.0
    %vm1008 = vcmp.gt.f32.partialorder %v732, 0.0
    %vm1009 = vcmp.gt.f32.partialorder %v891, 0.0
    %vm1010 = vcmp.gt.f32.partialorder %v893, 0.0
    %vm1011 = vcmp.gt.f32.partialorder %v736, 0.0
    %vm1012 = vcmp.gt.f32.partialorder %v738, 0.0
    %vm1013 = vcmp.gt.f32.partialorder %v897, 0.0
    %vm1014 = vcmp.gt.f32.partialorder %v899, 0.0
    %vm1015 = vcmp.gt.f32.partialorder %v740, 0.0
    %vm1016 = vcmp.gt.f32.partialorder %v742, 0.0
    %vm1017 = vcmp.gt.f32.partialorder %v901, 0.0
    %vm1018 = vcmp.gt.f32.partialorder %v903, 0.0
    %vm1019 = vcmp.gt.f32.partialorder %v746, 0.0
    %vm1020 = vcmp.gt.f32.partialorder %v748, 0.0
    %vm1021 = vcmp.gt.f32.partialorder %v907, 0.0
    %vm1022 = vcmp.gt.f32.partialorder %v909, 0.0
    %vm1023 = vcmp.gt.f32.partialorder %v750, 0.0
    %vm1024 = vcmp.gt.f32.partialorder %v752, 0.0
    %vm1025 = vcmp.gt.f32.partialorder %v911, 0.0
    %vm1026 = vcmp.gt.f32.partialorder %v913, 0.0
    %vm1027 = vcmp.gt.f32.partialorder %v756, 0.0
    %vm1028 = vcmp.gt.f32.partialorder %v758, 0.0
    %vm1029 = vcmp.gt.f32.partialorder %v917, 0.0
    %vm1030 = vcmp.gt.f32.partialorder %v919, 0.0
    %vm1031 = vcmp.gt.f32.partialorder %v760, 0.0
    %vm1032 = vcmp.gt.f32.partialorder %v762, 0.0
    %vm1033 = vcmp.gt.f32.partialorder %v921, 0.0
    %vm1034 = vcmp.gt.f32.partialorder %v923, 0.0
    %vm1035 = vcmp.gt.f32.partialorder %v766, 0.0
    %vm1036 = vcmp.gt.f32.partialorder %v768, 0.0
    %vm1037 = vcmp.gt.f32.partialorder %v927, 0.0
    %vm1038 = vcmp.gt.f32.partialorder %v929, 0.0
    %vm1039 = vcmp.gt.f32.partialorder %v770, 0.0
    %vm1040 = vcmp.gt.f32.partialorder %v772, 0.0
    %vm1041 = vcmp.gt.f32.partialorder %v931, 0.0
    %vm1042 = vcmp.gt.f32.partialorder %v933, 0.0
    %vm1043 = vcmp.gt.f32.partialorder %v776, 0.0
    %vm1044 = vcmp.gt.f32.partialorder %v778, 0.0
    %vm1045 = vcmp.gt.f32.partialorder %v937, 0.0
    %vm1046 = vcmp.gt.f32.partialorder %v939, 0.0
    %vm1047 = vcmp.gt.f32.partialorder %v780, 0.0
    %vm1048 = vcmp.gt.f32.partialorder %v782, 0.0
    %vm1049 = vcmp.gt.f32.partialorder %v941, 0.0
    %vm1050 = vcmp.gt.f32.partialorder %v943, 0.0
    %vm1051 = vcmp.gt.f32.partialorder %v786, 0.0
    %vm1052 = vcmp.gt.f32.partialorder %v788, 0.0
    %vm1053 = vcmp.gt.f32.partialorder %v947, 0.0
    %vm1054 = vcmp.gt.f32.partialorder %v949, 0.0
    %vm1055 = vcmp.gt.f32.partialorder %v790, 0.0
    %vm1056 = vcmp.gt.f32.partialorder %v792, 0.0
    %vm1057 = vcmp.gt.f32.partialorder %v951, 0.0
    %vm1058 = vcmp.gt.f32.partialorder %v953, 0.0
    %vm1059 = vcmp.gt.f32.partialorder %v796, 0.0
    %vm1060 = vcmp.gt.f32.partialorder %v798, 0.0
    %vm1061 = vcmp.gt.f32.partialorder %v957, 0.0
    %vm1062 = vcmp.gt.f32.partialorder %v959, 0.0
    %v1063 = vmul.f32 %v676, 0.2
    %v1064 = vmul.f32 %v678, 0.2
    %v1065 = vmul.f32 %v837, 0.2
    %v1066 = vmul.f32 %v839, 0.2
    %v1067 = vmul.f32 %v680, 0.2
    %v1068 = vmul.f32 %v682, 0.2
    %v1069 = vmul.f32 %v841, 0.2
    %v1070 = vmul.f32 %v843, 0.2
    %v1071 = vmul.f32 %v686, 0.2
    %v1072 = vmul.f32 %v688, 0.2
    %v1073 = vmul.f32 %v847, 0.2
    %v1074 = vmul.f32 %v849, 0.2
    %v1075 = vmul.f32 %v690, 0.2
    %v1076 = vmul.f32 %v692, 0.2
    %v1077 = vmul.f32 %v851, 0.2
    %v1078 = vmul.f32 %v853, 0.2
    %v1079 = vmul.f32 %v696, 0.2
    %v1080 = vmul.f32 %v698, 0.2
    %v1081 = vmul.f32 %v857, 0.2
    %v1082 = vmul.f32 %v859, 0.2
    %v1083 = vmul.f32 %v700, 0.2
    %v1084 = vmul.f32 %v702, 0.2
    %v1085 = vmul.f32 %v861, 0.2
    %v1086 = vmul.f32 %v863, 0.2
    %v1087 = vmul.f32 %v706, 0.2
    %v1088 = vmul.f32 %v708, 0.2
    %v1089 = vmul.f32 %v867, 0.2
    %v1090 = vmul.f32 %v869, 0.2
    %v1091 = vmul.f32 %v710, 0.2
    %v1092 = vmul.f32 %v712, 0.2
    %v1093 = vmul.f32 %v871, 0.2
    %v1094 = vmul.f32 %v873, 0.2
    %v1095 = vmul.f32 %v716, 0.2
    %v1096 = vmul.f32 %v718, 0.2
    %v1097 = vmul.f32 %v877, 0.2
    %v1098 = vmul.f32 %v879, 0.2
    %v1099 = vmul.f32 %v720, 0.2
    %v1100 = vmul.f32 %v722, 0.2
    %v1101 = vmul.f32 %v881, 0.2
    %v1102 = vmul.f32 %v883, 0.2
    %v1103 = vmul.f32 %v726, 0.2
    %v1104 = vmul.f32 %v728, 0.2
    %v1105 = vmul.f32 %v887, 0.2
    %v1106 = vmul.f32 %v889, 0.2
    %v1107 = vmul.f32 %v730, 0.2
    %v1108 = vmul.f32 %v732, 0.2
    %v1109 = vmul.f32 %v891, 0.2
    %v1110 = vmul.f32 %v893, 0.2
    %v1111 = vmul.f32 %v736, 0.2
    %v1112 = vmul.f32 %v738, 0.2
    %v1113 = vmul.f32 %v897, 0.2
    %v1114 = vmul.f32 %v899, 0.2
    %v1115 = vmul.f32 %v740, 0.2
    %v1116 = vmul.f32 %v742, 0.2
    %v1117 = vmul.f32 %v901, 0.2
    %v1118 = vmul.f32 %v903, 0.2
    %v1119 = vmul.f32 %v746, 0.2
    %v1120 = vmul.f32 %v748, 0.2
    %v1121 = vmul.f32 %v907, 0.2
    %v1122 = vmul.f32 %v909, 0.2
    %v1123 = vmul.f32 %v750, 0.2
    %v1124 = vmul.f32 %v752, 0.2
    %v1125 = vmul.f32 %v911, 0.2
    %v1126 = vmul.f32 %v913, 0.2
    %v1127 = vmul.f32 %v756, 0.2
    %v1128 = vmul.f32 %v758, 0.2
    %v1129 = vmul.f32 %v917, 0.2
    %v1130 = vmul.f32 %v919, 0.2
    %v1131 = vmul.f32 %v760, 0.2
    %v1132 = vmul.f32 %v762, 0.2
    %v1133 = vmul.f32 %v921, 0.2
    %v1134 = vmul.f32 %v923, 0.2
    %v1135 = vmul.f32 %v766, 0.2
    %v1136 = vmul.f32 %v768, 0.2
    %v1137 = vmul.f32 %v927, 0.2
    %v1138 = vmul.f32 %v929, 0.2
    %v1139 = vmul.f32 %v770, 0.2
    %v1140 = vmul.f32 %v772, 0.2
    %v1141 = vmul.f32 %v931, 0.2
    %v1142 = vmul.f32 %v933, 0.2
    %v1143 = vmul.f32 %v776, 0.2
    %v1144 = vmul.f32 %v778, 0.2
    %v1145 = vmul.f32 %v937, 0.2
    %v1146 = vmul.f32 %v939, 0.2
    %v1147 = vmul.f32 %v780, 0.2
    %v1148 = vmul.f32 %v782, 0.2
    %v1149 = vmul.f32 %v941, 0.2
    %v1150 = vmul.f32 %v943, 0.2
    %v1151 = vmul.f32 %v786, 0.2
    %v1152 = vmul.f32 %v788, 0.2
    %v1153 = vmul.f32 %v947, 0.2
    %v1154 = vmul.f32 %v949, 0.2
    %v1155 = vmul.f32 %v790, 0.2
    %v1156 = vmul.f32 %v792, 0.2
    %v1157 = vmul.f32 %v951, 0.2
    %v1158 = vmul.f32 %v953, 0.2
    %v1159 = vmul.f32 %v796, 0.2
    %v1160 = vmul.f32 %v798, 0.2
    %v1161 = vmul.f32 %v957, 0.2
    %v1162 = vmul.f32 %v959, 0.2
    %v1163 = vsel %vm963, %v676, %v1063
    %v1164 = vsel %vm964, %v678, %v1064
    %v1165 = vsel %vm965, %v837, %v1065
    %v1166 = vsel %vm966, %v839, %v1066
    %v1167 = vsel %vm967, %v680, %v1067
    %v1168 = vsel %vm968, %v682, %v1068
    %v1169 = vsel %vm969, %v841, %v1069
    %v1170 = vsel %vm970, %v843, %v1070
    %v1171 = vsel %vm971, %v686, %v1071
    %v1172 = vsel %vm972, %v688, %v1072
    %v1173 = vsel %vm973, %v847, %v1073
    %v1174 = vsel %vm974, %v849, %v1074
    %v1175 = vsel %vm975, %v690, %v1075
    %v1176 = vsel %vm976, %v692, %v1076
    %v1177 = vsel %vm977, %v851, %v1077
    %v1178 = vsel %vm978, %v853, %v1078
    %v1179 = vsel %vm979, %v696, %v1079
    %v1180 = vsel %vm980, %v698, %v1080
    %v1181 = vsel %vm981, %v857, %v1081
    %v1182 = vsel %vm982, %v859, %v1082
    %v1183 = vsel %vm983, %v700, %v1083
    %v1184 = vsel %vm984, %v702, %v1084
    %v1185 = vsel %vm985, %v861, %v1085
    %v1186 = vsel %vm986, %v863, %v1086
    %v1187 = vsel %vm987, %v706, %v1087
    %v1188 = vsel %vm988, %v708, %v1088
    %v1189 = vsel %vm989, %v867, %v1089
    %v1190 = vsel %vm990, %v869, %v1090
    %v1191 = vsel %vm991, %v710, %v1091
    %v1192 = vsel %vm992, %v712, %v1092
    %v1193 = vsel %vm993, %v871, %v1093
    %v1194 = vsel %vm994, %v873, %v1094
    %v1195 = vsel %vm995, %v716, %v1095
    %v1196 = vsel %vm996, %v718, %v1096
    %v1197 = vsel %vm997, %v877, %v1097
    %v1198 = vsel %vm998, %v879, %v1098
    %v1199 = vsel %vm999, %v720, %v1099
    %v1200 = vsel %vm1000, %v722, %v1100
    %v1201 = vsel %vm1001, %v881, %v1101
    %v1202 = vsel %vm1002, %v883, %v1102
    %v1203 = vsel %vm1003, %v726, %v1103
    %v1204 = vsel %vm1004, %v728, %v1104
    %v1205 = vsel %vm1005, %v887, %v1105
    %v1206 = vsel %vm1006, %v889, %v1106
    %v1207 = vsel %vm1007, %v730, %v1107
    %v1208 = vsel %vm1008, %v732, %v1108
    %v1209 = vsel %vm1009, %v891, %v1109
    %v1210 = vsel %vm1010, %v893, %v1110
    %v1211 = vsel %vm1011, %v736, %v1111
    %v1212 = vsel %vm1012, %v738, %v1112
    %v1213 = vsel %vm1013, %v897, %v1113
    %v1214 = vsel %vm1014, %v899, %v1114
    %v1215 = vsel %vm1015, %v740, %v1115
    %v1216 = vsel %vm1016, %v742, %v1116
    %v1217 = vsel %vm1017, %v901, %v1117
    %v1218 = vsel %vm1018, %v903, %v1118
    %v1219 = vsel %vm1019, %v746, %v1119
    %v1220 = vsel %vm1020, %v748, %v1120
    %v1221 = vsel %vm1021, %v907, %v1121
    %v1222 = vsel %vm1022, %v909, %v1122
    %v1223 = vsel %vm1023, %v750, %v1123
    %v1224 = vsel %vm1024, %v752, %v1124
    %v1225 = vsel %vm1025, %v911, %v1125
    %v1226 = vsel %vm1026, %v913, %v1126
    %v1227 = vsel %vm1027, %v756, %v1127
    %v1228 = vsel %vm1028, %v758, %v1128
    %v1229 = vsel %vm1029, %v917, %v1129
    %v1230 = vsel %vm1030, %v919, %v1130
    %v1231 = vsel %vm1031, %v760, %v1131
    %v1232 = vsel %vm1032, %v762, %v1132
    %v1233 = vsel %vm1033, %v921, %v1133
    %v1234 = vsel %vm1034, %v923, %v1134
    %v1235 = vsel %vm1035, %v766, %v1135
    %v1236 = vsel %vm1036, %v768, %v1136
    %v1237 = vsel %vm1037, %v927, %v1137
    %v1238 = vsel %vm1038, %v929, %v1138
    %v1239 = vsel %vm1039, %v770, %v1139
    %v1240 = vsel %vm1040, %v772, %v1140
    %v1241 = vsel %vm1041, %v931, %v1141
    %v1242 = vsel %vm1042, %v933, %v1142
    %v1243 = vsel %vm1043, %v776, %v1143
    %v1244 = vsel %vm1044, %v778, %v1144
    %v1245 = vsel %vm1045, %v937, %v1145
    %v1246 = vsel %vm1046, %v939, %v1146
    %v1247 = vsel %vm1047, %v780, %v1147
    %v1248 = vsel %vm1048, %v782, %v1148
    %v1249 = vsel %vm1049, %v941, %v1149
    %v1250 = vsel %vm1050, %v943, %v1150
    %v1251 = vsel %vm1051, %v786, %v1151
    %v1252 = vsel %vm1052, %v788, %v1152
    %v1253 = vsel %vm1053, %v947, %v1153
    %v1254 = vsel %vm1054, %v949, %v1154
    %v1255 = vsel %vm1055, %v790, %v1155
    %v1256 = vsel %vm1056, %v792, %v1156
    %v1257 = vsel %vm1057, %v951, %v1157
    %v1258 = vsel %vm1058, %v953, %v1158
    %v1259 = vsel %vm1059, %v796, %v1159
    %v1260 = vsel %vm1060, %v798, %v1160
    %v1261 = vsel %vm1061, %v957, %v1161
    %v1262 = vsel %vm1062, %v959, %v1162
    %v1263 = vpack.c.bf16 %v1167, %v1163
    %v1264 = vpack.c.bf16 %v1168, %v1164
    %v1265 = vpack.c.bf16 %v1169, %v1165
    %v1266 = vpack.c.bf16 %v1170, %v1166
    %v1267 = vpack.c.bf16 %v1175, %v1171
    %v1268 = vpack.c.bf16 %v1176, %v1172
    %v1269 = vpack.c.bf16 %v1177, %v1173
    %v1270 = vpack.c.bf16 %v1178, %v1174
    %v1271 = vpack.c.bf16 %v1183, %v1179
    %v1272 = vpack.c.bf16 %v1184, %v1180
    %v1273 = vpack.c.bf16 %v1185, %v1181
    %v1274 = vpack.c.bf16 %v1186, %v1182
    %v1275 = vpack.c.bf16 %v1191, %v1187
    %v1276 = vpack.c.bf16 %v1192, %v1188
    %v1277 = vpack.c.bf16 %v1193, %v1189
    %v1278 = vpack.c.bf16 %v1194, %v1190
    %v1279 = vpack.c.bf16 %v1199, %v1195
    %v1280 = vpack.c.bf16 %v1200, %v1196
    %v1281 = vpack.c.bf16 %v1201, %v1197
    %v1282 = vpack.c.bf16 %v1202, %v1198
    %v1283 = vpack.c.bf16 %v1207, %v1203
    %v1284 = vpack.c.bf16 %v1208, %v1204
    %v1285 = vpack.c.bf16 %v1209, %v1205
    %v1286 = vpack.c.bf16 %v1210, %v1206
    %v1287 = vpack.c.bf16 %v1215, %v1211
    %v1288 = vpack.c.bf16 %v1216, %v1212
    %v1289 = vpack.c.bf16 %v1217, %v1213
    %v1290 = vpack.c.bf16 %v1218, %v1214
    %v1291 = vpack.c.bf16 %v1223, %v1219
    %v1292 = vpack.c.bf16 %v1224, %v1220
    %v1293 = vpack.c.bf16 %v1225, %v1221
    %v1294 = vpack.c.bf16 %v1226, %v1222
    %v1295 = vpack.c.bf16 %v1231, %v1227
    %v1296 = vpack.c.bf16 %v1232, %v1228
    %v1297 = vpack.c.bf16 %v1233, %v1229
    %v1298 = vpack.c.bf16 %v1234, %v1230
    %v1299 = vpack.c.bf16 %v1239, %v1235
    %v1300 = vpack.c.bf16 %v1240, %v1236
    %v1301 = vpack.c.bf16 %v1241, %v1237
    %v1302 = vpack.c.bf16 %v1242, %v1238
    %v1303 = vpack.c.bf16 %v1247, %v1243
    %v1304 = vpack.c.bf16 %v1248, %v1244
    %v1305 = vpack.c.bf16 %v1249, %v1245
    %v1306 = vpack.c.bf16 %v1250, %v1246
    %v1307 = vpack.c.bf16 %v1255, %v1251
    %v1308 = vpack.c.bf16 %v1256, %v1252
    %v1309 = vpack.c.bf16 %v1257, %v1253
    %v1310 = vpack.c.bf16 %v1258, %v1254
    %v1311 = vpack.c.bf16 %v1259, %v1259
    %v1312 = vpack.c.bf16 %v1260, %v1260
    %v1313 = vpack.c.bf16 %v1261, %v1261
    %v1314 = vpack.c.bf16 %v1262, %v1262
    %v1315 = vld [vmem:[#allocation7] sm:$0xff]
    %v1316 = vld [vmem:[#allocation7 + $0x8] sm:$0xff]
    %v1317 = vld [vmem:[#allocation7 + $0x10] sm:$0xff]
    %v1318 = vld [vmem:[#allocation7 + $0x18] sm:$0xff]
    %v1319 = vld [vmem:[#allocation7 + $0x20] sm:$0xff]
    %v1320 = vld [vmem:[#allocation7 + $0x28] sm:$0xff]
    %v1321 = vld [vmem:[#allocation7 + $0x30] sm:$0xff]
    %v1322 = vld [vmem:[#allocation7 + $0x38] sm:$0xff]
    %v1323 = vld [vmem:[#allocation7 + $0x40] sm:$0xff]
    %v1324 = vld [vmem:[#allocation7 + $0x48] sm:$0xff]
    %v1325 = vld [vmem:[#allocation7 + $0x50] sm:$0xff]
    %v1326 = vld [vmem:[#allocation7 + $0x58] sm:$0xff]
    %v1327 = vld [vmem:[#allocation7 + $0x60] sm:$0xff]
    %v1328 = vld [vmem:[#allocation7 + $0x68] sm:$0xff]
    %v1329 = vld [vmem:[#allocation7 + $0x70] sm:$0xff]
    %v1330 = vld [vmem:[#allocation7 + $0x78] sm:$0xff]
    %v1331 = vld [vmem:[#allocation7 + $0x80] sm:$0xff]
    %v1332 = vld [vmem:[#allocation7 + $0x88] sm:$0xff]
    %v1333 = vld [vmem:[#allocation7 + $0x90] sm:$0xff]
    %v1334 = vld [vmem:[#allocation7 + $0x98] sm:$0xff]
    %v1335 = vld [vmem:[#allocation7 + $0xa0] sm:$0xff]
    %v1336 = vld [vmem:[#allocation7 + $0xa8] sm:$0xff]
    %v1337 = vld [vmem:[#allocation7 + $0xb0] sm:$0xff]
    %v1338 = vld [vmem:[#allocation7 + $0xb8] sm:$0xff]
    %v1339 = vld [vmem:[#allocation7 + $0xc0] sm:$0xff]
    %v1340 = vld [vmem:[#allocation7 + $0xc8] sm:$0xff]
    %v1341 = vld [vmem:[#allocation7 + $0xd0] sm:$0xff]
    %v1342 = vld [vmem:[#allocation7 + $0xd8] sm:$0xff]
    %v1343 = vld [vmem:[#allocation7 + $0xe0] sm:$0xff]
    %v1344 = vld [vmem:[#allocation7 + $0xe8] sm:$0xff]
    %v1345 = vld [vmem:[#allocation7 + $0xf0] sm:$0xff]
    %v1346 = vld [vmem:[#allocation7 + $0xf8] sm:$0xff]
    %v1347 = vld [vmem:[#allocation7 + $0x100] sm:$0xff]
    %v1348 = vld [vmem:[#allocation7 + $0x108] sm:$0xff]
    %v1349 = vld [vmem:[#allocation7 + $0x110] sm:$0xff]
    %v1350 = vld [vmem:[#allocation7 + $0x118] sm:$0xff]
    %v1351 = vld [vmem:[#allocation7 + $0x120] sm:$0xff]
    %v1352 = vld [vmem:[#allocation7 + $0x128] sm:$0xff]
    %v1353 = vld [vmem:[#allocation7 + $0x130] sm:$0xff]
    %v1354 = vld [vmem:[#allocation7 + $0x138] sm:$0xff]
    %v1355 = vld [vmem:[#allocation7 + $0x140] sm:$0xff]
    %v1356 = vld [vmem:[#allocation7 + $0x148] sm:$0xff]
    %v1357 = vld [vmem:[#allocation7 + $0x150] sm:$0xff]
    %v1358 = vld [vmem:[#allocation7 + $0x158] sm:$0xff]
    %v1359 = vld [vmem:[#allocation7 + $0x160] sm:$0xff]
    %v1360 = vld [vmem:[#allocation7 + $0x168] sm:$0xff]
    %v1361 = vld [vmem:[#allocation7 + $0x170] sm:$0xff]
    %v1362 = vld [vmem:[#allocation7 + $0x178] sm:$0xff]
    %v1363 = vld [vmem:[#allocation7 + $0x180] sm:$0xff]
    %v1364 = vld [vmem:[#allocation7 + $0x188] sm:$0xff]
    %v1365 = vld [vmem:[#allocation7 + $0x190] sm:$0xff]
    %v1366 = vld [vmem:[#allocation7 + $0x198] sm:$0xff]
    %v1367 = vld [vmem:[#allocation7 + $0x1a0] sm:$0xff]
    %v1368 = vld [vmem:[#allocation7 + $0x1a8] sm:$0xff]
    %v1369 = vld [vmem:[#allocation7 + $0x1b0] sm:$0xff]
    %v1370 = vld [vmem:[#allocation7 + $0x1b8] sm:$0xff]
    %v1371 = vld [vmem:[#allocation7 + $0x1c0] sm:$0xff]
    %v1372 = vld [vmem:[#allocation7 + $0x1c8] sm:$0xff]
    %v1373 = vld [vmem:[#allocation7 + $0x1d0] sm:$0xff]
    %v1374 = vld [vmem:[#allocation7 + $0x1d8] sm:$0xff]
    %v1375 = vld [vmem:[#allocation7 + $0x1e0] sm:$0xff]
    %v1376 = vld [vmem:[#allocation7 + $0x1e8] sm:$0xff]
    %v1377 = vld [vmem:[#allocation7 + $0x1f0] sm:$0xff]
    %v1378 = vld [vmem:[#allocation7 + $0x1f8] sm:$0xff]
    %v1379 = vld [vmem:[#allocation7 + $0x200] sm:$0xff]
    %v1380 = vld [vmem:[#allocation7 + $0x208] sm:$0xff]
    %v1381 = vld [vmem:[#allocation7 + $0x210] sm:$0xff]
    %v1382 = vld [vmem:[#allocation7 + $0x218] sm:$0xff]
    %v1383 = vld [vmem:[#allocation7 + $0x220] sm:$0xff]
    %v1384 = vld [vmem:[#allocation7 + $0x228] sm:$0xff]
    %v1385 = vld [vmem:[#allocation7 + $0x230] sm:$0xff]
    %v1386 = vld [vmem:[#allocation7 + $0x238] sm:$0xff]
    %v1387 = vld [vmem:[#allocation7 + $0x240] sm:$0xff]
    %v1388 = vld [vmem:[#allocation7 + $0x248] sm:$0xff]
    %v1389 = vld [vmem:[#allocation7 + $0x250] sm:$0xff]
    %v1390 = vld [vmem:[#allocation7 + $0x258] sm:$0xff]
    %v1391 = vld [vmem:[#allocation7 + $0x260] sm:$0xff]
    %v1392 = vld [vmem:[#allocation7 + $0x268] sm:$0xff]
    %v1393 = vld [vmem:[#allocation7 + $0x270] sm:$0xff]
    %v1394 = vld [vmem:[#allocation7 + $0x278] sm:$0xff]
    %v1395 = vld [vmem:[#allocation7 + $0x280] sm:$0xff]
    %v1396 = vld [vmem:[#allocation7 + $0x288] sm:$0xff]
    %v1397 = vld [vmem:[#allocation7 + $0x290] sm:$0xff]
    %v1398 = vld [vmem:[#allocation7 + $0x298] sm:$0xff]
    %v1399 = vld [vmem:[#allocation7 + $0x2a0] sm:$0xff]
    %v1400 = vld [vmem:[#allocation7 + $0x2a8] sm:$0xff]
    %v1401 = vld [vmem:[#allocation7 + $0x2b0] sm:$0xff]
    %v1402 = vld [vmem:[#allocation7 + $0x2b8] sm:$0xff]
    %v1403 = vld [vmem:[#allocation7 + $0x2c0] sm:$0xff]
    %v1404 = vld [vmem:[#allocation7 + $0x2c8] sm:$0xff]
    %v1405 = vld [vmem:[#allocation7 + $0x2d0] sm:$0xff]
    %v1406 = vld [vmem:[#allocation7 + $0x2d8] sm:$0xff]
    %v1407 = vld [vmem:[#allocation7 + $0x2e0] sm:$0xff]
    %v1408 = vld [vmem:[#allocation7 + $0x2e8] sm:$0xff]
    %v1409 = vld [vmem:[#allocation7 + $0x2f0] sm:$0xff]
    %v1410 = vld [vmem:[#allocation7 + $0x2f8] sm:$0xff]
    %v1411 = vld [vmem:[#allocation7 + $0x300] sm:$0xff]
    %v1412 = vld [vmem:[#allocation7 + $0x308] sm:$0xff]
    %v1413 = vld [vmem:[#allocation7 + $0x310] sm:$0xff]
    %v1414 = vld [vmem:[#allocation7 + $0x318] sm:$0xff]
    %v1415 = vld [vmem:[#allocation7 + $0x320] sm:$0xff]
    %v1416 = vld [vmem:[#allocation7 + $0x328] sm:$0xff]
    %v1417 = vld [vmem:[#allocation7 + $0x330] sm:$0xff]
    %v1418 = vld [vmem:[#allocation7 + $0x338] sm:$0xff]
    %v1419 = vld [vmem:[#allocation7 + $0x340] sm:$0xff]
    %v1420 = vld [vmem:[#allocation7 + $0x348] sm:$0xff]
    %v1421 = vld [vmem:[#allocation7 + $0x350] sm:$0xff]
    %v1422 = vld [vmem:[#allocation7 + $0x358] sm:$0xff]
    %v1423 = vld [vmem:[#allocation7 + $0x360] sm:$0xff]
    %v1424 = vld [vmem:[#allocation7 + $0x368] sm:$0xff]
    %v1425 = vld [vmem:[#allocation7 + $0x370] sm:$0xff]
    %v1426 = vld [vmem:[#allocation7 + $0x378] sm:$0xff]
    %v1427 = vld [vmem:[#allocation7 + $0x380] sm:$0xff]
    %v1428 = vld [vmem:[#allocation7 + $0x388] sm:$0xff]
    %v1429 = vld [vmem:[#allocation7 + $0x390] sm:$0xff]
    %v1430 = vld [vmem:[#allocation7 + $0x398] sm:$0xff]
    %v1431 = vld [vmem:[#allocation7 + $0x3a0] sm:$0xff]
    %v1432 = vld [vmem:[#allocation7 + $0x3a8] sm:$0xff]
    %v1433 = vld [vmem:[#allocation7 + $0x3b0] sm:$0xff]
    %v1434 = vld [vmem:[#allocation7 + $0x3b8] sm:$0xff]
    %v1435 = vld [vmem:[#allocation7 + $0x3c0] sm:$0xff]
    %v1436 = vld [vmem:[#allocation7 + $0x3c8] sm:$0xff]
    %v1437 = vld [vmem:[#allocation7 + $0x3d0] sm:$0xff]
    %v1438 = vld [vmem:[#allocation7 + $0x3d8] sm:$0xff]
    %v1439 = vld [vmem:[#allocation7 + $0x3e0] sm:$0xff]
    %v1440 = vld [vmem:[#allocation7 + $0x3e8] sm:$0xff]
    %v1441 = vld [vmem:[#allocation7 + $0x3f0] sm:$0xff]
    %v1442 = vld [vmem:[#allocation7 + $0x3f8] sm:$0xff]
    %v1443 = vld [vmem:[%s4] sm:$0xf]
    %v1445 = vlaneseq
    %v1446 = vshrl.u32 %v1445, 7
    %v1447 = vsub.s32 0, %v1446
    %v1448 = vrot.slane %v1443, %v1447
    %v1449 = vlaneseq
    %v1450 = vshrl.u32 %v1449, 7
    %v1451 = vsub.s32 1, %v1450
    %v1452 = vrot.slane %v1443, %v1451
    %v1453 = vlaneseq
    %v1454 = vshrl.u32 %v1453, 7
    %v1455 = vsub.s32 2, %v1454
    %v1456 = vrot.slane %v1443, %v1455
    %v1457 = vlaneseq
    %v1458 = vshrl.u32 %v1457, 7
    %v1459 = vsub.s32 3, %v1458
    %v1460 = vrot.slane %v1443, %v1459
    %v1593 = vunpack.c.l.b16 %v1315
    %v1594 = vunpack.c.h.b16 %v1315
    %v1595 = vunpack.c.l.b16 %v1316
    %v1596 = vunpack.c.h.b16 %v1316
    %v1597 = vunpack.c.l.b16 %v1317
    %v1598 = vunpack.c.h.b16 %v1317
    %v1599 = vunpack.c.l.b16 %v1318
    %v1600 = vunpack.c.h.b16 %v1318
    %v1601 = vunpack.c.l.b16 %v1319
    %v1602 = vunpack.c.h.b16 %v1319
    %v1603 = vunpack.c.l.b16 %v1320
    %v1604 = vunpack.c.h.b16 %v1320
    %v1605 = vunpack.c.l.b16 %v1321
    %v1606 = vunpack.c.h.b16 %v1321
    %v1607 = vunpack.c.l.b16 %v1322
    %v1608 = vunpack.c.h.b16 %v1322
    %v1609 = vunpack.c.l.b16 %v1323
    %v1610 = vunpack.c.h.b16 %v1323
    %v1611 = vunpack.c.l.b16 %v1324
    %v1612 = vunpack.c.h.b16 %v1324
    %v1613 = vunpack.c.l.b16 %v1325
    %v1614 = vunpack.c.h.b16 %v1325
    %v1615 = vunpack.c.l.b16 %v1326
    %v1616 = vunpack.c.h.b16 %v1326
    %v1617 = vunpack.c.l.b16 %v1327
    %v1618 = vunpack.c.h.b16 %v1327
    %v1619 = vunpack.c.l.b16 %v1328
    %v1620 = vunpack.c.h.b16 %v1328
    %v1621 = vunpack.c.l.b16 %v1329
    %v1622 = vunpack.c.h.b16 %v1329
    %v1623 = vunpack.c.l.b16 %v1330
    %v1624 = vunpack.c.h.b16 %v1330
    %v1625 = vunpack.c.l.b16 %v1331
    %v1626 = vunpack.c.h.b16 %v1331
    %v1627 = vunpack.c.l.b16 %v1332
    %v1628 = vunpack.c.h.b16 %v1332
    %v1629 = vunpack.c.l.b16 %v1333
    %v1630 = vunpack.c.h.b16 %v1333
    %v1631 = vunpack.c.l.b16 %v1334
    %v1632 = vunpack.c.h.b16 %v1334
    %v1633 = vunpack.c.l.b16 %v1335
    %v1634 = vunpack.c.h.b16 %v1335
    %v1635 = vunpack.c.l.b16 %v1336
    %v1636 = vunpack.c.h.b16 %v1336
    %v1637 = vunpack.c.l.b16 %v1337
    %v1638 = vunpack.c.h.b16 %v1337
    %v1639 = vunpack.c.l.b16 %v1338
    %v1640 = vunpack.c.h.b16 %v1338
    %v1641 = vunpack.c.l.b16 %v1339
    %v1642 = vunpack.c.h.b16 %v1339
    %v1643 = vunpack.c.l.b16 %v1340
    %v1644 = vunpack.c.h.b16 %v1340
    %v1645 = vunpack.c.l.b16 %v1341
    %v1646 = vunpack.c.h.b16 %v1341
    %v1647 = vunpack.c.l.b16 %v1342
    %v1648 = vunpack.c.h.b16 %v1342
    %v1649 = vunpack.c.l.b16 %v1343
    %v1650 = vunpack.c.h.b16 %v1343
    %v1651 = vunpack.c.l.b16 %v1344
    %v1652 = vunpack.c.h.b16 %v1344
    %v1653 = vunpack.c.l.b16 %v1345
    %v1654 = vunpack.c.h.b16 %v1345
    %v1655 = vunpack.c.l.b16 %v1346
    %v1656 = vunpack.c.h.b16 %v1346
    %v1657 = vunpack.c.l.b16 %v1347
    %v1658 = vunpack.c.h.b16 %v1347
    %v1659 = vunpack.c.l.b16 %v1348
    %v1660 = vunpack.c.h.b16 %v1348
    %v1661 = vunpack.c.l.b16 %v1349
    %v1662 = vunpack.c.h.b16 %v1349
    %v1663 = vunpack.c.l.b16 %v1350
    %v1664 = vunpack.c.h.b16 %v1350
    %v1665 = vunpack.c.l.b16 %v1351
    %v1666 = vunpack.c.h.b16 %v1351
    %v1667 = vunpack.c.l.b16 %v1352
    %v1668 = vunpack.c.h.b16 %v1352
    %v1669 = vunpack.c.l.b16 %v1353
    %v1670 = vunpack.c.h.b16 %v1353
    %v1671 = vunpack.c.l.b16 %v1354
    %v1672 = vunpack.c.h.b16 %v1354
    %v1673 = vunpack.c.l.b16 %v1355
    %v1674 = vunpack.c.h.b16 %v1355
    %v1675 = vunpack.c.l.b16 %v1356
    %v1676 = vunpack.c.h.b16 %v1356
    %v1677 = vunpack.c.l.b16 %v1357
    %v1678 = vunpack.c.h.b16 %v1357
    %v1679 = vunpack.c.l.b16 %v1358
    %v1680 = vunpack.c.h.b16 %v1358
    %v1681 = vunpack.c.l.b16 %v1359
    %v1682 = vunpack.c.h.b16 %v1359
    %v1683 = vunpack.c.l.b16 %v1360
    %v1684 = vunpack.c.h.b16 %v1360
    %v1685 = vunpack.c.l.b16 %v1361
    %v1686 = vunpack.c.h.b16 %v1361
    %v1687 = vunpack.c.l.b16 %v1362
    %v1688 = vunpack.c.h.b16 %v1362
    %v1689 = vunpack.c.l.b16 %v1363
    %v1690 = vunpack.c.h.b16 %v1363
    %v1691 = vunpack.c.l.b16 %v1364
    %v1692 = vunpack.c.h.b16 %v1364
    %v1693 = vunpack.c.l.b16 %v1365
    %v1694 = vunpack.c.h.b16 %v1365
    %v1695 = vunpack.c.l.b16 %v1366
    %v1696 = vunpack.c.h.b16 %v1366
    %v1697 = vunpack.c.l.b16 %v1367
    %v1698 = vunpack.c.h.b16 %v1367
    %v1699 = vunpack.c.l.b16 %v1368
    %v1700 = vunpack.c.h.b16 %v1368
    %v1701 = vunpack.c.l.b16 %v1369
    %v1702 = vunpack.c.h.b16 %v1369
    %v1703 = vunpack.c.l.b16 %v1370
    %v1704 = vunpack.c.h.b16 %v1370
    %v1705 = vunpack.c.l.b16 %v1371
    %v1706 = vunpack.c.h.b16 %v1371
    %v1707 = vunpack.c.l.b16 %v1372
    %v1708 = vunpack.c.h.b16 %v1372
    %v1709 = vunpack.c.l.b16 %v1373
    %v1710 = vunpack.c.h.b16 %v1373
    %v1711 = vunpack.c.l.b16 %v1374
    %v1712 = vunpack.c.h.b16 %v1374
    %v1713 = vunpack.c.l.b16 %v1375
    %v1714 = vunpack.c.h.b16 %v1375
    %v1715 = vunpack.c.l.b16 %v1376
    %v1716 = vunpack.c.h.b16 %v1376
    %v1717 = vunpack.c.l.b16 %v1377
    %v1718 = vunpack.c.h.b16 %v1377
    %v1719 = vunpack.c.l.b16 %v1378
    %v1720 = vunpack.c.h.b16 %v1378
    %v1721 = vunpack.c.l.b16 %v1379
    %v1722 = vunpack.c.h.b16 %v1379
    %v1723 = vunpack.c.l.b16 %v1380
    %v1724 = vunpack.c.h.b16 %v1380
    %v1725 = vunpack.c.l.b16 %v1381
    %v1726 = vunpack.c.h.b16 %v1381
    %v1727 = vunpack.c.l.b16 %v1382
    %v1728 = vunpack.c.h.b16 %v1382
    %v1729 = vunpack.c.l.b16 %v1383
    %v1730 = vunpack.c.h.b16 %v1383
    %v1731 = vunpack.c.l.b16 %v1384
    %v1732 = vunpack.c.h.b16 %v1384
    %v1733 = vunpack.c.l.b16 %v1385
    %v1734 = vunpack.c.h.b16 %v1385
    %v1735 = vunpack.c.l.b16 %v1386
    %v1736 = vunpack.c.h.b16 %v1386
    %v1737 = vunpack.c.l.b16 %v1387
    %v1738 = vunpack.c.h.b16 %v1387
    %v1739 = vunpack.c.l.b16 %v1388
    %v1740 = vunpack.c.h.b16 %v1388
    %v1741 = vunpack.c.l.b16 %v1389
    %v1742 = vunpack.c.h.b16 %v1389
    %v1743 = vunpack.c.l.b16 %v1390
    %v1744 = vunpack.c.h.b16 %v1390
    %v1745 = vunpack.c.l.b16 %v1391
    %v1746 = vunpack.c.h.b16 %v1391
    %v1747 = vunpack.c.l.b16 %v1392
    %v1748 = vunpack.c.h.b16 %v1392
    %v1749 = vunpack.c.l.b16 %v1393
    %v1750 = vunpack.c.h.b16 %v1393
    %v1751 = vunpack.c.l.b16 %v1394
    %v1752 = vunpack.c.h.b16 %v1394
    %v1753 = vunpack.c.l.b16 %v1395
    %v1754 = vunpack.c.h.b16 %v1395
    %v1755 = vunpack.c.l.b16 %v1396
    %v1756 = vunpack.c.h.b16 %v1396
    %v1757 = vunpack.c.l.b16 %v1397
    %v1758 = vunpack.c.h.b16 %v1397
    %v1759 = vunpack.c.l.b16 %v1398
    %v1760 = vunpack.c.h.b16 %v1398
    %v1761 = vunpack.c.l.b16 %v1399
    %v1762 = vunpack.c.h.b16 %v1399
    %v1763 = vunpack.c.l.b16 %v1400
    %v1764 = vunpack.c.h.b16 %v1400
    %v1765 = vunpack.c.l.b16 %v1401
    %v1766 = vunpack.c.h.b16 %v1401
    %v1767 = vunpack.c.l.b16 %v1402
    %v1768 = vunpack.c.h.b16 %v1402
    %v1769 = vunpack.c.l.b16 %v1403
    %v1770 = vunpack.c.h.b16 %v1403
    %v1771 = vunpack.c.l.b16 %v1404
    %v1772 = vunpack.c.h.b16 %v1404
    %v1773 = vunpack.c.l.b16 %v1405
    %v1774 = vunpack.c.h.b16 %v1405
    %v1775 = vunpack.c.l.b16 %v1406
    %v1776 = vunpack.c.h.b16 %v1406
    %v1777 = vunpack.c.l.b16 %v1407
    %v1778 = vunpack.c.h.b16 %v1407
    %v1779 = vunpack.c.l.b16 %v1408
    %v1780 = vunpack.c.h.b16 %v1408
    %v1781 = vunpack.c.l.b16 %v1409
    %v1782 = vunpack.c.h.b16 %v1409
    %v1783 = vunpack.c.l.b16 %v1410
    %v1784 = vunpack.c.h.b16 %v1410
    %v1785 = vunpack.c.l.b16 %v1411
    %v1786 = vunpack.c.h.b16 %v1411
    %v1787 = vunpack.c.l.b16 %v1412
    %v1788 = vunpack.c.h.b16 %v1412
    %v1789 = vunpack.c.l.b16 %v1413
    %v1790 = vunpack.c.h.b16 %v1413
    %v1791 = vunpack.c.l.b16 %v1414
    %v1792 = vunpack.c.h.b16 %v1414
    %v1793 = vunpack.c.l.b16 %v1415
    %v1794 = vunpack.c.h.b16 %v1415
    %v1795 = vunpack.c.l.b16 %v1416
    %v1796 = vunpack.c.h.b16 %v1416
    %v1797 = vunpack.c.l.b16 %v1417
    %v1798 = vunpack.c.h.b16 %v1417
    %v1799 = vunpack.c.l.b16 %v1418
    %v1800 = vunpack.c.h.b16 %v1418
    %v1801 = vunpack.c.l.b16 %v1419
    %v1802 = vunpack.c.h.b16 %v1419
    %v1803 = vunpack.c.l.b16 %v1420
    %v1804 = vunpack.c.h.b16 %v1420
    %v1805 = vunpack.c.l.b16 %v1421
    %v1806 = vunpack.c.h.b16 %v1421
    %v1807 = vunpack.c.l.b16 %v1422
    %v1808 = vunpack.c.h.b16 %v1422
    %v1809 = vunpack.c.l.b16 %v1423
    %v1810 = vunpack.c.h.b16 %v1423
    %v1811 = vunpack.c.l.b16 %v1424
    %v1812 = vunpack.c.h.b16 %v1424
    %v1813 = vunpack.c.l.b16 %v1425
    %v1814 = vunpack.c.h.b16 %v1425
    %v1815 = vunpack.c.l.b16 %v1426
    %v1816 = vunpack.c.h.b16 %v1426
    %v1817 = vunpack.c.l.b16 %v1427
    %v1818 = vunpack.c.h.b16 %v1427
    %v1819 = vunpack.c.l.b16 %v1428
    %v1820 = vunpack.c.h.b16 %v1428
    %v1821 = vunpack.c.l.b16 %v1429
    %v1822 = vunpack.c.h.b16 %v1429
    %v1823 = vunpack.c.l.b16 %v1430
    %v1824 = vunpack.c.h.b16 %v1430
    %v1825 = vunpack.c.l.b16 %v1431
    %v1826 = vunpack.c.h.b16 %v1431
    %v1827 = vunpack.c.l.b16 %v1432
    %v1828 = vunpack.c.h.b16 %v1432
    %v1829 = vunpack.c.l.b16 %v1433
    %v1830 = vunpack.c.h.b16 %v1433
    %v1831 = vunpack.c.l.b16 %v1434
    %v1832 = vunpack.c.h.b16 %v1434
    %v1833 = vunpack.c.l.b16 %v1435
    %v1834 = vunpack.c.h.b16 %v1435
    %v1835 = vunpack.c.l.b16 %v1436
    %v1836 = vunpack.c.h.b16 %v1436
    %v1837 = vunpack.c.l.b16 %v1437
    %v1838 = vunpack.c.h.b16 %v1437
    %v1839 = vunpack.c.l.b16 %v1438
    %v1840 = vunpack.c.h.b16 %v1438
    %v1841 = vunpack.c.l.b16 %v1439
    %v1842 = vunpack.c.h.b16 %v1439
    %v1843 = vunpack.c.l.b16 %v1440
    %v1844 = vunpack.c.h.b16 %v1440
    %v1845 = vunpack.c.l.b16 %v1441
    %v1846 = vunpack.c.h.b16 %v1441
    %v1847 = vunpack.c.l.b16 %v1442
    %v1848 = vunpack.c.h.b16 %v1442
    %v1849 = vpack.c.b16 %v1597, %v1593
    %v1850 = vpack.c.b16 %v1598, %v1594
    %v1851 = vpack.c.b16 %v1599, %v1595
    %v1852 = vpack.c.b16 %v1600, %v1596
    %v1853 = vpack.c.b16 %v1605, %v1601
    %v1854 = vpack.c.b16 %v1606, %v1602
    %v1855 = vpack.c.b16 %v1607, %v1603
    %v1856 = vpack.c.b16 %v1608, %v1604
    %v1857 = vpack.c.b16 %v1613, %v1609
    %v1858 = vpack.c.b16 %v1614, %v1610
    %v1859 = vpack.c.b16 %v1615, %v1611
    %v1860 = vpack.c.b16 %v1616, %v1612
    %v1861 = vpack.c.b16 %v1621, %v1617
    %v1862 = vpack.c.b16 %v1622, %v1618
    %v1863 = vpack.c.b16 %v1623, %v1619
    %v1864 = vpack.c.b16 %v1624, %v1620
    %v1865 = vpack.c.b16 %v1629, %v1625
    %v1866 = vpack.c.b16 %v1630, %v1626
    %v1867 = vpack.c.b16 %v1631, %v1627
    %v1868 = vpack.c.b16 %v1632, %v1628
    %v1869 = vpack.c.b16 %v1637, %v1633
    %v1870 = vpack.c.b16 %v1638, %v1634
    %v1871 = vpack.c.b16 %v1639, %v1635
    %v1872 = vpack.c.b16 %v1640, %v1636
    %v1873 = vpack.c.b16 %v1645, %v1641
    %v1874 = vpack.c.b16 %v1646, %v1642
    %v1875 = vpack.c.b16 %v1647, %v1643
    %v1876 = vpack.c.b16 %v1648, %v1644
    %v1877 = vpack.c.b16 %v1653, %v1649
    %v1878 = vpack.c.b16 %v1654, %v1650
    %v1879 = vpack.c.b16 %v1655, %v1651
    %v1880 = vpack.c.b16 %v1656, %v1652
    %v1881 = vpack.c.b16 %v1661, %v1657
    %v1882 = vpack.c.b16 %v1662, %v1658
    %v1883 = vpack.c.b16 %v1663, %v1659
    %v1884 = vpack.c.b16 %v1664, %v1660
    %v1885 = vpack.c.b16 %v1669, %v1665
    %v1886 = vpack.c.b16 %v1670, %v1666
    %v1887 = vpack.c.b16 %v1671, %v1667
    %v1888 = vpack.c.b16 %v1672, %v1668
    %v1889 = vpack.c.b16 %v1677, %v1673
    %v1890 = vpack.c.b16 %v1678, %v1674
    %v1891 = vpack.c.b16 %v1679, %v1675
    %v1892 = vpack.c.b16 %v1680, %v1676
    %v1893 = vpack.c.b16 %v1685, %v1681
    %v1894 = vpack.c.b16 %v1686, %v1682
    %v1895 = vpack.c.b16 %v1687, %v1683
    %v1896 = vpack.c.b16 %v1688, %v1684
    %v1897 = vpack.c.b16 %v1693, %v1689
    %v1898 = vpack.c.b16 %v1694, %v1690
    %v1899 = vpack.c.b16 %v1695, %v1691
    %v1900 = vpack.c.b16 %v1696, %v1692
    %v1901 = vpack.c.b16 %v1701, %v1697
    %v1902 = vpack.c.b16 %v1702, %v1698
    %v1903 = vpack.c.b16 %v1703, %v1699
    %v1904 = vpack.c.b16 %v1704, %v1700
    %v1905 = vpack.c.b16 %v1709, %v1705
    %v1906 = vpack.c.b16 %v1710, %v1706
    %v1907 = vpack.c.b16 %v1711, %v1707
    %v1908 = vpack.c.b16 %v1712, %v1708
    %v1909 = vpack.c.b16 %v1717, %v1713
    %v1910 = vpack.c.b16 %v1718, %v1714
    %v1911 = vpack.c.b16 %v1719, %v1715
    %v1912 = vpack.c.b16 %v1720, %v1716
    %v1913 = vpack.c.b16 %v1725, %v1721
    %v1914 = vpack.c.b16 %v1726, %v1722
    %v1915 = vpack.c.b16 %v1727, %v1723
    %v1916 = vpack.c.b16 %v1728, %v1724
    %v1917 = vpack.c.b16 %v1733, %v1729
    %v1918 = vpack.c.b16 %v1734, %v1730
    %v1919 = vpack.c.b16 %v1735, %v1731
    %v1920 = vpack.c.b16 %v1736, %v1732
    %v1921 = vpack.c.b16 %v1741, %v1737
    %v1922 = vpack.c.b16 %v1742, %v1738
    %v1923 = vpack.c.b16 %v1743, %v1739
    %v1924 = vpack.c.b16 %v1744, %v1740
    %v1925 = vpack.c.b16 %v1749, %v1745
    %v1926 = vpack.c.b16 %v1750, %v1746
    %v1927 = vpack.c.b16 %v1751, %v1747
    %v1928 = vpack.c.b16 %v1752, %v1748
    %v1929 = vpack.c.b16 %v1757, %v1753
    %v1930 = vpack.c.b16 %v1758, %v1754
    %v1931 = vpack.c.b16 %v1759, %v1755
    %v1932 = vpack.c.b16 %v1760, %v1756
    %v1933 = vpack.c.b16 %v1765, %v1761
    %v1934 = vpack.c.b16 %v1766, %v1762
    %v1935 = vpack.c.b16 %v1767, %v1763
    %v1936 = vpack.c.b16 %v1768, %v1764
    %v1937 = vpack.c.b16 %v1773, %v1769
    %v1938 = vpack.c.b16 %v1774, %v1770
    %v1939 = vpack.c.b16 %v1775, %v1771
    %v1940 = vpack.c.b16 %v1776, %v1772
    %v1941 = vpack.c.b16 %v1781, %v1777
    %v1942 = vpack.c.b16 %v1782, %v1778
    %v1943 = vpack.c.b16 %v1783, %v1779
    %v1944 = vpack.c.b16 %v1784, %v1780
    %v1945 = vpack.c.b16 %v1789, %v1785
    %v1946 = vpack.c.b16 %v1790, %v1786
    %v1947 = vpack.c.b16 %v1791, %v1787
    %v1948 = vpack.c.b16 %v1792, %v1788
    %v1949 = vpack.c.b16 %v1797, %v1793
    %v1950 = vpack.c.b16 %v1798, %v1794
    %v1951 = vpack.c.b16 %v1799, %v1795
    %v1952 = vpack.c.b16 %v1800, %v1796
    %v1953 = vpack.c.b16 %v1805, %v1801
    %v1954 = vpack.c.b16 %v1806, %v1802
    %v1955 = vpack.c.b16 %v1807, %v1803
    %v1956 = vpack.c.b16 %v1808, %v1804
    %v1957 = vpack.c.b16 %v1813, %v1809
    %v1958 = vpack.c.b16 %v1814, %v1810
    %v1959 = vpack.c.b16 %v1815, %v1811
    %v1960 = vpack.c.b16 %v1816, %v1812
    %v1961 = vpack.c.b16 %v1821, %v1817
    %v1962 = vpack.c.b16 %v1822, %v1818
    %v1963 = vpack.c.b16 %v1823, %v1819
    %v1964 = vpack.c.b16 %v1824, %v1820
    %v1965 = vpack.c.b16 %v1829, %v1825
    %v1966 = vpack.c.b16 %v1830, %v1826
    %v1967 = vpack.c.b16 %v1831, %v1827
    %v1968 = vpack.c.b16 %v1832, %v1828
    %v1969 = vpack.c.b16 %v1837, %v1833
    %v1970 = vpack.c.b16 %v1838, %v1834
    %v1971 = vpack.c.b16 %v1839, %v1835
    %v1972 = vpack.c.b16 %v1840, %v1836
    %v1973 = vpack.c.b16 %v1845, %v1841
    %v1974 = vpack.c.b16 %v1846, %v1842
    %v1975 = vpack.c.b16 %v1847, %v1843
    %v1976 = vpack.c.b16 %v1848, %v1844
    %2105 = vmatprep.subr.bf16.mxu0 %v1850
    %2106 = vmatpush1.bf16.msra.mxu0 %v1849
    %2107 = vmatprep.subr.bf16.mxu0 %v1854
    %2108 = vmatpush1.bf16.msra.mxu0 %v1853
    %2109 = vmatprep.subr.bf16.mxu0 %v1858
    %2110 = vmatpush1.bf16.msra.mxu0 %v1857
    %2111 = vmatprep.subr.bf16.mxu0 %v1862
    %2112 = vmatpush1.bf16.msra.mxu0 %v1861
    %2113 = vmatprep.subr.bf16.mxu0 %v1866
    %2114 = vmatpush1.bf16.msra.mxu0 %v1865
    %2115 = vmatprep.subr.bf16.mxu0 %v1870
    %2116 = vmatpush1.bf16.msra.mxu0 %v1869
    %2117 = vmatprep.subr.bf16.mxu0 %v1874
    %2118 = vmatpush1.bf16.msra.mxu0 %v1873
    %2119 = vmatprep.subr.bf16.mxu0 %v1878
    %2120 = vmatpush1.bf16.msra.mxu0 %v1877
    %2121 = vmatprep.subr.bf16.mxu0 %v1882
    %2122 = vmatpush1.bf16.msra.mxu0 %v1881
    %2123 = vmatprep.subr.bf16.mxu0 %v1886
    %2124 = vmatpush1.bf16.msra.mxu0 %v1885
    %2125 = vmatprep.subr.bf16.mxu0 %v1890
    %2126 = vmatpush1.bf16.msra.mxu0 %v1889
    %2127 = vmatprep.subr.bf16.mxu0 %v1894
    %2128 = vmatpush1.bf16.msra.mxu0 %v1893
    %2129 = vmatprep.subr.bf16.mxu0 %v1898
    %2130 = vmatpush1.bf16.msra.mxu0 %v1897
    %2131 = vmatprep.subr.bf16.mxu0 %v1902
    %2132 = vmatpush1.bf16.msra.mxu0 %v1901
    %2133 = vmatprep.subr.bf16.mxu0 %v1906
    %2134 = vmatpush1.bf16.msra.mxu0 %v1905
    %2135 = vmatprep.subr.bf16.mxu0 %v1910
    %2136 = vmatpush1.bf16.msra.mxu0 %v1909
    %2137 = vmatprep.mubr.bf16.mxu0 %v1264
    %2138 = vmatmul.mubr.bf16.gmra.mrb[0].mxu0 %v1263
    %v2139 = vpop.f32.mrb[0].mxu0
    %v2140 = vadd.f32 %v1448, %v2139
    %v2141 = vpop.f32.mrb[0].mxu0
    %v2142 = vadd.f32 %v1452, %v2141
    %v2143 = vpop.f32.mrb[0].mxu0
    %v2144 = vadd.f32 %v1448, %v2143
    %v2145 = vpop.f32.mrb[0].mxu0
    %v2146 = vadd.f32 %v1452, %v2145
    %2147 = vmatprep.mubr.bf16.mxu0 %v1268
    %2148 = vmatmul.mubr.bf16.gmra.mrb[0].mxu0 %v1267
    %v2149 = vpop.f32.mrb[0].mxu0
    %v2150 = vadd.f32 %v1448, %v2149
    %v2151 = vpop.f32.mrb[0].mxu0
    %v2152 = vadd.f32 %v1452, %v2151
    %v2153 = vpop.f32.mrb[0].mxu0
    %v2154 = vadd.f32 %v1448, %v2153
    %v2155 = vpop.f32.mrb[0].mxu0
    %v2156 = vadd.f32 %v1452, %v2155
    %2157 = vmatprep.mubr.bf16.mxu0 %v1272
    %2158 = vmatmul.mubr.bf16.gmra.mrb[0].mxu0 %v1271
    %v2159 = vpop.f32.mrb[0].mxu0
    %v2160 = vadd.f32 %v1448, %v2159
    %v2161 = vpop.f32.mrb[0].mxu0
    %v2162 = vadd.f32 %v1452, %v2161
    %v2163 = vpop.f32.mrb[0].mxu0
    %v2164 = vadd.f32 %v1448, %v2163
    %v2165 = vpop.f32.mrb[0].mxu0
    %v2166 = vadd.f32 %v1452, %v2165
    %2167 = vmatprep.mubr.bf16.mxu0 %v1276
    %2168 = vmatmul.mubr.bf16.gmra.mrb[0].mxu0 %v1275
    %v2169 = vpop.f32.mrb[0].mxu0
    %v2170 = vadd.f32 %v1448, %v2169
    %v2171 = vpop.f32.mrb[0].mxu0
    %v2172 = vadd.f32 %v1452, %v2171
    %v2173 = vpop.f32.mrb[0].mxu0
    %v2174 = vadd.f32 %v1448, %v2173
    %v2175 = vpop.f32.mrb[0].mxu0
    %v2176 = vadd.f32 %v1452, %v2175
    %2177 = vmatprep.mubr.bf16.mxu0 %v1280
    %2178 = vmatmul.mubr.bf16.gmra.mrb[0].mxu0 %v1279
    %v2179 = vpop.f32.mrb[0].mxu0
    %v2180 = vadd.f32 %v1448, %v2179
    %v2181 = vpop.f32.mrb[0].mxu0
    %v2182 = vadd.f32 %v1452, %v2181
    %v2183 = vpop.f32.mrb[0].mxu0
    %v2184 = vadd.f32 %v1448, %v2183
    %v2185 = vpop.f32.mrb[0].mxu0
    %v2186 = vadd.f32 %v1452, %v2185
    %2187 = vmatprep.mubr.bf16.mxu0 %v1284
    %2188 = vmatmul.mubr.bf16.gmra.mrb[0].mxu0 %v1283
    %v2189 = vpop.f32.mrb[0].mxu0
    %v2190 = vadd.f32 %v1448, %v2189
    %v2191 = vpop.f32.mrb[0].mxu0
    %v2192 = vadd.f32 %v1452, %v2191
    %v2193 = vpop.f32.mrb[0].mxu0
    %v2194 = vadd.f32 %v1448, %v2193
    %v2195 = vpop.f32.mrb[0].mxu0
    %v2196 = vadd.f32 %v1452, %v2195
    %2197 = vmatprep.mubr.bf16.mxu0 %v1288
    %2198 = vmatmul.mubr.bf16.gmra.mrb[0].mxu0 %v1287
    %v2199 = vpop.f32.mrb[0].mxu0
    %v2200 = vadd.f32 %v1448, %v2199
    %v2201 = vpop.f32.mrb[0].mxu0
    %v2202 = vadd.f32 %v1452, %v2201
    %v2203 = vpop.f32.mrb[0].mxu0
    %v2204 = vadd.f32 %v1448, %v2203
    %v2205 = vpop.f32.mrb[0].mxu0
    %v2206 = vadd.f32 %v1452, %v2205
    %2207 = vmatprep.mubr.bf16.mxu0 %v1292
    %2208 = vmatmul.mubr.bf16.gmra.mrb[0].mxu0 %v1291
    %v2209 = vpop.f32.mrb[0].mxu0
    %v2210 = vadd.f32 %v1448, %v2209
    %v2211 = vpop.f32.mrb[0].mxu0
    %v2212 = vadd.f32 %v1452, %v2211
    %v2213 = vpop.f32.mrb[0].mxu0
    %v2214 = vadd.f32 %v1448, %v2213
    %v2215 = vpop.f32.mrb[0].mxu0
    %v2216 = vadd.f32 %v1452, %v2215
    %2217 = vmatprep.mubr.bf16.mxu0 %v1296
    %2218 = vmatmul.mubr.bf16.gmra.mrb[0].mxu0 %v1295
    %v2219 = vpop.f32.mrb[0].mxu0
    %v2220 = vadd.f32 %v1448, %v2219
    %v2221 = vpop.f32.mrb[0].mxu0
    %v2222 = vadd.f32 %v1452, %v2221
    %v2223 = vpop.f32.mrb[0].mxu0
    %v2224 = vadd.f32 %v1448, %v2223
    %v2225 = vpop.f32.mrb[0].mxu0
    %v2226 = vadd.f32 %v1452, %v2225
    %2227 = vmatprep.mubr.bf16.mxu0 %v1300
    %2228 = vmatmul.mubr.bf16.gmra.mrb[0].mxu0 %v1299
    %v2229 = vpop.f32.mrb[0].mxu0
    %v2230 = vadd.f32 %v1448, %v2229
    %v2231 = vpop.f32.mrb[0].mxu0
    %v2232 = vadd.f32 %v1452, %v2231
    %v2233 = vpop.f32.mrb[0].mxu0
    %v2234 = vadd.f32 %v1448, %v2233
    %v2235 = vpop.f32.mrb[0].mxu0
    %v2236 = vadd.f32 %v1452, %v2235
    %2237 = vmatprep.mubr.bf16.mxu0 %v1304
    %2238 = vmatmul.mubr.bf16.gmra.mrb[0].mxu0 %v1303
    %v2239 = vpop.f32.mrb[0].mxu0
    %v2240 = vadd.f32 %v1448, %v2239
    %v2241 = vpop.f32.mrb[0].mxu0
    %v2242 = vadd.f32 %v1452, %v2241
    %v2243 = vpop.f32.mrb[0].mxu0
    %v2244 = vadd.f32 %v1448, %v2243
    %v2245 = vpop.f32.mrb[0].mxu0
    %v2246 = vadd.f32 %v1452, %v2245
    %2247 = vmatprep.mubr.bf16.mxu0 %v1308
    %2248 = vmatmul.mubr.bf16.gmra.mrb[0].mxu0 %v1307
    %v2249 = vpop.f32.mrb[0].mxu0
    %v2250 = vadd.f32 %v1448, %v2249
    %v2251 = vpop.f32.mrb[0].mxu0
    %v2252 = vadd.f32 %v1452, %v2251
    %v2253 = vpop.f32.mrb[0].mxu0
    %v2254 = vadd.f32 %v1448, %v2253
    %v2255 = vpop.f32.mrb[0].mxu0
    %v2256 = vadd.f32 %v1452, %v2255
    %2257 = vmatprep.mubr.bf16.mxu0 %v1312
    %2258 = vmatmul.mubr.bf16.gmra.mrb[0].mxu0 %v1311
    %v2259 = vpop.f32.mrb[0].mxu0
    %v2260 = vadd.f32 %v1448, %v2259
    %v2261 = vpop.f32.mrb[0].mxu0
    %v2262 = vadd.f32 %v1452, %v2261
    %v2263 = vpop.f32.mrb[0].mxu0
    %v2264 = vpop.f32.mrb[0].mxu0
    %2265 = vdwg.mxu0
    %2266 = vmatprep.subr.bf16.mxu0 %v1914
    %2267 = vmatpush1.bf16.msra.mxu0 %v1913
    %2268 = vmatprep.subr.bf16.mxu0 %v1918
    %2269 = vmatpush1.bf16.msra.mxu0 %v1917
    %2270 = vmatprep.subr.bf16.mxu0 %v1922
    %2271 = vmatpush1.bf16.msra.mxu0 %v1921
    %2272 = vmatprep.subr.bf16.mxu0 %v1926
    %2273 = vmatpush1.bf16.msra.mxu0 %v1925
    %2274 = vmatprep.subr.bf16.mxu0 %v1930
    %2275 = vmatpush1.bf16.msra.mxu0 %v1929
    %2276 = vmatprep.subr.bf16.mxu0 %v1934
    %2277 = vmatpush1.bf16.msra.mxu0 %v1933
    %2278 = vmatprep.subr.bf16.mxu0 %v1938
    %2279 = vmatpush1.bf16.msra.mxu0 %v1937
    %2280 = vmatprep.subr.bf16.mxu0 %v1942
    %2281 = vmatpush1.bf16.msra.mxu0 %v1941
    %2282 = vmatprep.subr.bf16.mxu0 %v1946
    %2283 = vmatpush1.bf16.msra.mxu0 %v1945
    %2284 = vmatprep.subr.bf16.mxu0 %v1950
    %2285 = vmatpush1.bf16.msra.mxu0 %v1949
    %2286 = vmatprep.subr.bf16.mxu0 %v1954
    %2287 = vmatpush1.bf16.msra.mxu0 %v1953
    %2288 = vmatprep.subr.bf16.mxu0 %v1958
    %2289 = vmatpush1.bf16.msra.mxu0 %v1957
    %2290 = vmatprep.subr.bf16.mxu0 %v1962
    %2291 = vmatpush1.bf16.msra.mxu0 %v1961
    %2292 = vmatprep.subr.bf16.mxu0 %v1966
    %2293 = vmatpush1.bf16.msra.mxu0 %v1965
    %2294 = vmatprep.subr.bf16.mxu0 %v1970
    %2295 = vmatpush1.bf16.msra.mxu0 %v1969
    %2296 = vmatprep.subr.bf16.mxu0 %v1974
    %2297 = vmatpush1.bf16.msra.mxu0 %v1973
    %2298 = vmatprep.mubr.bf16.mxu0 %v1266
    %2299 = vmatmul.mubr.bf16.gmra.mrb[0].mxu0 %v1265
    %v2300 = vpop.f32.mrb[0].mxu0
    %v2301 = vadd.f32 %v2140, %v2300
    %v2302 = vpop.f32.mrb[0].mxu0
    %v2303 = vadd.f32 %v2142, %v2302
    %v2304 = vpop.f32.mrb[0].mxu0
    %v2305 = vadd.f32 %v2144, %v2304
    %v2306 = vpop.f32.mrb[0].mxu0
    %v2307 = vadd.f32 %v2146, %v2306
    %2308 = vmatprep.mubr.bf16.mxu0 %v1270
    %2309 = vmatmul.mubr.bf16.gmra.mrb[0].mxu0 %v1269
    %v2310 = vpop.f32.mrb[0].mxu0
    %v2311 = vadd.f32 %v2150, %v2310
    %v2312 = vpop.f32.mrb[0].mxu0
    %v2313 = vadd.f32 %v2152, %v2312
    %v2314 = vpop.f32.mrb[0].mxu0
    %v2315 = vadd.f32 %v2154, %v2314
    %v2316 = vpop.f32.mrb[0].mxu0
    %v2317 = vadd.f32 %v2156, %v2316
    %2318 = vmatprep.mubr.bf16.mxu0 %v1274
    %2319 = vmatmul.mubr.bf16.gmra.mrb[0].mxu0 %v1273
    %v2320 = vpop.f32.mrb[0].mxu0
    %v2321 = vadd.f32 %v2160, %v2320
    %v2322 = vpop.f32.mrb[0].mxu0
    %v2323 = vadd.f32 %v2162, %v2322
    %v2324 = vpop.f32.mrb[0].mxu0
    %v2325 = vadd.f32 %v2164, %v2324
    %v2326 = vpop.f32.mrb[0].mxu0
    %v2327 = vadd.f32 %v2166, %v2326
    %2328 = vmatprep.mubr.bf16.mxu0 %v1278
    %2329 = vmatmul.mubr.bf16.gmra.mrb[0].mxu0 %v1277
    %v2330 = vpop.f32.mrb[0].mxu0
    %v2331 = vadd.f32 %v2170, %v2330
    %v2332 = vpop.f32.mrb[0].mxu0
    %v2333 = vadd.f32 %v2172, %v2332
    %v2334 = vpop.f32.mrb[0].mxu0
    %v2335 = vadd.f32 %v2174, %v2334
    %v2336 = vpop.f32.mrb[0].mxu0
    %v2337 = vadd.f32 %v2176, %v2336
    %2338 = vmatprep.mubr.bf16.mxu0 %v1282
    %2339 = vmatmul.mubr.bf16.gmra.mrb[0].mxu0 %v1281
    %v2340 = vpop.f32.mrb[0].mxu0
    %v2341 = vadd.f32 %v2180, %v2340
    %v2342 = vpop.f32.mrb[0].mxu0
    %v2343 = vadd.f32 %v2182, %v2342
    %v2344 = vpop.f32.mrb[0].mxu0
    %v2345 = vadd.f32 %v2184, %v2344
    %v2346 = vpop.f32.mrb[0].mxu0
    %v2347 = vadd.f32 %v2186, %v2346
    %2348 = vmatprep.mubr.bf16.mxu0 %v1286
    %2349 = vmatmul.mubr.bf16.gmra.mrb[0].mxu0 %v1285
    %v2350 = vpop.f32.mrb[0].mxu0
    %v2351 = vadd.f32 %v2190, %v2350
    %v2352 = vpop.f32.mrb[0].mxu0
    %v2353 = vadd.f32 %v2192, %v2352
    %v2354 = vpop.f32.mrb[0].mxu0
    %v2355 = vadd.f32 %v2194, %v2354
    %v2356 = vpop.f32.mrb[0].mxu0
    %v2357 = vadd.f32 %v2196, %v2356
    %2358 = vmatprep.mubr.bf16.mxu0 %v1290
    %2359 = vmatmul.mubr.bf16.gmra.mrb[0].mxu0 %v1289
    %v2360 = vpop.f32.mrb[0].mxu0
    %v2361 = vadd.f32 %v2200, %v2360
    %v2362 = vpop.f32.mrb[0].mxu0
    %v2363 = vadd.f32 %v2202, %v2362
    %v2364 = vpop.f32.mrb[0].mxu0
    %v2365 = vadd.f32 %v2204, %v2364
    %v2366 = vpop.f32.mrb[0].mxu0
    %v2367 = vadd.f32 %v2206, %v2366
    %2368 = vmatprep.mubr.bf16.mxu0 %v1294
    %2369 = vmatmul.mubr.bf16.gmra.mrb[0].mxu0 %v1293
    %v2370 = vpop.f32.mrb[0].mxu0
    %v2371 = vadd.f32 %v2210, %v2370
    %v2372 = vpop.f32.mrb[0].mxu0
    %v2373 = vadd.f32 %v2212, %v2372
    %v2374 = vpop.f32.mrb[0].mxu0
    %v2375 = vadd.f32 %v2214, %v2374
    %v2376 = vpop.f32.mrb[0].mxu0
    %v2377 = vadd.f32 %v2216, %v2376
    %2378 = vmatprep.mubr.bf16.mxu0 %v1298
    %2379 = vmatmul.mubr.bf16.gmra.mrb[0].mxu0 %v1297
    %v2380 = vpop.f32.mrb[0].mxu0
    %v2381 = vadd.f32 %v2220, %v2380
    %v2382 = vpop.f32.mrb[0].mxu0
    %v2383 = vadd.f32 %v2222, %v2382
    %v2384 = vpop.f32.mrb[0].mxu0
    %v2385 = vadd.f32 %v2224, %v2384
    %v2386 = vpop.f32.mrb[0].mxu0
    %v2387 = vadd.f32 %v2226, %v2386
    %2388 = vmatprep.mubr.bf16.mxu0 %v1302
    %2389 = vmatmul.mubr.bf16.gmra.mrb[0].mxu0 %v1301
    %v2390 = vpop.f32.mrb[0].mxu0
    %v2391 = vadd.f32 %v2230, %v2390
    %v2392 = vpop.f32.mrb[0].mxu0
    %v2393 = vadd.f32 %v2232, %v2392
    %v2394 = vpop.f32.mrb[0].mxu0
    %v2395 = vadd.f32 %v2234, %v2394
    %v2396 = vpop.f32.mrb[0].mxu0
    %v2397 = vadd.f32 %v2236, %v2396
    %2398 = vmatprep.mubr.bf16.mxu0 %v1306
    %2399 = vmatmul.mubr.bf16.gmra.mrb[0].mxu0 %v1305
    %v2400 = vpop.f32.mrb[0].mxu0
    %v2401 = vadd.f32 %v2240, %v2400
    %v2402 = vpop.f32.mrb[0].mxu0
    %v2403 = vadd.f32 %v2242, %v2402
    %v2404 = vpop.f32.mrb[0].mxu0
    %v2405 = vadd.f32 %v2244, %v2404
    %v2406 = vpop.f32.mrb[0].mxu0
    %v2407 = vadd.f32 %v2246, %v2406
    %2408 = vmatprep.mubr.bf16.mxu0 %v1310
    %2409 = vmatmul.mubr.bf16.gmra.mrb[0].mxu0 %v1309
    %v2410 = vpop.f32.mrb[0].mxu0
    %v2411 = vadd.f32 %v2250, %v2410
    %v2412 = vpop.f32.mrb[0].mxu0
    %v2413 = vadd.f32 %v2252, %v2412
    %v2414 = vpop.f32.mrb[0].mxu0
    %v2415 = vadd.f32 %v2254, %v2414
    %v2416 = vpop.f32.mrb[0].mxu0
    %v2417 = vadd.f32 %v2256, %v2416
    %2418 = vmatprep.mubr.bf16.mxu0 %v1314
    %2419 = vmatmul.mubr.bf16.gmra.mrb[0].mxu0 %v1313
    %v2420 = vpop.f32.mrb[0].mxu0
    %v2421 = vadd.f32 %v2260, %v2420
    %v2422 = vpop.f32.mrb[0].mxu0
    %v2423 = vadd.f32 %v2262, %v2422
    %v2424 = vpop.f32.mrb[0].mxu0
    %v2425 = vpop.f32.mrb[0].mxu0
    %2426 = vdwg.mxu0
    %2427 = vmatprep.subr.bf16.mxu0 %v1852
    %2428 = vmatpush1.bf16.msra.mxu0 %v1851
    %2429 = vmatprep.subr.bf16.mxu0 %v1856
    %2430 = vmatpush1.bf16.msra.mxu0 %v1855
    %2431 = vmatprep.subr.bf16.mxu0 %v1860
    %2432 = vmatpush1.bf16.msra.mxu0 %v1859
    %2433 = vmatprep.subr.bf16.mxu0 %v1864
    %2434 = vmatpush1.bf16.msra.mxu0 %v1863
    %2435 = vmatprep.subr.bf16.mxu0 %v1868
    %2436 = vmatpush1.bf16.msra.mxu0 %v1867
    %2437 = vmatprep.subr.bf16.mxu0 %v1872
    %2438 = vmatpush1.bf16.msra.mxu0 %v1871
    %2439 = vmatprep.subr.bf16.mxu0 %v1876
    %2440 = vmatpush1.bf16.msra.mxu0 %v1875
    %2441 = vmatprep.subr.bf16.mxu0 %v1880
    %2442 = vmatpush1.bf16.msra.mxu0 %v1879
    %2443 = vmatprep.subr.bf16.mxu0 %v1884
    %2444 = vmatpush1.bf16.msra.mxu0 %v1883
    %2445 = vmatprep.subr.bf16.mxu0 %v1888
    %2446 = vmatpush1.bf16.msra.mxu0 %v1887
    %2447 = vmatprep.subr.bf16.mxu0 %v1892
    %2448 = vmatpush1.bf16.msra.mxu0 %v1891
    %2449 = vmatprep.subr.bf16.mxu0 %v1896
    %2450 = vmatpush1.bf16.msra.mxu0 %v1895
    %2451 = vmatprep.subr.bf16.mxu0 %v1900
    %2452 = vmatpush1.bf16.msra.mxu0 %v1899
    %2453 = vmatprep.subr.bf16.mxu0 %v1904
    %2454 = vmatpush1.bf16.msra.mxu0 %v1903
    %2455 = vmatprep.subr.bf16.mxu0 %v1908
    %2456 = vmatpush1.bf16.msra.mxu0 %v1907
    %2457 = vmatprep.subr.bf16.mxu0 %v1912
    %2458 = vmatpush1.bf16.msra.mxu0 %v1911
    %2459 = vmatprep.mubr.bf16.mxu0 %v1264
    %2460 = vmatmul.mubr.bf16.gmra.mrb[0].mxu0 %v1263
    %v2461 = vpop.f32.mrb[0].mxu0
    %v2462 = vadd.f32 %v1456, %v2461
    %v2463 = vpop.f32.mrb[0].mxu0
    %v2464 = vadd.f32 %v1460, %v2463
    %v2465 = vpop.f32.mrb[0].mxu0
    %v2466 = vadd.f32 %v1456, %v2465
    %v2467 = vpop.f32.mrb[0].mxu0
    %v2468 = vadd.f32 %v1460, %v2467
    %2469 = vmatprep.mubr.bf16.mxu0 %v1268
    %2470 = vmatmul.mubr.bf16.gmra.mrb[0].mxu0 %v1267
    %v2471 = vpop.f32.mrb[0].mxu0
    %v2472 = vadd.f32 %v1456, %v2471
    %v2473 = vpop.f32.mrb[0].mxu0
    %v2474 = vadd.f32 %v1460, %v2473
    %v2475 = vpop.f32.mrb[0].mxu0
    %v2476 = vadd.f32 %v1456, %v2475
    %v2477 = vpop.f32.mrb[0].mxu0
    %v2478 = vadd.f32 %v1460, %v2477
    %2479 = vmatprep.mubr.bf16.mxu0 %v1272
    %2480 = vmatmul.mubr.bf16.gmra.mrb[0].mxu0 %v1271
    %v2481 = vpop.f32.mrb[0].mxu0
    %v2482 = vadd.f32 %v1456, %v2481
    %v2483 = vpop.f32.mrb[0].mxu0
    %v2484 = vadd.f32 %v1460, %v2483
    %v2485 = vpop.f32.mrb[0].mxu0
    %v2486 = vadd.f32 %v1456, %v2485
    %v2487 = vpop.f32.mrb[0].mxu0
    %v2488 = vadd.f32 %v1460, %v2487
    %2489 = vmatprep.mubr.bf16.mxu0 %v1276
    %2490 = vmatmul.mubr.bf16.gmra.mrb[0].mxu0 %v1275
    %v2491 = vpop.f32.mrb[0].mxu0
    %v2492 = vadd.f32 %v1456, %v2491
    %v2493 = vpop.f32.mrb[0].mxu0
    %v2494 = vadd.f32 %v1460, %v2493
    %v2495 = vpop.f32.mrb[0].mxu0
    %v2496 = vadd.f32 %v1456, %v2495
    %v2497 = vpop.f32.mrb[0].mxu0
    %v2498 = vadd.f32 %v1460, %v2497
    %2499 = vmatprep.mubr.bf16.mxu0 %v1280
    %2500 = vmatmul.mubr.bf16.gmra.mrb[0].mxu0 %v1279
    %v2501 = vpop.f32.mrb[0].mxu0
    %v2502 = vadd.f32 %v1456, %v2501
    %v2503 = vpop.f32.mrb[0].mxu0
    %v2504 = vadd.f32 %v1460, %v2503
    %v2505 = vpop.f32.mrb[0].mxu0
    %v2506 = vadd.f32 %v1456, %v2505
    %v2507 = vpop.f32.mrb[0].mxu0
    %v2508 = vadd.f32 %v1460, %v2507
    %2509 = vmatprep.mubr.bf16.mxu0 %v1284
    %2510 = vmatmul.mubr.bf16.gmra.mrb[0].mxu0 %v1283
    %v2511 = vpop.f32.mrb[0].mxu0
    %v2512 = vadd.f32 %v1456, %v2511
    %v2513 = vpop.f32.mrb[0].mxu0
    %v2514 = vadd.f32 %v1460, %v2513
    %v2515 = vpop.f32.mrb[0].mxu0
    %v2516 = vadd.f32 %v1456, %v2515
    %v2517 = vpop.f32.mrb[0].mxu0
    %v2518 = vadd.f32 %v1460, %v2517
    %2519 = vmatprep.mubr.bf16.mxu0 %v1288
    %2520 = vmatmul.mubr.bf16.gmra.mrb[0].mxu0 %v1287
    %v2521 = vpop.f32.mrb[0].mxu0
    %v2522 = vadd.f32 %v1456, %v2521
    %v2523 = vpop.f32.mrb[0].mxu0
    %v2524 = vadd.f32 %v1460, %v2523
    %v2525 = vpop.f32.mrb[0].mxu0
    %v2526 = vadd.f32 %v1456, %v2525
    %v2527 = vpop.f32.mrb[0].mxu0
    %v2528 = vadd.f32 %v1460, %v2527
    %2529 = vmatprep.mubr.bf16.mxu0 %v1292
    %2530 = vmatmul.mubr.bf16.gmra.mrb[0].mxu0 %v1291
    %v2531 = vpop.f32.mrb[0].mxu0
    %v2532 = vadd.f32 %v1456, %v2531
    %v2533 = vpop.f32.mrb[0].mxu0
    %v2534 = vadd.f32 %v1460, %v2533
    %v2535 = vpop.f32.mrb[0].mxu0
    %v2536 = vadd.f32 %v1456, %v2535
    %v2537 = vpop.f32.mrb[0].mxu0
    %v2538 = vadd.f32 %v1460, %v2537
    %2539 = vmatprep.mubr.bf16.mxu0 %v1296
    %2540 = vmatmul.mubr.bf16.gmra.mrb[0].mxu0 %v1295
    %v2541 = vpop.f32.mrb[0].mxu0
    %v2542 = vadd.f32 %v1456, %v2541
    %v2543 = vpop.f32.mrb[0].mxu0
    %v2544 = vadd.f32 %v1460, %v2543
    %v2545 = vpop.f32.mrb[0].mxu0
    %v2546 = vadd.f32 %v1456, %v2545
    %v2547 = vpop.f32.mrb[0].mxu0
    %v2548 = vadd.f32 %v1460, %v2547
    %2549 = vmatprep.mubr.bf16.mxu0 %v1300
    %2550 = vmatmul.mubr.bf16.gmra.mrb[0].mxu0 %v1299
    %v2551 = vpop.f32.mrb[0].mxu0
    %v2552 = vadd.f32 %v1456, %v2551
    %v2553 = vpop.f32.mrb[0].mxu0
    %v2554 = vadd.f32 %v1460, %v2553
    %v2555 = vpop.f32.mrb[0].mxu0
    %v2556 = vadd.f32 %v1456, %v2555
    %v2557 = vpop.f32.mrb[0].mxu0
    %v2558 = vadd.f32 %v1460, %v2557
    %2559 = vmatprep.mubr.bf16.mxu0 %v1304
    %2560 = vmatmul.mubr.bf16.gmra.mrb[0].mxu0 %v1303
    %v2561 = vpop.f32.mrb[0].mxu0
    %v2562 = vadd.f32 %v1456, %v2561
    %v2563 = vpop.f32.mrb[0].mxu0
    %v2564 = vadd.f32 %v1460, %v2563
    %v2565 = vpop.f32.mrb[0].mxu0
    %v2566 = vadd.f32 %v1456, %v2565
    %v2567 = vpop.f32.mrb[0].mxu0
    %v2568 = vadd.f32 %v1460, %v2567
    %2569 = vmatprep.mubr.bf16.mxu0 %v1308
    %2570 = vmatmul.mubr.bf16.gmra.mrb[0].mxu0 %v1307
    %v2571 = vpop.f32.mrb[0].mxu0
    %v2572 = vadd.f32 %v1456, %v2571
    %v2573 = vpop.f32.mrb[0].mxu0
    %v2574 = vadd.f32 %v1460, %v2573
    %v2575 = vpop.f32.mrb[0].mxu0
    %v2576 = vadd.f32 %v1456, %v2575
    %v2577 = vpop.f32.mrb[0].mxu0
    %v2578 = vadd.f32 %v1460, %v2577
    %2579 = vmatprep.mubr.bf16.mxu0 %v1312
    %2580 = vmatmul.mubr.bf16.gmra.mrb[0].mxu0 %v1311
    %v2581 = vpop.f32.mrb[0].mxu0
    %v2582 = vadd.f32 %v1456, %v2581
    %v2583 = vpop.f32.mrb[0].mxu0
    %v2584 = vadd.f32 %v1460, %v2583
    %v2585 = vpop.f32.mrb[0].mxu0
    %v2586 = vpop.f32.mrb[0].mxu0
    %2587 = vdwg.mxu0
    %2588 = vmatprep.subr.bf16.mxu0 %v1916
    %2589 = vmatpush1.bf16.msra.mxu0 %v1915
    %2590 = vmatprep.subr.bf16.mxu0 %v1920
    %2591 = vmatpush1.bf16.msra.mxu0 %v1919
    %2592 = vmatprep.subr.bf16.mxu0 %v1924
    %2593 = vmatpush1.bf16.msra.mxu0 %v1923
    %2594 = vmatprep.subr.bf16.mxu0 %v1928
    %2595 = vmatpush1.bf16.msra.mxu0 %v1927
    %2596 = vmatprep.subr.bf16.mxu0 %v1932
    %2597 = vmatpush1.bf16.msra.mxu0 %v1931
    %2598 = vmatprep.subr.bf16.mxu0 %v1936
    %2599 = vmatpush1.bf16.msra.mxu0 %v1935
    %2600 = vmatprep.subr.bf16.mxu0 %v1940
    %2601 = vmatpush1.bf16.msra.mxu0 %v1939
    %2602 = vmatprep.subr.bf16.mxu0 %v1944
    %2603 = vmatpush1.bf16.msra.mxu0 %v1943
    %2604 = vmatprep.subr.bf16.mxu0 %v1948
    %2605 = vmatpush1.bf16.msra.mxu0 %v1947
    %2606 = vmatprep.subr.bf16.mxu0 %v1952
    %2607 = vmatpush1.bf16.msra.mxu0 %v1951
    %2608 = vmatprep.subr.bf16.mxu0 %v1956
    %2609 = vmatpush1.bf16.msra.mxu0 %v1955
    %2610 = vmatprep.subr.bf16.mxu0 %v1960
    %2611 = vmatpush1.bf16.msra.mxu0 %v1959
    %2612 = vmatprep.subr.bf16.mxu0 %v1964
    %2613 = vmatpush1.bf16.msra.mxu0 %v1963
    %2614 = vmatprep.subr.bf16.mxu0 %v1968
    %2615 = vmatpush1.bf16.msra.mxu0 %v1967
    %2616 = vmatprep.subr.bf16.mxu0 %v1972
    %2617 = vmatpush1.bf16.msra.mxu0 %v1971
    %2618 = vmatprep.subr.bf16.mxu0 %v1976
    %2619 = vmatpush1.bf16.msra.mxu0 %v1975
    %2620 = vmatprep.mubr.bf16.mxu0 %v1266
    %2621 = vmatmul.mubr.bf16.gmra.mrb[0].mxu0 %v1265
    %v2622 = vpop.f32.mrb[0].mxu0
    %v2623 = vadd.f32 %v2462, %v2622
    %v2624 = vpop.f32.mrb[0].mxu0
    %v2625 = vadd.f32 %v2464, %v2624
    %v2626 = vpop.f32.mrb[0].mxu0
    %v2627 = vadd.f32 %v2466, %v2626
    %v2628 = vpop.f32.mrb[0].mxu0
    %v2629 = vadd.f32 %v2468, %v2628
    %2630 = vmatprep.mubr.bf16.mxu0 %v1270
    %2631 = vmatmul.mubr.bf16.gmra.mrb[0].mxu0 %v1269
    %v2632 = vpop.f32.mrb[0].mxu0
    %v2633 = vadd.f32 %v2472, %v2632
    %v2634 = vpop.f32.mrb[0].mxu0
    %v2635 = vadd.f32 %v2474, %v2634
    %v2636 = vpop.f32.mrb[0].mxu0
    %v2637 = vadd.f32 %v2476, %v2636
    %v2638 = vpop.f32.mrb[0].mxu0
    %v2639 = vadd.f32 %v2478, %v2638
    %2640 = vmatprep.mubr.bf16.mxu0 %v1274
    %2641 = vmatmul.mubr.bf16.gmra.mrb[0].mxu0 %v1273
    %v2642 = vpop.f32.mrb[0].mxu0
    %v2643 = vadd.f32 %v2482, %v2642
    %v2644 = vpop.f32.mrb[0].mxu0
    %v2645 = vadd.f32 %v2484, %v2644
    %v2646 = vpop.f32.mrb[0].mxu0
    %v2647 = vadd.f32 %v2486, %v2646
    %v2648 = vpop.f32.mrb[0].mxu0
    %v2649 = vadd.f32 %v2488, %v2648
    %2650 = vmatprep.mubr.bf16.mxu0 %v1278
    %2651 = vmatmul.mubr.bf16.gmra.mrb[0].mxu0 %v1277
    %v2652 = vpop.f32.mrb[0].mxu0
    %v2653 = vadd.f32 %v2492, %v2652
    %v2654 = vpop.f32.mrb[0].mxu0
    %v2655 = vadd.f32 %v2494, %v2654
    %v2656 = vpop.f32.mrb[0].mxu0
    %v2657 = vadd.f32 %v2496, %v2656
    %v2658 = vpop.f32.mrb[0].mxu0
    %v2659 = vadd.f32 %v2498, %v2658
    %2660 = vmatprep.mubr.bf16.mxu0 %v1282
    %2661 = vmatmul.mubr.bf16.gmra.mrb[0].mxu0 %v1281
    %v2662 = vpop.f32.mrb[0].mxu0
    %v2663 = vadd.f32 %v2502, %v2662
    %v2664 = vpop.f32.mrb[0].mxu0
    %v2665 = vadd.f32 %v2504, %v2664
    %v2666 = vpop.f32.mrb[0].mxu0
    %v2667 = vadd.f32 %v2506, %v2666
    %v2668 = vpop.f32.mrb[0].mxu0
    %v2669 = vadd.f32 %v2508, %v2668
    %2670 = vmatprep.mubr.bf16.mxu0 %v1286
    %2671 = vmatmul.mubr.bf16.gmra.mrb[0].mxu0 %v1285
    %v2672 = vpop.f32.mrb[0].mxu0
    %v2673 = vadd.f32 %v2512, %v2672
    %v2674 = vpop.f32.mrb[0].mxu0
    %v2675 = vadd.f32 %v2514, %v2674
    %v2676 = vpop.f32.mrb[0].mxu0
    %v2677 = vadd.f32 %v2516, %v2676
    %v2678 = vpop.f32.mrb[0].mxu0
    %v2679 = vadd.f32 %v2518, %v2678
    %2680 = vmatprep.mubr.bf16.mxu0 %v1290
    %2681 = vmatmul.mubr.bf16.gmra.mrb[0].mxu0 %v1289
    %v2682 = vpop.f32.mrb[0].mxu0
    %v2683 = vadd.f32 %v2522, %v2682
    %v2684 = vpop.f32.mrb[0].mxu0
    %v2685 = vadd.f32 %v2524, %v2684
    %v2686 = vpop.f32.mrb[0].mxu0
    %v2687 = vadd.f32 %v2526, %v2686
    %v2688 = vpop.f32.mrb[0].mxu0
    %v2689 = vadd.f32 %v2528, %v2688
    %2690 = vmatprep.mubr.bf16.mxu0 %v1294
    %2691 = vmatmul.mubr.bf16.gmra.mrb[0].mxu0 %v1293
    %v2692 = vpop.f32.mrb[0].mxu0
    %v2693 = vadd.f32 %v2532, %v2692
    %v2694 = vpop.f32.mrb[0].mxu0
    %v2695 = vadd.f32 %v2534, %v2694
    %v2696 = vpop.f32.mrb[0].mxu0
    %v2697 = vadd.f32 %v2536, %v2696
    %v2698 = vpop.f32.mrb[0].mxu0
    %v2699 = vadd.f32 %v2538, %v2698
    %2700 = vmatprep.mubr.bf16.mxu0 %v1298
    %2701 = vmatmul.mubr.bf16.gmra.mrb[0].mxu0 %v1297
    %v2702 = vpop.f32.mrb[0].mxu0
    %v2703 = vadd.f32 %v2542, %v2702
    %v2704 = vpop.f32.mrb[0].mxu0
    %v2705 = vadd.f32 %v2544, %v2704
    %v2706 = vpop.f32.mrb[0].mxu0
    %v2707 = vadd.f32 %v2546, %v2706
    %v2708 = vpop.f32.mrb[0].mxu0
    %v2709 = vadd.f32 %v2548, %v2708
    %2710 = vmatprep.mubr.bf16.mxu0 %v1302
    %2711 = vmatmul.mubr.bf16.gmra.mrb[0].mxu0 %v1301
    %v2712 = vpop.f32.mrb[0].mxu0
    %v2713 = vadd.f32 %v2552, %v2712
    %v2714 = vpop.f32.mrb[0].mxu0
    %v2715 = vadd.f32 %v2554, %v2714
    %v2716 = vpop.f32.mrb[0].mxu0
    %v2717 = vadd.f32 %v2556, %v2716
    %v2718 = vpop.f32.mrb[0].mxu0
    %v2719 = vadd.f32 %v2558, %v2718
    %2720 = vmatprep.mubr.bf16.mxu0 %v1306
    %2721 = vmatmul.mubr.bf16.gmra.mrb[0].mxu0 %v1305
    %v2722 = vpop.f32.mrb[0].mxu0
    %v2723 = vadd.f32 %v2562, %v2722
    %v2724 = vpop.f32.mrb[0].mxu0
    %v2725 = vadd.f32 %v2564, %v2724
    %v2726 = vpop.f32.mrb[0].mxu0
    %v2727 = vadd.f32 %v2566, %v2726
    %v2728 = vpop.f32.mrb[0].mxu0
    %v2729 = vadd.f32 %v2568, %v2728
    %2730 = vmatprep.mubr.bf16.mxu0 %v1310
    %2731 = vmatmul.mubr.bf16.gmra.mrb[0].mxu0 %v1309
    %v2732 = vpop.f32.mrb[0].mxu0
    %v2733 = vadd.f32 %v2572, %v2732
    %v2734 = vpop.f32.mrb[0].mxu0
    %v2735 = vadd.f32 %v2574, %v2734
    %v2736 = vpop.f32.mrb[0].mxu0
    %v2737 = vadd.f32 %v2576, %v2736
    %v2738 = vpop.f32.mrb[0].mxu0
    %v2739 = vadd.f32 %v2578, %v2738
    %2740 = vmatprep.mubr.bf16.mxu0 %v1314
    %2741 = vmatmul.mubr.bf16.gmra.mrb[0].mxu0 %v1313
    %v2742 = vpop.f32.mrb[0].mxu0
    %v2743 = vadd.f32 %v2582, %v2742
    %v2744 = vpop.f32.mrb[0].mxu0
    %v2745 = vadd.f32 %v2584, %v2744
    %v2746 = vpop.f32.mrb[0].mxu0
    %v2747 = vpop.f32.mrb[0].mxu0
    %2748 = vdwg.mxu0
    %vm2749 = vcmp.gt.f32.partialorder %v2301, 0.0
    %vm2750 = vcmp.gt.f32.partialorder %v2303, 0.0
    %vm2751 = vcmp.gt.f32.partialorder %v2623, 0.0
    %vm2752 = vcmp.gt.f32.partialorder %v2625, 0.0
    %vm2753 = vcmp.gt.f32.partialorder %v2305, 0.0
    %vm2754 = vcmp.gt.f32.partialorder %v2307, 0.0
    %vm2755 = vcmp.gt.f32.partialorder %v2627, 0.0
    %vm2756 = vcmp.gt.f32.partialorder %v2629, 0.0
    %vm2757 = vcmp.gt.f32.partialorder %v2311, 0.0
    %vm2758 = vcmp.gt.f32.partialorder %v2313, 0.0
    %vm2759 = vcmp.gt.f32.partialorder %v2633, 0.0
    %vm2760 = vcmp.gt.f32.partialorder %v2635, 0.0
    %vm2761 = vcmp.gt.f32.partialorder %v2315, 0.0
    %vm2762 = vcmp.gt.f32.partialorder %v2317, 0.0
    %vm2763 = vcmp.gt.f32.partialorder %v2637, 0.0
    %vm2764 = vcmp.gt.f32.partialorder %v2639, 0.0
    %vm2765 = vcmp.gt.f32.partialorder %v2321, 0.0
    %vm2766 = vcmp.gt.f32.partialorder %v2323, 0.0
    %vm2767 = vcmp.gt.f32.partialorder %v2643, 0.0
    %vm2768 = vcmp.gt.f32.partialorder %v2645, 0.0
    %vm2769 = vcmp.gt.f32.partialorder %v2325, 0.0
    %vm2770 = vcmp.gt.f32.partialorder %v2327, 0.0
    %vm2771 = vcmp.gt.f32.partialorder %v2647, 0.0
    %vm2772 = vcmp.gt.f32.partialorder %v2649, 0.0
    %vm2773 = vcmp.gt.f32.partialorder %v2331, 0.0
    %vm2774 = vcmp.gt.f32.partialorder %v2333, 0.0
    %vm2775 = vcmp.gt.f32.partialorder %v2653, 0.0
    %vm2776 = vcmp.gt.f32.partialorder %v2655, 0.0
    %vm2777 = vcmp.gt.f32.partialorder %v2335, 0.0
    %vm2778 = vcmp.gt.f32.partialorder %v2337, 0.0
    %vm2779 = vcmp.gt.f32.partialorder %v2657, 0.0
    %vm2780 = vcmp.gt.f32.partialorder %v2659, 0.0
    %vm2781 = vcmp.gt.f32.partialorder %v2341, 0.0
    %vm2782 = vcmp.gt.f32.partialorder %v2343, 0.0
    %vm2783 = vcmp.gt.f32.partialorder %v2663, 0.0
    %vm2784 = vcmp.gt.f32.partialorder %v2665, 0.0
    %vm2785 = vcmp.gt.f32.partialorder %v2345, 0.0
    %vm2786 = vcmp.gt.f32.partialorder %v2347, 0.0
    %vm2787 = vcmp.gt.f32.partialorder %v2667, 0.0
    %vm2788 = vcmp.gt.f32.partialorder %v2669, 0.0
    %vm2789 = vcmp.gt.f32.partialorder %v2351, 0.0
    %vm2790 = vcmp.gt.f32.partialorder %v2353, 0.0
    %vm2791 = vcmp.gt.f32.partialorder %v2673, 0.0
    %vm2792 = vcmp.gt.f32.partialorder %v2675, 0.0
    %vm2793 = vcmp.gt.f32.partialorder %v2355, 0.0
    %vm2794 = vcmp.gt.f32.partialorder %v2357, 0.0
    %vm2795 = vcmp.gt.f32.partialorder %v2677, 0.0
    %vm2796 = vcmp.gt.f32.partialorder %v2679, 0.0
    %vm2797 = vcmp.gt.f32.partialorder %v2361, 0.0
    %vm2798 = vcmp.gt.f32.partialorder %v2363, 0.0
    %vm2799 = vcmp.gt.f32.partialorder %v2683, 0.0
    %vm2800 = vcmp.gt.f32.partialorder %v2685, 0.0
    %vm2801 = vcmp.gt.f32.partialorder %v2365, 0.0
    %vm2802 = vcmp.gt.f32.partialorder %v2367, 0.0
    %vm2803 = vcmp.gt.f32.partialorder %v2687, 0.0
    %vm2804 = vcmp.gt.f32.partialorder %v2689, 0.0
    %vm2805 = vcmp.gt.f32.partialorder %v2371, 0.0
    %vm2806 = vcmp.gt.f32.partialorder %v2373, 0.0
    %vm2807 = vcmp.gt.f32.partialorder %v2693, 0.0
    %vm2808 = vcmp.gt.f32.partialorder %v2695, 0.0
    %vm2809 = vcmp.gt.f32.partialorder %v2375, 0.0
    %vm2810 = vcmp.gt.f32.partialorder %v2377, 0.0
    %vm2811 = vcmp.gt.f32.partialorder %v2697, 0.0
    %vm2812 = vcmp.gt.f32.partialorder %v2699, 0.0
    %vm2813 = vcmp.gt.f32.partialorder %v2381, 0.0
    %vm2814 = vcmp.gt.f32.partialorder %v2383, 0.0
    %vm2815 = vcmp.gt.f32.partialorder %v2703, 0.0
    %vm2816 = vcmp.gt.f32.partialorder %v2705, 0.0
    %vm2817 = vcmp.gt.f32.partialorder %v2385, 0.0
    %vm2818 = vcmp.gt.f32.partialorder %v2387, 0.0
    %vm2819 = vcmp.gt.f32.partialorder %v2707, 0.0
    %vm2820 = vcmp.gt.f32.partialorder %v2709, 0.0
    %vm2821 = vcmp.gt.f32.partialorder %v2391, 0.0
    %vm2822 = vcmp.gt.f32.partialorder %v2393, 0.0
    %vm2823 = vcmp.gt.f32.partialorder %v2713, 0.0
    %vm2824 = vcmp.gt.f32.partialorder %v2715, 0.0
    %vm2825 = vcmp.gt.f32.partialorder %v2395, 0.0
    %vm2826 = vcmp.gt.f32.partialorder %v2397, 0.0
    %vm2827 = vcmp.gt.f32.partialorder %v2717, 0.0
    %vm2828 = vcmp.gt.f32.partialorder %v2719, 0.0
    %vm2829 = vcmp.gt.f32.partialorder %v2401, 0.0
    %vm2830 = vcmp.gt.f32.partialorder %v2403, 0.0
    %vm2831 = vcmp.gt.f32.partialorder %v2723, 0.0
    %vm2832 = vcmp.gt.f32.partialorder %v2725, 0.0
    %vm2833 = vcmp.gt.f32.partialorder %v2405, 0.0
    %vm2834 = vcmp.gt.f32.partialorder %v2407, 0.0
    %vm2835 = vcmp.gt.f32.partialorder %v2727, 0.0
    %vm2836 = vcmp.gt.f32.partialorder %v2729, 0.0
    %vm2837 = vcmp.gt.f32.partialorder %v2411, 0.0
    %vm2838 = vcmp.gt.f32.partialorder %v2413, 0.0
    %vm2839 = vcmp.gt.f32.partialorder %v2733, 0.0
    %vm2840 = vcmp.gt.f32.partialorder %v2735, 0.0
    %vm2841 = vcmp.gt.f32.partialorder %v2415, 0.0
    %vm2842 = vcmp.gt.f32.partialorder %v2417, 0.0
    %vm2843 = vcmp.gt.f32.partialorder %v2737, 0.0
    %vm2844 = vcmp.gt.f32.partialorder %v2739, 0.0
    %vm2845 = vcmp.gt.f32.partialorder %v2421, 0.0
    %vm2846 = vcmp.gt.f32.partialorder %v2423, 0.0
    %vm2847 = vcmp.gt.f32.partialorder %v2743, 0.0
    %vm2848 = vcmp.gt.f32.partialorder %v2745, 0.0
    %v2849 = vmul.f32 %v2301, 0.2
    %v2850 = vmul.f32 %v2303, 0.2
    %v2851 = vmul.f32 %v2623, 0.2
    %v2852 = vmul.f32 %v2625, 0.2
    %v2853 = vmul.f32 %v2305, 0.2
    %v2854 = vmul.f32 %v2307, 0.2
    %v2855 = vmul.f32 %v2627, 0.2
    %v2856 = vmul.f32 %v2629, 0.2
    %v2857 = vmul.f32 %v2311, 0.2
    %v2858 = vmul.f32 %v2313, 0.2
    %v2859 = vmul.f32 %v2633, 0.2
    %v2860 = vmul.f32 %v2635, 0.2
    %v2861 = vmul.f32 %v2315, 0.2
    %v2862 = vmul.f32 %v2317, 0.2
    %v2863 = vmul.f32 %v2637, 0.2
    %v2864 = vmul.f32 %v2639, 0.2
    %v2865 = vmul.f32 %v2321, 0.2
    %v2866 = vmul.f32 %v2323, 0.2
    %v2867 = vmul.f32 %v2643, 0.2
    %v2868 = vmul.f32 %v2645, 0.2
    %v2869 = vmul.f32 %v2325, 0.2
    %v2870 = vmul.f32 %v2327, 0.2
    %v2871 = vmul.f32 %v2647, 0.2
    %v2872 = vmul.f32 %v2649, 0.2
    %v2873 = vmul.f32 %v2331, 0.2
    %v2874 = vmul.f32 %v2333, 0.2
    %v2875 = vmul.f32 %v2653, 0.2
    %v2876 = vmul.f32 %v2655, 0.2
    %v2877 = vmul.f32 %v2335, 0.2
    %v2878 = vmul.f32 %v2337, 0.2
    %v2879 = vmul.f32 %v2657, 0.2
    %v2880 = vmul.f32 %v2659, 0.2
    %v2881 = vmul.f32 %v2341, 0.2
    %v2882 = vmul.f32 %v2343, 0.2
    %v2883 = vmul.f32 %v2663, 0.2
    %v2884 = vmul.f32 %v2665, 0.2
    %v2885 = vmul.f32 %v2345, 0.2
    %v2886 = vmul.f32 %v2347, 0.2
    %v2887 = vmul.f32 %v2667, 0.2
    %v2888 = vmul.f32 %v2669, 0.2
    %v2889 = vmul.f32 %v2351, 0.2
    %v2890 = vmul.f32 %v2353, 0.2
    %v2891 = vmul.f32 %v2673, 0.2
    %v2892 = vmul.f32 %v2675, 0.2
    %v2893 = vmul.f32 %v2355, 0.2
    %v2894 = vmul.f32 %v2357, 0.2
    %v2895 = vmul.f32 %v2677, 0.2
    %v2896 = vmul.f32 %v2679, 0.2
    %v2897 = vmul.f32 %v2361, 0.2
    %v2898 = vmul.f32 %v2363, 0.2
    %v2899 = vmul.f32 %v2683, 0.2
    %v2900 = vmul.f32 %v2685, 0.2
    %v2901 = vmul.f32 %v2365, 0.2
    %v2902 = vmul.f32 %v2367, 0.2
    %v2903 = vmul.f32 %v2687, 0.2
    %v2904 = vmul.f32 %v2689, 0.2
    %v2905 = vmul.f32 %v2371, 0.2
    %v2906 = vmul.f32 %v2373, 0.2
    %v2907 = vmul.f32 %v2693, 0.2
    %v2908 = vmul.f32 %v2695, 0.2
    %v2909 = vmul.f32 %v2375, 0.2
    %v2910 = vmul.f32 %v2377, 0.2
    %v2911 = vmul.f32 %v2697, 0.2
    %v2912 = vmul.f32 %v2699, 0.2
    %v2913 = vmul.f32 %v2381, 0.2
    %v2914 = vmul.f32 %v2383, 0.2
    %v2915 = vmul.f32 %v2703, 0.2
    %v2916 = vmul.f32 %v2705, 0.2
    %v2917 = vmul.f32 %v2385, 0.2
    %v2918 = vmul.f32 %v2387, 0.2
    %v2919 = vmul.f32 %v2707, 0.2
    %v2920 = vmul.f32 %v2709, 0.2
    %v2921 = vmul.f32 %v2391, 0.2
    %v2922 = vmul.f32 %v2393, 0.2
    %v2923 = vmul.f32 %v2713, 0.2
    %v2924 = vmul.f32 %v2715, 0.2
    %v2925 = vmul.f32 %v2395, 0.2
    %v2926 = vmul.f32 %v2397, 0.2
    %v2927 = vmul.f32 %v2717, 0.2
    %v2928 = vmul.f32 %v2719, 0.2
    %v2929 = vmul.f32 %v2401, 0.2
    %v2930 = vmul.f32 %v2403, 0.2
    %v2931 = vmul.f32 %v2723, 0.2
    %v2932 = vmul.f32 %v2725, 0.2
    %v2933 = vmul.f32 %v2405, 0.2
    %v2934 = vmul.f32 %v2407, 0.2
    %v2935 = vmul.f32 %v2727, 0.2
    %v2936 = vmul.f32 %v2729, 0.2
    %v2937 = vmul.f32 %v2411, 0.2
    %v2938 = vmul.f32 %v2413, 0.2
    %v2939 = vmul.f32 %v2733, 0.2
    %v2940 = vmul.f32 %v2735, 0.2
    %v2941 = vmul.f32 %v2415, 0.2
    %v2942 = vmul.f32 %v2417, 0.2
    %v2943 = vmul.f32 %v2737, 0.2
    %v2944 = vmul.f32 %v2739, 0.2
    %v2945 = vmul.f32 %v2421, 0.2
    %v2946 = vmul.f32 %v2423, 0.2
    %v2947 = vmul.f32 %v2743, 0.2
    %v2948 = vmul.f32 %v2745, 0.2
    %v2949 = vsel %vm2749, %v2301, %v2849
    %v2950 = vsel %vm2750, %v2303, %v2850
    %v2951 = vsel %vm2751, %v2623, %v2851
    %v2952 = vsel %vm2752, %v2625, %v2852
    %v2953 = vsel %vm2753, %v2305, %v2853
    %v2954 = vsel %vm2754, %v2307, %v2854
    %v2955 = vsel %vm2755, %v2627, %v2855
    %v2956 = vsel %vm2756, %v2629, %v2856
    %v2957 = vsel %vm2757, %v2311, %v2857
    %v2958 = vsel %vm2758, %v2313, %v2858
    %v2959 = vsel %vm2759, %v2633, %v2859
    %v2960 = vsel %vm2760, %v2635, %v2860
    %v2961 = vsel %vm2761, %v2315, %v2861
    %v2962 = vsel %vm2762, %v2317, %v2862
    %v2963 = vsel %vm2763, %v2637, %v2863
    %v2964 = vsel %vm2764, %v2639, %v2864
    %v2965 = vsel %vm2765, %v2321, %v2865
    %v2966 = vsel %vm2766, %v2323, %v2866
    %v2967 = vsel %vm2767, %v2643, %v2867
    %v2968 = vsel %vm2768, %v2645, %v2868
    %v2969 = vsel %vm2769, %v2325, %v2869
    %v2970 = vsel %vm2770, %v2327, %v2870
    %v2971 = vsel %vm2771, %v2647, %v2871
    %v2972 = vsel %vm2772, %v2649, %v2872
    %v2973 = vsel %vm2773, %v2331, %v2873
    %v2974 = vsel %vm2774, %v2333, %v2874
    %v2975 = vsel %vm2775, %v2653, %v2875
    %v2976 = vsel %vm2776, %v2655, %v2876
    %v2977 = vsel %vm2777, %v2335, %v2877
    %v2978 = vsel %vm2778, %v2337, %v2878
    %v2979 = vsel %vm2779, %v2657, %v2879
    %v2980 = vsel %vm2780, %v2659, %v2880
    %v2981 = vsel %vm2781, %v2341, %v2881
    %v2982 = vsel %vm2782, %v2343, %v2882
    %v2983 = vsel %vm2783, %v2663, %v2883
    %v2984 = vsel %vm2784, %v2665, %v2884
    %v2985 = vsel %vm2785, %v2345, %v2885
    %v2986 = vsel %vm2786, %v2347, %v2886
    %v2987 = vsel %vm2787, %v2667, %v2887
    %v2988 = vsel %vm2788, %v2669, %v2888
    %v2989 = vsel %vm2789, %v2351, %v2889
    %v2990 = vsel %vm2790, %v2353, %v2890
    %v2991 = vsel %vm2791, %v2673, %v2891
    %v2992 = vsel %vm2792, %v2675, %v2892
    %v2993 = vsel %vm2793, %v2355, %v2893
    %v2994 = vsel %vm2794, %v2357, %v2894
    %v2995 = vsel %vm2795, %v2677, %v2895
    %v2996 = vsel %vm2796, %v2679, %v2896
    %v2997 = vsel %vm2797, %v2361, %v2897
    %v2998 = vsel %vm2798, %v2363, %v2898
    %v2999 = vsel %vm2799, %v2683, %v2899
    %v3000 = vsel %vm2800, %v2685, %v2900
    %v3001 = vsel %vm2801, %v2365, %v2901
    %v3002 = vsel %vm2802, %v2367, %v2902
    %v3003 = vsel %vm2803, %v2687, %v2903
    %v3004 = vsel %vm2804, %v2689, %v2904
    %v3005 = vsel %vm2805, %v2371, %v2905
    %v3006 = vsel %vm2806, %v2373, %v2906
    %v3007 = vsel %vm2807, %v2693, %v2907
    %v3008 = vsel %vm2808, %v2695, %v2908
    %v3009 = vsel %vm2809, %v2375, %v2909
    %v3010 = vsel %vm2810, %v2377, %v2910
    %v3011 = vsel %vm2811, %v2697, %v2911
    %v3012 = vsel %vm2812, %v2699, %v2912
    %v3013 = vsel %vm2813, %v2381, %v2913
    %v3014 = vsel %vm2814, %v2383, %v2914
    %v3015 = vsel %vm2815, %v2703, %v2915
    %v3016 = vsel %vm2816, %v2705, %v2916
    %v3017 = vsel %vm2817, %v2385, %v2917
    %v3018 = vsel %vm2818, %v2387, %v2918
    %v3019 = vsel %vm2819, %v2707, %v2919
    %v3020 = vsel %vm2820, %v2709, %v2920
    %v3021 = vsel %vm2821, %v2391, %v2921
    %v3022 = vsel %vm2822, %v2393, %v2922
    %v3023 = vsel %vm2823, %v2713, %v2923
    %v3024 = vsel %vm2824, %v2715, %v2924
    %v3025 = vsel %vm2825, %v2395, %v2925
    %v3026 = vsel %vm2826, %v2397, %v2926
    %v3027 = vsel %vm2827, %v2717, %v2927
    %v3028 = vsel %vm2828, %v2719, %v2928
    %v3029 = vsel %vm2829, %v2401, %v2929
    %v3030 = vsel %vm2830, %v2403, %v2930
    %v3031 = vsel %vm2831, %v2723, %v2931
    %v3032 = vsel %vm2832, %v2725, %v2932
    %v3033 = vsel %vm2833, %v2405, %v2933
    %v3034 = vsel %vm2834, %v2407, %v2934
    %v3035 = vsel %vm2835, %v2727, %v2935
    %v3036 = vsel %vm2836, %v2729, %v2936
    %v3037 = vsel %vm2837, %v2411, %v2937
    %v3038 = vsel %vm2838, %v2413, %v2938
    %v3039 = vsel %vm2839, %v2733, %v2939
    %v3040 = vsel %vm2840, %v2735, %v2940
    %v3041 = vsel %vm2841, %v2415, %v2941
    %v3042 = vsel %vm2842, %v2417, %v2942
    %v3043 = vsel %vm2843, %v2737, %v2943
    %v3044 = vsel %vm2844, %v2739, %v2944
    %v3045 = vsel %vm2845, %v2421, %v2945
    %v3046 = vsel %vm2846, %v2423, %v2946
    %v3047 = vsel %vm2847, %v2743, %v2947
    %v3048 = vsel %vm2848, %v2745, %v2948
    %v3049 = vpack.c.bf16 %v2953, %v2949
    %v3050 = vpack.c.bf16 %v2954, %v2950
    %v3051 = vpack.c.bf16 %v2955, %v2951
    %v3052 = vpack.c.bf16 %v2956, %v2952
    %v3053 = vpack.c.bf16 %v2961, %v2957
    %v3054 = vpack.c.bf16 %v2962, %v2958
    %v3055 = vpack.c.bf16 %v2963, %v2959
    %v3056 = vpack.c.bf16 %v2964, %v2960
    %v3057 = vpack.c.bf16 %v2969, %v2965
    %v3058 = vpack.c.bf16 %v2970, %v2966
    %v3059 = vpack.c.bf16 %v2971, %v2967
    %v3060 = vpack.c.bf16 %v2972, %v2968
    %v3061 = vpack.c.bf16 %v2977, %v2973
    %v3062 = vpack.c.bf16 %v2978, %v2974
    %v3063 = vpack.c.bf16 %v2979, %v2975
    %v3064 = vpack.c.bf16 %v2980, %v2976
    %v3065 = vpack.c.bf16 %v2985, %v2981
    %v3066 = vpack.c.bf16 %v2986, %v2982
    %v3067 = vpack.c.bf16 %v2987, %v2983
    %v3068 = vpack.c.bf16 %v2988, %v2984
    %v3069 = vpack.c.bf16 %v2993, %v2989
    %v3070 = vpack.c.bf16 %v2994, %v2990
    %v3071 = vpack.c.bf16 %v2995, %v2991
    %v3072 = vpack.c.bf16 %v2996, %v2992
    %v3073 = vpack.c.bf16 %v3001, %v2997
    %v3074 = vpack.c.bf16 %v3002, %v2998
    %v3075 = vpack.c.bf16 %v3003, %v2999
    %v3076 = vpack.c.bf16 %v3004, %v3000
    %v3077 = vpack.c.bf16 %v3009, %v3005
    %v3078 = vpack.c.bf16 %v3010, %v3006
    %v3079 = vpack.c.bf16 %v3011, %v3007
    %v3080 = vpack.c.bf16 %v3012, %v3008
    %v3081 = vpack.c.bf16 %v3017, %v3013
    %v3082 = vpack.c.bf16 %v3018, %v3014
    %v3083 = vpack.c.bf16 %v3019, %v3015
    %v3084 = vpack.c.bf16 %v3020, %v3016
    %v3085 = vpack.c.bf16 %v3025, %v3021
    %v3086 = vpack.c.bf16 %v3026, %v3022
    %v3087 = vpack.c.bf16 %v3027, %v3023
    %v3088 = vpack.c.bf16 %v3028, %v3024
    %v3089 = vpack.c.bf16 %v3033, %v3029
    %v3090 = vpack.c.bf16 %v3034, %v3030
    %v3091 = vpack.c.bf16 %v3035, %v3031
    %v3092 = vpack.c.bf16 %v3036, %v3032
    %v3093 = vpack.c.bf16 %v3041, %v3037
    %v3094 = vpack.c.bf16 %v3042, %v3038
    %v3095 = vpack.c.bf16 %v3043, %v3039
    %v3096 = vpack.c.bf16 %v3044, %v3040
    %v3097 = vpack.c.bf16 %v3045, %v3045
    %v3098 = vpack.c.bf16 %v3046, %v3046
    %v3099 = vpack.c.bf16 %v3047, %v3047
    %v3100 = vpack.c.bf16 %v3048, %v3048
    %v3101 = vld [vmem:[#allocation8] sm:$0xf]
    %v3102 = vld [vmem:[#allocation8 + $0x4] sm:$0xf]
    %v3103 = vld [vmem:[#allocation8 + $0x8] sm:$0xf]
    %v3104 = vld [vmem:[#allocation8 + $0xc] sm:$0xf]
    %v3105 = vld [vmem:[#allocation8 + $0x10] sm:$0xf]
    %v3106 = vld [vmem:[#allocation8 + $0x14] sm:$0xf]
    %v3107 = vld [vmem:[#allocation8 + $0x18] sm:$0xf]
    %v3108 = vld [vmem:[#allocation8 + $0x1c] sm:$0xf]
    %v3109 = vld [vmem:[#allocation8 + $0x20] sm:$0xf]
    %v3110 = vld [vmem:[#allocation8 + $0x24] sm:$0xf]
    %v3111 = vld [vmem:[#allocation8 + $0x28] sm:$0xf]
    %v3112 = vld [vmem:[#allocation8 + $0x2c] sm:$0xf]
    %v3113 = vld [vmem:[#allocation8 + $0x30] sm:$0xf]
    %v3114 = vld [vmem:[#allocation8 + $0x34] sm:$0xf]
    %v3115 = vld [vmem:[#allocation8 + $0x38] sm:$0xf]
    %v3116 = vld [vmem:[#allocation8 + $0x3c] sm:$0xf]
    %v3117 = vld [vmem:[#allocation8 + $0x40] sm:$0xf]
    %v3118 = vld [vmem:[#allocation8 + $0x44] sm:$0xf]
    %v3119 = vld [vmem:[#allocation8 + $0x48] sm:$0xf]
    %v3120 = vld [vmem:[#allocation8 + $0x4c] sm:$0xf]
    %v3121 = vld [vmem:[#allocation8 + $0x50] sm:$0xf]
    %v3122 = vld [vmem:[#allocation8 + $0x54] sm:$0xf]
    %v3123 = vld [vmem:[#allocation8 + $0x58] sm:$0xf]
    %v3124 = vld [vmem:[#allocation8 + $0x5c] sm:$0xf]
    %v3125 = vld [vmem:[#allocation8 + $0x60] sm:$0xf]
    %v3126 = vld [vmem:[#allocation8 + $0x64] sm:$0xf]
    %v3127 = vld [vmem:[#allocation8 + $0x68] sm:$0xf]
    %v3128 = vld [vmem:[#allocation8 + $0x6c] sm:$0xf]
    %v3129 = vld [vmem:[#allocation8 + $0x70] sm:$0xf]
    %v3130 = vld [vmem:[#allocation8 + $0x74] sm:$0xf]
    %v3131 = vld [vmem:[#allocation8 + $0x78] sm:$0xf]
    %v3132 = vld [vmem:[#allocation8 + $0x7c] sm:$0xf]
    %v3133 = vld [vmem:[#allocation8 + $0x80] sm:$0xf]
    %v3134 = vld [vmem:[#allocation8 + $0x84] sm:$0xf]
    %v3135 = vld [vmem:[#allocation8 + $0x88] sm:$0xf]
    %v3136 = vld [vmem:[#allocation8 + $0x8c] sm:$0xf]
    %v3137 = vld [vmem:[#allocation8 + $0x90] sm:$0xf]
    %v3138 = vld [vmem:[#allocation8 + $0x94] sm:$0xf]
    %v3139 = vld [vmem:[#allocation8 + $0x98] sm:$0xf]
    %v3140 = vld [vmem:[#allocation8 + $0x9c] sm:$0xf]
    %v3141 = vld [vmem:[#allocation8 + $0xa0] sm:$0xf]
    %v3142 = vld [vmem:[#allocation8 + $0xa4] sm:$0xf]
    %v3143 = vld [vmem:[#allocation8 + $0xa8] sm:$0xf]
    %v3144 = vld [vmem:[#allocation8 + $0xac] sm:$0xf]
    %v3145 = vld [vmem:[#allocation8 + $0xb0] sm:$0xf]
    %v3146 = vld [vmem:[#allocation8 + $0xb4] sm:$0xf]
    %v3147 = vld [vmem:[#allocation8 + $0xb8] sm:$0xf]
    %v3148 = vld [vmem:[#allocation8 + $0xbc] sm:$0xf]
    %v3149 = vld [vmem:[#allocation8 + $0xc0] sm:$0xf]
    %v3150 = vld [vmem:[#allocation8 + $0xc4] sm:$0xf]
    %v3151 = vld [vmem:[#allocation8 + $0xc8] sm:$0xf]
    %v3152 = vld [vmem:[#allocation8 + $0xcc] sm:$0xf]
    %v3153 = vld [vmem:[#allocation8 + $0xd0] sm:$0xf]
    %v3154 = vld [vmem:[#allocation8 + $0xd4] sm:$0xf]
    %v3155 = vld [vmem:[#allocation8 + $0xd8] sm:$0xf]
    %v3156 = vld [vmem:[#allocation8 + $0xdc] sm:$0xf]
    %v3157 = vld [vmem:[#allocation8 + $0xe0] sm:$0xf]
    %v3158 = vld [vmem:[#allocation8 + $0xe4] sm:$0xf]
    %v3159 = vld [vmem:[#allocation8 + $0xe8] sm:$0xf]
    %v3160 = vld [vmem:[#allocation8 + $0xec] sm:$0xf]
    %v3161 = vld [vmem:[#allocation8 + $0xf0] sm:$0xf]
    %v3162 = vld [vmem:[#allocation8 + $0xf4] sm:$0xf]
    %v3163 = vld [vmem:[#allocation8 + $0xf8] sm:$0xf]
    %v3164 = vld [vmem:[#allocation8 + $0xfc] sm:$0xf]
    %v3165 = vld [vmem:[%s6] sm:$0x1]
    %v3167 = vlaneseq
    %v3168 = vshrl.u32 %v3167, 7
    %v3169 = vsub.s32 0, %v3168
    %v3170 = vrot.slane %v3165, %v3169
    %v3236 = vunpack.c.l.b16 %v3101
    %v3237 = vunpack.c.l.b16 %v3102
    %v3238 = vunpack.c.l.b16 %v3103
    %v3239 = vunpack.c.l.b16 %v3104
    %v3240 = vunpack.c.l.b16 %v3105
    %v3241 = vunpack.c.l.b16 %v3106
    %v3242 = vunpack.c.l.b16 %v3107
    %v3243 = vunpack.c.l.b16 %v3108
    %v3244 = vunpack.c.l.b16 %v3109
    %v3245 = vunpack.c.l.b16 %v3110
    %v3246 = vunpack.c.l.b16 %v3111
    %v3247 = vunpack.c.l.b16 %v3112
    %v3248 = vunpack.c.l.b16 %v3113
    %v3249 = vunpack.c.l.b16 %v3114
    %v3250 = vunpack.c.l.b16 %v3115
    %v3251 = vunpack.c.l.b16 %v3116
    %v3252 = vunpack.c.l.b16 %v3117
    %v3253 = vunpack.c.l.b16 %v3118
    %v3254 = vunpack.c.l.b16 %v3119
    %v3255 = vunpack.c.l.b16 %v3120
    %v3256 = vunpack.c.l.b16 %v3121
    %v3257 = vunpack.c.l.b16 %v3122
    %v3258 = vunpack.c.l.b16 %v3123
    %v3259 = vunpack.c.l.b16 %v3124
    %v3260 = vunpack.c.l.b16 %v3125
    %v3261 = vunpack.c.l.b16 %v3126
    %v3262 = vunpack.c.l.b16 %v3127
    %v3263 = vunpack.c.l.b16 %v3128
    %v3264 = vunpack.c.l.b16 %v3129
    %v3265 = vunpack.c.l.b16 %v3130
    %v3266 = vunpack.c.l.b16 %v3131
    %v3267 = vunpack.c.l.b16 %v3132
    %v3268 = vunpack.c.l.b16 %v3133
    %v3269 = vunpack.c.l.b16 %v3134
    %v3270 = vunpack.c.l.b16 %v3135
    %v3271 = vunpack.c.l.b16 %v3136
    %v3272 = vunpack.c.l.b16 %v3137
    %v3273 = vunpack.c.l.b16 %v3138
    %v3274 = vunpack.c.l.b16 %v3139
    %v3275 = vunpack.c.l.b16 %v3140
    %v3276 = vunpack.c.l.b16 %v3141
    %v3277 = vunpack.c.l.b16 %v3142
    %v3278 = vunpack.c.l.b16 %v3143
    %v3279 = vunpack.c.l.b16 %v3144
    %v3280 = vunpack.c.l.b16 %v3145
    %v3281 = vunpack.c.l.b16 %v3146
    %v3282 = vunpack.c.l.b16 %v3147
    %v3283 = vunpack.c.l.b16 %v3148
    %v3284 = vunpack.c.l.b16 %v3149
    %v3285 = vunpack.c.l.b16 %v3150
    %v3286 = vunpack.c.l.b16 %v3151
    %v3287 = vunpack.c.l.b16 %v3152
    %v3288 = vunpack.c.l.b16 %v3153
    %v3289 = vunpack.c.l.b16 %v3154
    %v3290 = vunpack.c.l.b16 %v3155
    %v3291 = vunpack.c.l.b16 %v3156
    %v3292 = vunpack.c.l.b16 %v3157
    %v3293 = vunpack.c.l.b16 %v3158
    %v3294 = vunpack.c.l.b16 %v3159
    %v3295 = vunpack.c.l.b16 %v3160
    %v3296 = vunpack.c.l.b16 %v3161
    %v3297 = vunpack.c.l.b16 %v3162
    %v3298 = vunpack.c.l.b16 %v3163
    %v3299 = vunpack.c.l.b16 %v3164
    %v3300 = vpack.c.b16 %v3237, %v3236
    %v3301 = vpack.c.b16 %v3239, %v3238
    %v3302 = vpack.c.b16 %v3241, %v3240
    %v3303 = vpack.c.b16 %v3243, %v3242
    %v3304 = vpack.c.b16 %v3245, %v3244
    %v3305 = vpack.c.b16 %v3247, %v3246
    %v3306 = vpack.c.b16 %v3249, %v3248
    %v3307 = vpack.c.b16 %v3251, %v3250
    %v3308 = vpack.c.b16 %v3253, %v3252
    %v3309 = vpack.c.b16 %v3255, %v3254
    %v3310 = vpack.c.b16 %v3257, %v3256
    %v3311 = vpack.c.b16 %v3259, %v3258
    %v3312 = vpack.c.b16 %v3261, %v3260
    %v3313 = vpack.c.b16 %v3263, %v3262
    %v3314 = vpack.c.b16 %v3265, %v3264
    %v3315 = vpack.c.b16 %v3267, %v3266
    %v3316 = vpack.c.b16 %v3269, %v3268
    %v3317 = vpack.c.b16 %v3271, %v3270
    %v3318 = vpack.c.b16 %v3273, %v3272
    %v3319 = vpack.c.b16 %v3275, %v3274
    %v3320 = vpack.c.b16 %v3277, %v3276
    %v3321 = vpack.c.b16 %v3279, %v3278
    %v3322 = vpack.c.b16 %v3281, %v3280
    %v3323 = vpack.c.b16 %v3283, %v3282
    %v3324 = vpack.c.b16 %v3285, %v3284
    %v3325 = vpack.c.b16 %v3287, %v3286
    %v3326 = vpack.c.b16 %v3289, %v3288
    %v3327 = vpack.c.b16 %v3291, %v3290
    %v3328 = vpack.c.b16 %v3293, %v3292
    %v3329 = vpack.c.b16 %v3295, %v3294
    %v3330 = vpack.c.b16 %v3297, %v3296
    %v3331 = vpack.c.b16 %v3299, %v3298
    %3364 = vmatprep.subr.bf16.mxu0 0
    %3365 = vmatpush1.bf16.msra.mxu0 %v3300
    %3366 = vmatprep.subr.bf16.mxu0 0
    %3367 = vmatpush1.bf16.msra.mxu0 %v3301
    %3368 = vmatprep.subr.bf16.mxu0 0
    %3369 = vmatpush1.bf16.msra.mxu0 %v3302
    %3370 = vmatprep.subr.bf16.mxu0 0
    %3371 = vmatpush1.bf16.msra.mxu0 %v3303
    %3372 = vmatprep.subr.bf16.mxu0 0
    %3373 = vmatpush1.bf16.msra.mxu0 %v3304
    %3374 = vmatprep.subr.bf16.mxu0 0
    %3375 = vmatpush1.bf16.msra.mxu0 %v3305
    %3376 = vmatprep.subr.bf16.mxu0 0
    %3377 = vmatpush1.bf16.msra.mxu0 %v3306
    %3378 = vmatprep.subr.bf16.mxu0 0
    %3379 = vmatpush1.bf16.msra.mxu0 %v3307
    %3380 = vmatprep.subr.bf16.mxu0 0
    %3381 = vmatpush1.bf16.msra.mxu0 %v3308
    %3382 = vmatprep.subr.bf16.mxu0 0
    %3383 = vmatpush1.bf16.msra.mxu0 %v3309
    %3384 = vmatprep.subr.bf16.mxu0 0
    %3385 = vmatpush1.bf16.msra.mxu0 %v3310
    %3386 = vmatprep.subr.bf16.mxu0 0
    %3387 = vmatpush1.bf16.msra.mxu0 %v3311
    %3388 = vmatprep.subr.bf16.mxu0 0
    %3389 = vmatpush1.bf16.msra.mxu0 %v3312
    %3390 = vmatprep.subr.bf16.mxu0 0
    %3391 = vmatpush1.bf16.msra.mxu0 %v3313
    %3392 = vmatprep.subr.bf16.mxu0 0
    %3393 = vmatpush1.bf16.msra.mxu0 %v3314
    %3394 = vmatprep.subr.bf16.mxu0 0
    %3395 = vmatpush1.bf16.msra.mxu0 %v3315
    %3396 = vmatprep.mubr.bf16.mxu0 %v3050
    %3397 = vmatmul.mubr.bf16.gmra.mrb[0].mxu0 %v3049
    %v3398 = vpop.f32.mrb[0].mxu0
    %v3399 = vadd.f32 %v3170, %v3398
    %v3400 = vpop.f32.mrb[0].mxu0
    %v3401 = vpop.f32.mrb[0].mxu0
    %v3402 = vadd.f32 %v3170, %v3401
    %v3403 = vpop.f32.mrb[0].mxu0
    %3404 = vmatprep.mubr.bf16.mxu0 %v3054
    %3405 = vmatmul.mubr.bf16.gmra.mrb[0].mxu0 %v3053
    %v3406 = vpop.f32.mrb[0].mxu0
    %v3407 = vadd.f32 %v3170, %v3406
    %v3408 = vpop.f32.mrb[0].mxu0
    %v3409 = vpop.f32.mrb[0].mxu0
    %v3410 = vadd.f32 %v3170, %v3409
    %v3411 = vpop.f32.mrb[0].mxu0
    %3412 = vmatprep.mubr.bf16.mxu0 %v3058
    %3413 = vmatmul.mubr.bf16.gmra.mrb[0].mxu0 %v3057
    %v3414 = vpop.f32.mrb[0].mxu0
    %v3415 = vadd.f32 %v3170, %v3414
    %v3416 = vpop.f32.mrb[0].mxu0
    %v3417 = vpop.f32.mrb[0].mxu0
    %v3418 = vadd.f32 %v3170, %v3417
    %v3419 = vpop.f32.mrb[0].mxu0
    %3420 = vmatprep.mubr.bf16.mxu0 %v3062
    %3421 = vmatmul.mubr.bf16.gmra.mrb[0].mxu0 %v3061
    %v3422 = vpop.f32.mrb[0].mxu0
    %v3423 = vadd.f32 %v3170, %v3422
    %v3424 = vpop.f32.mrb[0].mxu0
    %v3425 = vpop.f32.mrb[0].mxu0
    %v3426 = vadd.f32 %v3170, %v3425
    %v3427 = vpop.f32.mrb[0].mxu0
    %3428 = vmatprep.mubr.bf16.mxu0 %v3066
    %3429 = vmatmul.mubr.bf16.gmra.mrb[0].mxu0 %v3065
    %v3430 = vpop.f32.mrb[0].mxu0
    %v3431 = vadd.f32 %v3170, %v3430
    %v3432 = vpop.f32.mrb[0].mxu0
    %v3433 = vpop.f32.mrb[0].mxu0
    %v3434 = vadd.f32 %v3170, %v3433
    %v3435 = vpop.f32.mrb[0].mxu0
    %3436 = vmatprep.mubr.bf16.mxu0 %v3070
    %3437 = vmatmul.mubr.bf16.gmra.mrb[0].mxu0 %v3069
    %v3438 = vpop.f32.mrb[0].mxu0
    %v3439 = vadd.f32 %v3170, %v3438
    %v3440 = vpop.f32.mrb[0].mxu0
    %v3441 = vpop.f32.mrb[0].mxu0
    %v3442 = vadd.f32 %v3170, %v3441
    %v3443 = vpop.f32.mrb[0].mxu0
    %3444 = vmatprep.mubr.bf16.mxu0 %v3074
    %3445 = vmatmul.mubr.bf16.gmra.mrb[0].mxu0 %v3073
    %v3446 = vpop.f32.mrb[0].mxu0
    %v3447 = vadd.f32 %v3170, %v3446
    %v3448 = vpop.f32.mrb[0].mxu0
    %v3449 = vpop.f32.mrb[0].mxu0
    %v3450 = vadd.f32 %v3170, %v3449
    %v3451 = vpop.f32.mrb[0].mxu0
    %3452 = vmatprep.mubr.bf16.mxu0 %v3078
    %3453 = vmatmul.mubr.bf16.gmra.mrb[0].mxu0 %v3077
    %v3454 = vpop.f32.mrb[0].mxu0
    %v3455 = vadd.f32 %v3170, %v3454
    %v3456 = vpop.f32.mrb[0].mxu0
    %v3457 = vpop.f32.mrb[0].mxu0
    %v3458 = vadd.f32 %v3170, %v3457
    %v3459 = vpop.f32.mrb[0].mxu0
    %3460 = vmatprep.mubr.bf16.mxu0 %v3082
    %3461 = vmatmul.mubr.bf16.gmra.mrb[0].mxu0 %v3081
    %v3462 = vpop.f32.mrb[0].mxu0
    %v3463 = vadd.f32 %v3170, %v3462
    %v3464 = vpop.f32.mrb[0].mxu0
    %v3465 = vpop.f32.mrb[0].mxu0
    %v3466 = vadd.f32 %v3170, %v3465
    %v3467 = vpop.f32.mrb[0].mxu0
    %3468 = vmatprep.mubr.bf16.mxu0 %v3086
    %3469 = vmatmul.mubr.bf16.gmra.mrb[0].mxu0 %v3085
    %v3470 = vpop.f32.mrb[0].mxu0
    %v3471 = vadd.f32 %v3170, %v3470
    %v3472 = vpop.f32.mrb[0].mxu0
    %v3473 = vpop.f32.mrb[0].mxu0
    %v3474 = vadd.f32 %v3170, %v3473
    %v3475 = vpop.f32.mrb[0].mxu0
    %3476 = vmatprep.mubr.bf16.mxu0 %v3090
    %3477 = vmatmul.mubr.bf16.gmra.mrb[0].mxu0 %v3089
    %v3478 = vpop.f32.mrb[0].mxu0
    %v3479 = vadd.f32 %v3170, %v3478
    %v3480 = vpop.f32.mrb[0].mxu0
    %v3481 = vpop.f32.mrb[0].mxu0
    %v3482 = vadd.f32 %v3170, %v3481
    %v3483 = vpop.f32.mrb[0].mxu0
    %3484 = vmatprep.mubr.bf16.mxu0 %v3094
    %3485 = vmatmul.mubr.bf16.gmra.mrb[0].mxu0 %v3093
    %v3486 = vpop.f32.mrb[0].mxu0
    %v3487 = vadd.f32 %v3170, %v3486
    %v3488 = vpop.f32.mrb[0].mxu0
    %v3489 = vpop.f32.mrb[0].mxu0
    %v3490 = vadd.f32 %v3170, %v3489
    %v3491 = vpop.f32.mrb[0].mxu0
    %3492 = vmatprep.mubr.bf16.mxu0 %v3098
    %3493 = vmatmul.mubr.bf16.gmra.mrb[0].mxu0 %v3097
    %v3494 = vpop.f32.mrb[0].mxu0
    %v3495 = vadd.f32 %v3170, %v3494
    %v3496 = vpop.f32.mrb[0].mxu0
    %v3497 = vpop.f32.mrb[0].mxu0
    %v3498 = vpop.f32.mrb[0].mxu0
    %3499 = vdwg.mxu0
    %3500 = vmatprep.subr.bf16.mxu0 0
    %3501 = vmatpush1.bf16.msra.mxu0 %v3316
    %3502 = vmatprep.subr.bf16.mxu0 0
    %3503 = vmatpush1.bf16.msra.mxu0 %v3317
    %3504 = vmatprep.subr.bf16.mxu0 0
    %3505 = vmatpush1.bf16.msra.mxu0 %v3318
    %3506 = vmatprep.subr.bf16.mxu0 0
    %3507 = vmatpush1.bf16.msra.mxu0 %v3319
    %3508 = vmatprep.subr.bf16.mxu0 0
    %3509 = vmatpush1.bf16.msra.mxu0 %v3320
    %3510 = vmatprep.subr.bf16.mxu0 0
    %3511 = vmatpush1.bf16.msra.mxu0 %v3321
    %3512 = vmatprep.subr.bf16.mxu0 0
    %3513 = vmatpush1.bf16.msra.mxu0 %v3322
    %3514 = vmatprep.subr.bf16.mxu0 0
    %3515 = vmatpush1.bf16.msra.mxu0 %v3323
    %3516 = vmatprep.subr.bf16.mxu0 0
    %3517 = vmatpush1.bf16.msra.mxu0 %v3324
    %3518 = vmatprep.subr.bf16.mxu0 0
    %3519 = vmatpush1.bf16.msra.mxu0 %v3325
    %3520 = vmatprep.subr.bf16.mxu0 0
    %3521 = vmatpush1.bf16.msra.mxu0 %v3326
    %3522 = vmatprep.subr.bf16.mxu0 0
    %3523 = vmatpush1.bf16.msra.mxu0 %v3327
    %3524 = vmatprep.subr.bf16.mxu0 0
    %3525 = vmatpush1.bf16.msra.mxu0 %v3328
    %3526 = vmatprep.subr.bf16.mxu0 0
    %3527 = vmatpush1.bf16.msra.mxu0 %v3329
    %3528 = vmatprep.subr.bf16.mxu0 0
    %3529 = vmatpush1.bf16.msra.mxu0 %v3330
    %3530 = vmatprep.subr.bf16.mxu0 0
    %3531 = vmatpush1.bf16.msra.mxu0 %v3331
    %3532 = vmatprep.mubr.bf16.mxu0 %v3052
    %3533 = vmatmul.mubr.bf16.gmra.mrb[0].mxu0 %v3051
    %v3534 = vpop.f32.mrb[0].mxu0
    %v3535 = vadd.f32 %v3399, %v3534
    %v3536 = vpop.f32.mrb[0].mxu0
    %v3537 = vpop.f32.mrb[0].mxu0
    %v3538 = vadd.f32 %v3402, %v3537
    %v3539 = vpop.f32.mrb[0].mxu0
    %3540 = vmatprep.mubr.bf16.mxu0 %v3056
    %3541 = vmatmul.mubr.bf16.gmra.mrb[0].mxu0 %v3055
    %v3542 = vpop.f32.mrb[0].mxu0
    %v3543 = vadd.f32 %v3407, %v3542
    %v3544 = vpop.f32.mrb[0].mxu0
    %v3545 = vpop.f32.mrb[0].mxu0
    %v3546 = vadd.f32 %v3410, %v3545
    %v3547 = vpop.f32.mrb[0].mxu0
    %3548 = vmatprep.mubr.bf16.mxu0 %v3060
    %3549 = vmatmul.mubr.bf16.gmra.mrb[0].mxu0 %v3059
    %v3550 = vpop.f32.mrb[0].mxu0
    %v3551 = vadd.f32 %v3415, %v3550
    %v3552 = vpop.f32.mrb[0].mxu0
    %v3553 = vpop.f32.mrb[0].mxu0
    %v3554 = vadd.f32 %v3418, %v3553
    %v3555 = vpop.f32.mrb[0].mxu0
    %3556 = vmatprep.mubr.bf16.mxu0 %v3064
    %3557 = vmatmul.mubr.bf16.gmra.mrb[0].mxu0 %v3063
    %v3558 = vpop.f32.mrb[0].mxu0
    %v3559 = vadd.f32 %v3423, %v3558
    %v3560 = vpop.f32.mrb[0].mxu0
    %v3561 = vpop.f32.mrb[0].mxu0
    %v3562 = vadd.f32 %v3426, %v3561
    %v3563 = vpop.f32.mrb[0].mxu0
    %3564 = vmatprep.mubr.bf16.mxu0 %v3068
    %3565 = vmatmul.mubr.bf16.gmra.mrb[0].mxu0 %v3067
    %v3566 = vpop.f32.mrb[0].mxu0
    %v3567 = vadd.f32 %v3431, %v3566
    %v3568 = vpop.f32.mrb[0].mxu0
    %v3569 = vpop.f32.mrb[0].mxu0
    %v3570 = vadd.f32 %v3434, %v3569
    %v3571 = vpop.f32.mrb[0].mxu0
    %3572 = vmatprep.mubr.bf16.mxu0 %v3072
    %3573 = vmatmul.mubr.bf16.gmra.mrb[0].mxu0 %v3071
    %v3574 = vpop.f32.mrb[0].mxu0
    %v3575 = vadd.f32 %v3439, %v3574
    %v3576 = vpop.f32.mrb[0].mxu0
    %v3577 = vpop.f32.mrb[0].mxu0
    %v3578 = vadd.f32 %v3442, %v3577
    %v3579 = vpop.f32.mrb[0].mxu0
    %3580 = vmatprep.mubr.bf16.mxu0 %v3076
    %3581 = vmatmul.mubr.bf16.gmra.mrb[0].mxu0 %v3075
    %v3582 = vpop.f32.mrb[0].mxu0
    %v3583 = vadd.f32 %v3447, %v3582
    %v3584 = vpop.f32.mrb[0].mxu0
    %v3585 = vpop.f32.mrb[0].mxu0
    %v3586 = vadd.f32 %v3450, %v3585
    %v3587 = vpop.f32.mrb[0].mxu0
    %3588 = vmatprep.mubr.bf16.mxu0 %v3080
    %3589 = vmatmul.mubr.bf16.gmra.mrb[0].mxu0 %v3079
    %v3590 = vpop.f32.mrb[0].mxu0
    %v3591 = vadd.f32 %v3455, %v3590
    %v3592 = vpop.f32.mrb[0].mxu0
    %v3593 = vpop.f32.mrb[0].mxu0
    %v3594 = vadd.f32 %v3458, %v3593
    %v3595 = vpop.f32.mrb[0].mxu0
    %3596 = vmatprep.mubr.bf16.mxu0 %v3084
    %3597 = vmatmul.mubr.bf16.gmra.mrb[0].mxu0 %v3083
    %v3598 = vpop.f32.mrb[0].mxu0
    %v3599 = vadd.f32 %v3463, %v3598
    %v3600 = vpop.f32.mrb[0].mxu0
    %v3601 = vpop.f32.mrb[0].mxu0
    %v3602 = vadd.f32 %v3466, %v3601
    %v3603 = vpop.f32.mrb[0].mxu0
    %3604 = vmatprep.mubr.bf16.mxu0 %v3088
    %3605 = vmatmul.mubr.bf16.gmra.mrb[0].mxu0 %v3087
    %v3606 = vpop.f32.mrb[0].mxu0
    %v3607 = vadd.f32 %v3471, %v3606
    %v3608 = vpop.f32.mrb[0].mxu0
    %v3609 = vpop.f32.mrb[0].mxu0
    %v3610 = vadd.f32 %v3474, %v3609
    %v3611 = vpop.f32.mrb[0].mxu0
    %3612 = vmatprep.mubr.bf16.mxu0 %v3092
    %3613 = vmatmul.mubr.bf16.gmra.mrb[0].mxu0 %v3091
    %v3614 = vpop.f32.mrb[0].mxu0
    %v3615 = vadd.f32 %v3479, %v3614
    %v3616 = vpop.f32.mrb[0].mxu0
    %v3617 = vpop.f32.mrb[0].mxu0
    %v3618 = vadd.f32 %v3482, %v3617
    %v3619 = vpop.f32.mrb[0].mxu0
    %3620 = vmatprep.mubr.bf16.mxu0 %v3096
    %3621 = vmatmul.mubr.bf16.gmra.mrb[0].mxu0 %v3095
    %v3622 = vpop.f32.mrb[0].mxu0
    %v3623 = vadd.f32 %v3487, %v3622
    %v3624 = vpop.f32.mrb[0].mxu0
    %v3625 = vpop.f32.mrb[0].mxu0
    %v3626 = vadd.f32 %v3490, %v3625
    %v3627 = vpop.f32.mrb[0].mxu0
    %3628 = vmatprep.mubr.bf16.mxu0 %v3100
    %3629 = vmatmul.mubr.bf16.gmra.mrb[0].mxu0 %v3099
    %v3630 = vpop.f32.mrb[0].mxu0
    %v3631 = vadd.f32 %v3495, %v3630
    %v3632 = vpop.f32.mrb[0].mxu0
    %v3633 = vpop.f32.mrb[0].mxu0
    %v3634 = vpop.f32.mrb[0].mxu0
    %3635 = vdwg.mxu0
    %3636 = vst [vmem:[#allocation10] sm:$0xff] %v3535
    %3637 = vst [vmem:[#allocation10 + $0x8] sm:$0xff] %v3538
    %3638 = vst [vmem:[#allocation10 + $0x10] sm:$0xff] %v3543
    %3639 = vst [vmem:[#allocation10 + $0x18] sm:$0xff] %v3546
    %3640 = vst [vmem:[#allocation10 + $0x20] sm:$0xff] %v3551
    %3641 = vst [vmem:[#allocation10 + $0x28] sm:$0xff] %v3554
    %3642 = vst [vmem:[#allocation10 + $0x30] sm:$0xff] %v3559
    %3643 = vst [vmem:[#allocation10 + $0x38] sm:$0xff] %v3562
    %3644 = vst [vmem:[#allocation10 + $0x40] sm:$0xff] %v3567
    %3645 = vst [vmem:[#allocation10 + $0x48] sm:$0xff] %v3570
    %3646 = vst [vmem:[#allocation10 + $0x50] sm:$0xff] %v3575
    %3647 = vst [vmem:[#allocation10 + $0x58] sm:$0xff] %v3578
    %3648 = vst [vmem:[#allocation10 + $0x60] sm:$0xff] %v3583
    %3649 = vst [vmem:[#allocation10 + $0x68] sm:$0xff] %v3586
    %3650 = vst [vmem:[#allocation10 + $0x70] sm:$0xff] %v3591
    %3651 = vst [vmem:[#allocation10 + $0x78] sm:$0xff] %v3594
    %3652 = vst [vmem:[#allocation10 + $0x80] sm:$0xff] %v3599
    %3653 = vst [vmem:[#allocation10 + $0x88] sm:$0xff] %v3602
    %3654 = vst [vmem:[#allocation10 + $0x90] sm:$0xff] %v3607
    %3655 = vst [vmem:[#allocation10 + $0x98] sm:$0xff] %v3610
    %3656 = vst [vmem:[#allocation10 + $0xa0] sm:$0xff] %v3615
    %3657 = vst [vmem:[#allocation10 + $0xa8] sm:$0xff] %v3618
    %3658 = vst [vmem:[#allocation10 + $0xb0] sm:$0xff] %v3623
    %3659 = vst [vmem:[#allocation10 + $0xb8] sm:$0xff] %v3626
    %3660 = vst [vmem:[#allocation10 + $0xc0] sm:$0xff] %v3631
    // Predicated region
    $region46: #{tpu_custom_call.1} parent=1 // pred_check
      _
    $region47: #{tpu_custom_call.1} parent=1 // pred_check_branch
      %3662 = sbr.rel (0) target = $region49
    $region48: #{tpu_custom_call.1} parent=1 // pred_region
      %s3664 = ssub.s32 3200, 3200
      %3665 = vsyncadd [#allocation4], %s3664
      %s3666 = sshll.u32 [#allocation10], 4
      %s3667 = int_to_ptr.vmem [resolvable:$true] %s3666
      %3672 = dma.vmem_to_hbm [thread:$0]  %s3667, 3200, %s7, [#allocation4], 128, 128, 8
    $region49: #{tpu_custom_call.1} parent=1 // pred_fallthru
      _
    // Predicated region
    $region50: #{tpu_custom_call.1} parent=1 // pred_check
      _
    $region51: #{tpu_custom_call.1} parent=1 // pred_check_branch
      %3674 = sbr.rel (0) target = $region53
    $region52: #{tpu_custom_call.1} parent=1 // pred_region
      %3675 = dma.done [#allocation4], 3200
    $region53: #{tpu_custom_call.1} parent=1 // pred_fallthru
      _
    %3676 = vsyncpa [#allocation3], 1
    %3677 = vsyncpa [#allocation6], 1
    %3678 = vsyncpa [#allocation9], 1
    %3679 = vsyncpa [#allocation4], 1

</llo_original>
